<compile_context>
chip_gen: v5e
topology: v5e:2x2
jax: 0.10.0
libtpu: 0.0.40
codegen_flags: <defaults>
</compile_context>

<pallas_src>
import functools

import numpy as np

import jax
import jax.numpy as jnp
from jax.experimental import pallas as pl
from jax.experimental.pallas import tpu as pltpu


# ------------------------------ Pallas kernel ------------------------------ #

def _fused_cnn_mlp_kernel(x_ref, a_ref, bc_ref, w1_ref, b1_ref, w2_ref, b2_ref,
                          o_ref, feat_ref, *, hout, row_cols, row_stride,
                          chunk_p):
    """Fused Conv2d(+ReLU) -> Flatten -> Linear(+ReLU) -> Linear(+ReLU).

    x_ref   : (TN, H*W*Cin)          bf16 input tile, (h, w, c)-flattened, 0..255
    a_ref   : (k*W*Cin, chunk_p)     bf16 banded conv-as-matmul weight (lane-padded)
    bc_ref  : (1, chunk_p)           f32 conv bias tiled over Wout (zero in pad)
    w1_ref  : (Hout*chunk_p, H0)     bf16 fc1 weight, rows in (i, j, o) order,
                                     zero rows in the lane-pad positions
    b1_ref  : (1, H0)                f32
    w2_ref  : (H0, H1)               bf16 fc2 weight
    b2_ref  : (1, H1)                f32
    o_ref   : (TN, H1)               f32 output
    feat_ref: (TN, Hout*chunk_p)     bf16 VMEM feature scratch
    """
    inv255 = jnp.float32(1.0 / 255.0)
    a = a_ref[...]          # loaded once; same MXU RHS for every conv row below
    bc = bc_ref[...]        # loaded once (bias broadcast hoisted out of the loop)

    # Phase 1: conv output rows -> bf16 feature scratch.  Static loop over
    # hout; each row is one contiguous lane slice of the input tile, one MXU
    # matmul against A (f32 accumulation), scale + bias + ReLU in f32, then a
    # lane-aligned bf16 store.  No loop-carried accumulator.
    for i in range(hout):
        start = i * row_stride
        xi = x_ref[:, start:start + row_cols]                         # (TN, k*W*Cin) bf16
        ci = jnp.dot(xi, a, preferred_element_type=jnp.float32)       # conv matmul
        fi = jnp.maximum(ci * inv255 + bc, 0.0)                       # scale + bias + ReLU
        feat_ref[:, i * chunk_p:(i + 1) * chunk_p] = fi.astype(jnp.bfloat16)

    # Phase 2: fc1 (+ReLU) as one big matmul, then fc2 (+ReLU).
    h = jnp.dot(feat_ref[...], w1_ref[...], preferred_element_type=jnp.float32)
    h = jnp.maximum(h + b1_ref[...], 0.0).astype(jnp.bfloat16)        # fc1 + ReLU
    y = jnp.dot(h, w2_ref[...], preferred_element_type=jnp.float32)
    o_ref[...] = jnp.maximum(y + b2_ref[...], 0.0)                    # fc2 + ReLU


# ------------------------------ host wrapper ------------------------------- #

def _round_up(v, m):
    return -(-v // m) * m


def _pick_tiling(n, in_cols, feat_p, h_last):
    """Batch tile size (multiple of 16 rows for bf16 blocks) + padded batch."""
    n16 = _round_up(max(n, 1), 16)
    # Conservative (v7x-safe) VMEM bytes per batch row: bf16 x double-buffer +
    # bf16 feature scratch + f32 output double-buffer.
    per_row = 2 * 2 * in_cols + 2 * feat_p + 2 * 4 * h_last
    cap = max(16, min(1024, (20 * 1024 * 1024 // per_row) // 16 * 16))
    # >= 2 grid steps for mid/large batches so v7x's two TensorCores both get
    # work; tile size derived from the batch (not a fixed 512) to bound
    # padding waste to < 16 rows per tile.
    min_tiles = 2 if n16 >= 32 else 1
    num_tiles = max(min_tiles, -(-n16 // cap))
    block_n = _round_up(-(-n16 // num_tiles), 16)
    return block_n, block_n * num_tiles


@functools.partial(jax.jit, static_argnames=("kernel_size", "stride"))
def cnn_forward(x_nchw, a, bc, w1, b1, w2, b2, *, kernel_size=3, stride=1):
    """Equivalent of CNNBaseGraphCritic.forward on NCHW uint8/float input."""
    n, cin, height, width = x_nchw.shape
    hout = (height - kernel_size) // stride + 1
    chunk_p = a.shape[1]                      # lane-padded Wout*Cout
    row_cols = kernel_size * width * cin      # lane width of one conv-row slice
    row_stride = stride * width * cin
    in_cols = height * width * cin
    feat_p = w1.shape[0]
    h0 = w1.shape[1]
    h_last = w2.shape[1]
    assert feat_p == hout * chunk_p

    # NCHW -> lane-dense bf16 (N, H*W*Cin) slab in one fused producer op.
    # 0..255 pixel values are exact in bf16; 1/255 is applied in-kernel.
    x2 = jnp.transpose(x_nchw, (0, 2, 3, 1)).reshape(n, in_cols).astype(jnp.bfloat16)

    block_n, n_pad = _pick_tiling(n, in_cols, feat_p, h_last)
    if n_pad != n:
        x2 = jnp.pad(x2, ((0, n_pad - n), (0, 0)))

    kernel = functools.partial(_fused_cnn_mlp_kernel, hout=hout,
                               row_cols=row_cols, row_stride=row_stride,
                               chunk_p=chunk_p)
    flops = 2 * n_pad * (hout * row_cols * chunk_p    # conv (banded matmul form)
                         + feat_p * h0                # fc1
                         + h0 * h_last)               # fc2
    bytes_accessed = (2 * (x2.size + a.size + w1.size + w2.size)
                      + 4 * (bc.size + b1.size + b2.size + n_pad * h_last))

    out = pl.pallas_call(
        kernel,
        out_shape=jax.ShapeDtypeStruct((n_pad, h_last), jnp.float32),
        grid=(n_pad // block_n,),
        in_specs=[
            pl.BlockSpec((block_n, in_cols), lambda i: (i, 0)),   # batch-tiled x
            pl.BlockSpec(a.shape, lambda i: (0, 0)),              # VMEM-resident weights
            pl.BlockSpec(bc.shape, lambda i: (0, 0)),
            pl.BlockSpec(w1.shape, lambda i: (0, 0)),
            pl.BlockSpec(b1.shape, lambda i: (0, 0)),
            pl.BlockSpec(w2.shape, lambda i: (0, 0)),
            pl.BlockSpec(b2.shape, lambda i: (0, 0)),
        ],
        out_specs=pl.BlockSpec((block_n, h_last), lambda i: (i, 0)),
        scratch_shapes=[pltpu.VMEM((block_n, feat_p), jnp.bfloat16)],
        compiler_params=pltpu.CompilerParams(
            dimension_semantics=("parallel",),       # batch tiles split on v7x's 2 TCs
            vmem_limit_bytes=32 * 1024 * 1024),
        cost_estimate=pl.CostEstimate(flops=int(flops), transcendentals=0,
                                      bytes_accessed=int(bytes_accessed)),
    )(x2, a, bc, w1, b1, w2, b2)
    return out[:n]


# -------------------------- parameter construction ------------------------- #

def _build_conv_matrix(w_conv_oihw, wout, width, stride, chunk_p):
    """(Cout,Cin,k,k) conv weight -> banded (k*W*Cin, chunk_p) matmul matrix.

    Row index m = kh*W*Cin + w_in*Cin + c, column index f = j*Cout + o for
    j < Wout; columns >= Wout*Cout are zero lane padding.
    A[m, f] = w[o, c, kh, w_in - j*stride] when 0 <= w_in - j*stride < k.
    """
    w_np = np.asarray(w_conv_oihw, np.float32)
    cout, cin, k, _ = w_np.shape
    a = np.zeros((k * width * cin, chunk_p), np.float32)
    for kh in range(k):
        for kw in range(k):
            blk = w_np[:, :, kh, kw].T                     # (Cin, Cout)
            for j in range(wout):
                w_in = j * stride + kw
                r0 = kh * width * cin + w_in * cin
                a[r0:r0 + cin, j * cout:(j + 1) * cout] = blk
    return jnp.asarray(a)


def init_params(key, cin, height, width, hidden_sizes, kernel_size=3, stride=1):
    """Synthetic parameters in PyTorch layout plus their kernel re-layout.

    Orthogonal/xavier init + gain in the module is host-side parameter
    initialization, not forward-pass math, so plain Gaussians are used here.
    Weights are rounded to bf16-representable values so the f32 reference and
    the bf16-MXU kernel share identical weight values.
    """
    h0, h1 = hidden_sizes[0], hidden_sizes[1]
    cout = h0 // 2
    hout = (height - kernel_size) // stride + 1
    wout = (width - kernel_size) // stride + 1
    feat = cout * hout * wout
    chunk_p = _round_up(wout * cout, 128)    # lane-padded conv chunk width

    k0, k1, k2, k3, k4, k5 = jax.random.split(key, 6)

    def bf16r(v):
        return v.astype(jnp.bfloat16).astype(jnp.float32)

    tparams = dict(
        w_conv=bf16r(0.1 * jax.random.normal(k0, (cout, cin, kernel_size, kernel_size), jnp.float32)),
        b_conv=bf16r(0.1 * jax.random.normal(k3, (cout,), jnp.float32)),
        w_fc1=bf16r(0.05 * jax.random.normal(k1, (h0, feat), jnp.float32)),
        b_fc1=bf16r(0.1 * jax.random.normal(k4, (h0,), jnp.float32)),
        w_fc2=bf16r(0.05 * jax.random.normal(k2, (h1, h0), jnp.float32)),
        b_fc2=bf16r(0.1 * jax.random.normal(k5, (h1,), jnp.float32)),
    )

    # Kernel layouts: banded conv matrix (lane-padded), conv bias tiled over
    # Wout, fc1 rows permuted from torch's (cout, hout, wout) flatten order to
    # the kernel's (hout, wout, cout) order with zero rows in the lane pad.
    a = _build_conv_matrix(tparams["w_conv"], wout, width, stride, chunk_p)
    bc = np.zeros((1, chunk_p), np.float32)
    bc[0, :wout * cout] = np.tile(np.asarray(tparams["b_conv"], np.float32), wout)
    w1r = tparams["w_fc1"].reshape(h0, cout, hout, wout).transpose(0, 2, 3, 1)
    w1r = w1r.reshape(h0, hout, wout * cout)
    w1r = jnp.pad(w1r, ((0, 0), (0, 0), (0, chunk_p - wout * cout)))
    w1 = w1r.reshape(h0, hout * chunk_p).T                 # (hout*chunk_p, h0)

    kparams = dict(
        a=a.astype(jnp.bfloat16),
        bc=jnp.asarray(bc),
        w1=w1.astype(jnp.bfloat16),
        b1=tparams["b_fc1"].reshape(1, h0),
        w2=tparams["w_fc2"].T.astype(jnp.bfloat16),
        b2=tparams["b_fc2"].reshape(1, h1),
    )
    return tparams, kparams


# ------------------------------ JAX reference ------------------------------ #

def reference_forward(x_nchw, tp, stride=1):
    """Pure-JAX f32 reference straight from PyTorch-layout weights."""
    hi = jax.lax.Precision.HIGHEST
    x = x_nchw.astype(jnp.float32) / 255.0
    conv = jax.lax.conv_general_dilated(
        x, tp["w_conv"], window_strides=(stride, stride), padding="VALID",
        dimension_numbers=("NCHW", "OIHW", "NCHW"), precision=hi)
    conv = jnp.maximum(conv + tp["b_conv"].reshape(1, -1, 1, 1), 0.0)
    feat = conv.reshape(x.shape[0], -1)                 # torch Flatten: (c, h, w)
    h = jnp.maximum(jnp.dot(feat, tp["w_fc1"].T, precision=hi) + tp["b_fc1"], 0.0)
    return jnp.maximum(jnp.dot(h, tp["w_fc2"].T, precision=hi) + tp["b_fc2"], 0.0)


if __name__ == "__main__":
    # Module convention: obs_shape = (C, W, H); Conv2d input is NCHW; pixel
    # observations are uint8 in [0, 255] and the module divides by 255.
    obs_shape = (4, 16, 16)
    hidden_sizes = (32, 32)
    batch = 2
    cin, width, height = obs_shape

    key = jax.random.PRNGKey(0)
    key_p, key_x, key_p2, key_x2 = jax.random.split(key, 4)

    tparams, kparams = init_params(key_p, cin, height, width, hidden_sizes)
    x = jax.random.randint(key_x, (batch, cin, height, width), 0, 256,
                           dtype=jnp.int32).astype(jnp.uint8)

    out = cnn_forward(x, kparams["a"], kparams["bc"], kparams["w1"],
                      kparams["b1"], kparams["w2"], kparams["b2"],
                      kernel_size=3, stride=1)
    out = jax.block_until_ready(out)
    ref = reference_forward(x, tparams)
    assert out.shape == (batch, hidden_sizes[-1])
    assert jnp.allclose(out, ref, atol=3e-2, rtol=3e-2), \
        float(jnp.max(jnp.abs(out - ref)))

    # Second check: non-square spatial dims + batch needing padding, exercising
    # the (hout, wout) layout, the lane-pad of the conv chunk, and tiling.
    height2, width2, batch2 = 16, 12, 5
    tparams2, kparams2 = init_params(key_p2, cin, height2, width2, hidden_sizes)
    x2 = jax.random.randint(key_x2, (batch2, cin, height2, width2), 0, 256,
                            dtype=jnp.int32).astype(jnp.uint8)
    out2 = jax.block_until_ready(
        cnn_forward(x2, kparams2["a"], kparams2["bc"], kparams2["w1"],
                    kparams2["b1"], kparams2["w2"], kparams2["b2"],
                    kernel_size=3, stride=1))
    ref2 = reference_forward(x2, tparams2)
    assert out2.shape == (batch2, hidden_sizes[-1])
    assert jnp.allclose(out2, ref2, atol=3e-2, rtol=3e-2), \
        float(jnp.max(jnp.abs(out2 - ref2)))

    print("KERNEL_OK")
</pallas_src>

<mosaic_0001>
module attributes {stable_mosaic.version = 11 : i64} {
  func.func @_fused_cnn_mlp_kernel(%arg0: i32, %arg1: memref<16x1024xbf16, #tpu.memory_space<vmem>>, %arg2: memref<192x256xbf16, #tpu.memory_space<vmem>>, %arg3: memref<1x256xf32, #tpu.memory_space<vmem>>, %arg4: memref<3584x32xbf16, #tpu.memory_space<vmem>>, %arg5: memref<1x32xf32, #tpu.memory_space<vmem>>, %arg6: memref<32x32xbf16, #tpu.memory_space<vmem>>, %arg7: memref<1x32xf32, #tpu.memory_space<vmem>>, %arg8: memref<16x32xf32, #tpu.memory_space<vmem>>, %arg9: memref<16x3584xbf16, #tpu.memory_space<vmem>>) attributes {dimension_semantics = [#tpu.dimension_semantics<parallel>], iteration_bounds = array<i64: 1>, scalar_prefetch = 0 : i64, scratch_operands = 1 : i64, tpu.core_type = #tpu.core_type<tc>, window_params = [{transform_indices = @transform_0, window_bounds = array<i64: 16, 1024>}, {pipeline_mode = #tpu.pipeline_mode<synchronous>, transform_indices = @transform_1, window_bounds = array<i64: 192, 256>}, {pipeline_mode = #tpu.pipeline_mode<synchronous>, transform_indices = @transform_2, window_bounds = array<i64: 1, 256>}, {pipeline_mode = #tpu.pipeline_mode<synchronous>, transform_indices = @transform_3, window_bounds = array<i64: 3584, 32>}, {pipeline_mode = #tpu.pipeline_mode<synchronous>, transform_indices = @transform_4, window_bounds = array<i64: 1, 32>}, {pipeline_mode = #tpu.pipeline_mode<synchronous>, transform_indices = @transform_5, window_bounds = array<i64: 32, 32>}, {pipeline_mode = #tpu.pipeline_mode<synchronous>, transform_indices = @transform_6, window_bounds = array<i64: 1, 32>}, {transform_indices = @transform_7, window_bounds = array<i64: 16, 32>}]} {
    %c0 = arith.constant 0 : index
    %c0_0 = arith.constant 0 : index
    %0 = vector.load %arg2[%c0, %c0_0] : memref<192x256xbf16, #tpu.memory_space<vmem>>, vector<192x256xbf16>
    %c0_1 = arith.constant 0 : index
    %c0_2 = arith.constant 0 : index
    %1 = vector.load %arg3[%c0_1, %c0_2] : memref<1x256xf32, #tpu.memory_space<vmem>>, vector<1x256xf32>
    %c0_3 = arith.constant 0 : index
    %c0_4 = arith.constant 0 : index
    %2 = vector.load %arg1[%c0_3, %c0_4] : memref<16x1024xbf16, #tpu.memory_space<vmem>>, vector<16x192xbf16>
    %cst = arith.constant dense<0.000000e+00> : vector<16x256xf32>
    %3 = tpu.matmul %2, %0, %cst {dimension_numbers = #tpu.dot_dimension_numbers<[1], [0], [0], [1], [0, 0, 1, 1], [], []>} : vector<16x192xbf16>, vector<192x256xbf16>, vector<16x256xf32> -> vector<16x256xf32>
    %cst_5 = arith.constant 0.00392156886 : f32
    %4 = vector.broadcast %cst_5 : f32 to vector<16x256xf32>
    %5 = arith.mulf %3, %4 : vector<16x256xf32>
    %6 = vector.broadcast %1 : vector<1x256xf32> to vector<16x256xf32>
    %7 = arith.addf %5, %6 : vector<16x256xf32>
    %cst_6 = arith.constant 0.000000e+00 : f32
    %8 = vector.broadcast %cst_6 : f32 to vector<16x256xf32>
    %9 = arith.maximumf %7, %8 : vector<16x256xf32>
    %10 = arith.truncf %9 : vector<16x256xf32> to vector<16x256xbf16>
    %c0_7 = arith.constant 0 : index
    %c0_8 = arith.constant 0 : index
    %11 = vector.load %arg9[%c0_7, %c0_8] : memref<16x3584xbf16, #tpu.memory_space<vmem>>, vector<16x256xbf16>
    tpu.vector_store %arg9[%c0_7, %c0_8], %10 {strides = array<i32>} : memref<16x3584xbf16, #tpu.memory_space<vmem>>, vector<16x256xbf16>,
    %c0_9 = arith.constant 0 : index
    %c64 = arith.constant 64 : index
    %12 = vector.load %arg1[%c0_9, %c64] : memref<16x1024xbf16, #tpu.memory_space<vmem>>, vector<16x192xbf16>
    %cst_10 = arith.constant dense<0.000000e+00> : vector<16x256xf32>
    %13 = tpu.matmul %12, %0, %cst_10 {dimension_numbers = #tpu.dot_dimension_numbers<[1], [0], [0], [1], [0, 0, 1, 1], [], []>} : vector<16x192xbf16>, vector<192x256xbf16>, vector<16x256xf32> -> vector<16x256xf32>
    %cst_11 = arith.constant 0.00392156886 : f32
    %14 = vector.broadcast %cst_11 : f32 to vector<16x256xf32>
    %15 = arith.mulf %13, %14 : vector<16x256xf32>
    %16 = vector.broadcast %1 : vector<1x256xf32> to vector<16x256xf32>
    %17 = arith.addf %15, %16 : vector<16x256xf32>
    %cst_12 = arith.constant 0.000000e+00 : f32
    %18 = vector.broadcast %cst_12 : f32 to vector<16x256xf32>
    %19 = arith.maximumf %17, %18 : vector<16x256xf32>
    %20 = arith.truncf %19 : vector<16x256xf32> to vector<16x256xbf16>
    %c0_13 = arith.constant 0 : index
    %c256 = arith.constant 256 : index
    %21 = vector.load %arg9[%c0_13, %c256] : memref<16x3584xbf16, #tpu.memory_space<vmem>>, vector<16x256xbf16>
    tpu.vector_store %arg9[%c0_13, %c256], %20 {strides = array<i32>} : memref<16x3584xbf16, #tpu.memory_space<vmem>>, vector<16x256xbf16>,
    %c0_14 = arith.constant 0 : index
    %c128 = arith.constant 128 : index
    %22 = vector.load %arg1[%c0_14, %c128] : memref<16x1024xbf16, #tpu.memory_space<vmem>>, vector<16x192xbf16>
    %cst_15 = arith.constant dense<0.000000e+00> : vector<16x256xf32>
    %23 = tpu.matmul %22, %0, %cst_15 {dimension_numbers = #tpu.dot_dimension_numbers<[1], [0], [0], [1], [0, 0, 1, 1], [], []>} : vector<16x192xbf16>, vector<192x256xbf16>, vector<16x256xf32> -> vector<16x256xf32>
    %cst_16 = arith.constant 0.00392156886 : f32
    %24 = vector.broadcast %cst_16 : f32 to vector<16x256xf32>
    %25 = arith.mulf %23, %24 : vector<16x256xf32>
    %26 = vector.broadcast %1 : vector<1x256xf32> to vector<16x256xf32>
    %27 = arith.addf %25, %26 : vector<16x256xf32>
    %cst_17 = arith.constant 0.000000e+00 : f32
    %28 = vector.broadcast %cst_17 : f32 to vector<16x256xf32>
    %29 = arith.maximumf %27, %28 : vector<16x256xf32>
    %30 = arith.truncf %29 : vector<16x256xf32> to vector<16x256xbf16>
    %c0_18 = arith.constant 0 : index
    %c512 = arith.constant 512 : index
    %31 = vector.load %arg9[%c0_18, %c512] : memref<16x3584xbf16, #tpu.memory_space<vmem>>, vector<16x256xbf16>
    tpu.vector_store %arg9[%c0_18, %c512], %30 {strides = array<i32>} : memref<16x3584xbf16, #tpu.memory_space<vmem>>, vector<16x256xbf16>,
    %c0_19 = arith.constant 0 : index
    %c192 = arith.constant 192 : index
    %32 = vector.load %arg1[%c0_19, %c192] : memref<16x1024xbf16, #tpu.memory_space<vmem>>, vector<16x192xbf16>
    %cst_20 = arith.constant dense<0.000000e+00> : vector<16x256xf32>
    %33 = tpu.matmul %32, %0, %cst_20 {dimension_numbers = #tpu.dot_dimension_numbers<[1], [0], [0], [1], [0, 0, 1, 1], [], []>} : vector<16x192xbf16>, vector<192x256xbf16>, vector<16x256xf32> -> vector<16x256xf32>
    %cst_21 = arith.constant 0.00392156886 : f32
    %34 = vector.broadcast %cst_21 : f32 to vector<16x256xf32>
    %35 = arith.mulf %33, %34 : vector<16x256xf32>
    %36 = vector.broadcast %1 : vector<1x256xf32> to vector<16x256xf32>
    %37 = arith.addf %35, %36 : vector<16x256xf32>
    %cst_22 = arith.constant 0.000000e+00 : f32
    %38 = vector.broadcast %cst_22 : f32 to vector<16x256xf32>
    %39 = arith.maximumf %37, %38 : vector<16x256xf32>
    %40 = arith.truncf %39 : vector<16x256xf32> to vector<16x256xbf16>
    %c0_23 = arith.constant 0 : index
    %c768 = arith.constant 768 : index
    %41 = vector.load %arg9[%c0_23, %c768] : memref<16x3584xbf16, #tpu.memory_space<vmem>>, vector<16x256xbf16>
    tpu.vector_store %arg9[%c0_23, %c768], %40 {strides = array<i32>} : memref<16x3584xbf16, #tpu.memory_space<vmem>>, vector<16x256xbf16>,
    %c0_24 = arith.constant 0 : index
    %c256_25 = arith.constant 256 : index
    %42 = vector.load %arg1[%c0_24, %c256_25] : memref<16x1024xbf16, #tpu.memory_space<vmem>>, vector<16x192xbf16>
    %cst_26 = arith.constant dense<0.000000e+00> : vector<16x256xf32>
    %43 = tpu.matmul %42, %0, %cst_26 {dimension_numbers = #tpu.dot_dimension_numbers<[1], [0], [0], [1], [0, 0, 1, 1], [], []>} : vector<16x192xbf16>, vector<192x256xbf16>, vector<16x256xf32> -> vector<16x256xf32>
    %cst_27 = arith.constant 0.00392156886 : f32
    %44 = vector.broadcast %cst_27 : f32 to vector<16x256xf32>
    %45 = arith.mulf %43, %44 : vector<16x256xf32>
    %46 = vector.broadcast %1 : vector<1x256xf32> to vector<16x256xf32>
    %47 = arith.addf %45, %46 : vector<16x256xf32>
    %cst_28 = arith.constant 0.000000e+00 : f32
    %48 = vector.broadcast %cst_28 : f32 to vector<16x256xf32>
    %49 = arith.maximumf %47, %48 : vector<16x256xf32>
    %50 = arith.truncf %49 : vector<16x256xf32> to vector<16x256xbf16>
    %c0_29 = arith.constant 0 : index
    %c1024 = arith.constant 1024 : index
    %51 = vector.load %arg9[%c0_29, %c1024] : memref<16x3584xbf16, #tpu.memory_space<vmem>>, vector<16x256xbf16>
    tpu.vector_store %arg9[%c0_29, %c1024], %50 {strides = array<i32>} : memref<16x3584xbf16, #tpu.memory_space<vmem>>, vector<16x256xbf16>,
    %c0_30 = arith.constant 0 : index
    %c320 = arith.constant 320 : index
    %52 = vector.load %arg1[%c0_30, %c320] : memref<16x1024xbf16, #tpu.memory_space<vmem>>, vector<16x192xbf16>
    %cst_31 = arith.constant dense<0.000000e+00> : vector<16x256xf32>
    %53 = tpu.matmul %52, %0, %cst_31 {dimension_numbers = #tpu.dot_dimension_numbers<[1], [0], [0], [1], [0, 0, 1, 1], [], []>} : vector<16x192xbf16>, vector<192x256xbf16>, vector<16x256xf32> -> vector<16x256xf32>
    %cst_32 = arith.constant 0.00392156886 : f32
    %54 = vector.broadcast %cst_32 : f32 to vector<16x256xf32>
    %55 = arith.mulf %53, %54 : vector<16x256xf32>
    %56 = vector.broadcast %1 : vector<1x256xf32> to vector<16x256xf32>
    %57 = arith.addf %55, %56 : vector<16x256xf32>
    %cst_33 = arith.constant 0.000000e+00 : f32
    %58 = vector.broadcast %cst_33 : f32 to vector<16x256xf32>
    %59 = arith.maximumf %57, %58 : vector<16x256xf32>
    %60 = arith.truncf %59 : vector<16x256xf32> to vector<16x256xbf16>
    %c0_34 = arith.constant 0 : index
    %c1280 = arith.constant 1280 : index
    %61 = vector.load %arg9[%c0_34, %c1280] : memref<16x3584xbf16, #tpu.memory_space<vmem>>, vector<16x256xbf16>
    tpu.vector_store %arg9[%c0_34, %c1280], %60 {strides = array<i32>} : memref<16x3584xbf16, #tpu.memory_space<vmem>>, vector<16x256xbf16>,
    %c0_35 = arith.constant 0 : index
    %c384 = arith.constant 384 : index
    %62 = vector.load %arg1[%c0_35, %c384] : memref<16x1024xbf16, #tpu.memory_space<vmem>>, vector<16x192xbf16>
    %cst_36 = arith.constant dense<0.000000e+00> : vector<16x256xf32>
    %63 = tpu.matmul %62, %0, %cst_36 {dimension_numbers = #tpu.dot_dimension_numbers<[1], [0], [0], [1], [0, 0, 1, 1], [], []>} : vector<16x192xbf16>, vector<192x256xbf16>, vector<16x256xf32> -> vector<16x256xf32>
    %cst_37 = arith.constant 0.00392156886 : f32
    %64 = vector.broadcast %cst_37 : f32 to vector<16x256xf32>
    %65 = arith.mulf %63, %64 : vector<16x256xf32>
    %66 = vector.broadcast %1 : vector<1x256xf32> to vector<16x256xf32>
    %67 = arith.addf %65, %66 : vector<16x256xf32>
    %cst_38 = arith.constant 0.000000e+00 : f32
    %68 = vector.broadcast %cst_38 : f32 to vector<16x256xf32>
    %69 = arith.maximumf %67, %68 : vector<16x256xf32>
    %70 = arith.truncf %69 : vector<16x256xf32> to vector<16x256xbf16>
    %c0_39 = arith.constant 0 : index
    %c1536 = arith.constant 1536 : index
    %71 = vector.load %arg9[%c0_39, %c1536] : memref<16x3584xbf16, #tpu.memory_space<vmem>>, vector<16x256xbf16>
    tpu.vector_store %arg9[%c0_39, %c1536], %70 {strides = array<i32>} : memref<16x3584xbf16, #tpu.memory_space<vmem>>, vector<16x256xbf16>,
    %c0_40 = arith.constant 0 : index
    %c448 = arith.constant 448 : index
    %72 = vector.load %arg1[%c0_40, %c448] : memref<16x1024xbf16, #tpu.memory_space<vmem>>, vector<16x192xbf16>
    %cst_41 = arith.constant dense<0.000000e+00> : vector<16x256xf32>
    %73 = tpu.matmul %72, %0, %cst_41 {dimension_numbers = #tpu.dot_dimension_numbers<[1], [0], [0], [1], [0, 0, 1, 1], [], []>} : vector<16x192xbf16>, vector<192x256xbf16>, vector<16x256xf32> -> vector<16x256xf32>
    %cst_42 = arith.constant 0.00392156886 : f32
    %74 = vector.broadcast %cst_42 : f32 to vector<16x256xf32>
    %75 = arith.mulf %73, %74 : vector<16x256xf32>
    %76 = vector.broadcast %1 : vector<1x256xf32> to vector<16x256xf32>
    %77 = arith.addf %75, %76 : vector<16x256xf32>
    %cst_43 = arith.constant 0.000000e+00 : f32
    %78 = vector.broadcast %cst_43 : f32 to vector<16x256xf32>
    %79 = arith.maximumf %77, %78 : vector<16x256xf32>
    %80 = arith.truncf %79 : vector<16x256xf32> to vector<16x256xbf16>
    %c0_44 = arith.constant 0 : index
    %c1792 = arith.constant 1792 : index
    %81 = vector.load %arg9[%c0_44, %c1792] : memref<16x3584xbf16, #tpu.memory_space<vmem>>, vector<16x256xbf16>
    tpu.vector_store %arg9[%c0_44, %c1792], %80 {strides = array<i32>} : memref<16x3584xbf16, #tpu.memory_space<vmem>>, vector<16x256xbf16>,
    %c0_45 = arith.constant 0 : index
    %c512_46 = arith.constant 512 : index
    %82 = vector.load %arg1[%c0_45, %c512_46] : memref<16x1024xbf16, #tpu.memory_space<vmem>>, vector<16x192xbf16>
    %cst_47 = arith.constant dense<0.000000e+00> : vector<16x256xf32>
    %83 = tpu.matmul %82, %0, %cst_47 {dimension_numbers = #tpu.dot_dimension_numbers<[1], [0], [0], [1], [0, 0, 1, 1], [], []>} : vector<16x192xbf16>, vector<192x256xbf16>, vector<16x256xf32> -> vector<16x256xf32>
    %cst_48 = arith.constant 0.00392156886 : f32
    %84 = vector.broadcast %cst_48 : f32 to vector<16x256xf32>
    %85 = arith.mulf %83, %84 : vector<16x256xf32>
    %86 = vector.broadcast %1 : vector<1x256xf32> to vector<16x256xf32>
    %87 = arith.addf %85, %86 : vector<16x256xf32>
    %cst_49 = arith.constant 0.000000e+00 : f32
    %88 = vector.broadcast %cst_49 : f32 to vector<16x256xf32>
    %89 = arith.maximumf %87, %88 : vector<16x256xf32>
    %90 = arith.truncf %89 : vector<16x256xf32> to vector<16x256xbf16>
    %c0_50 = arith.constant 0 : index
    %c2048 = arith.constant 2048 : index
    %91 = vector.load %arg9[%c0_50, %c2048] : memref<16x3584xbf16, #tpu.memory_space<vmem>>, vector<16x256xbf16>
    tpu.vector_store %arg9[%c0_50, %c2048], %90 {strides = array<i32>} : memref<16x3584xbf16, #tpu.memory_space<vmem>>, vector<16x256xbf16>,
    %c0_51 = arith.constant 0 : index
    %c576 = arith.constant 576 : index
    %92 = vector.load %arg1[%c0_51, %c576] : memref<16x1024xbf16, #tpu.memory_space<vmem>>, vector<16x192xbf16>
    %cst_52 = arith.constant dense<0.000000e+00> : vector<16x256xf32>
    %93 = tpu.matmul %92, %0, %cst_52 {dimension_numbers = #tpu.dot_dimension_numbers<[1], [0], [0], [1], [0, 0, 1, 1], [], []>} : vector<16x192xbf16>, vector<192x256xbf16>, vector<16x256xf32> -> vector<16x256xf32>
    %cst_53 = arith.constant 0.00392156886 : f32
    %94 = vector.broadcast %cst_53 : f32 to vector<16x256xf32>
    %95 = arith.mulf %93, %94 : vector<16x256xf32>
    %96 = vector.broadcast %1 : vector<1x256xf32> to vector<16x256xf32>
    %97 = arith.addf %95, %96 : vector<16x256xf32>
    %cst_54 = arith.constant 0.000000e+00 : f32
    %98 = vector.broadcast %cst_54 : f32 to vector<16x256xf32>
    %99 = arith.maximumf %97, %98 : vector<16x256xf32>
    %100 = arith.truncf %99 : vector<16x256xf32> to vector<16x256xbf16>
    %c0_55 = arith.constant 0 : index
    %c2304 = arith.constant 2304 : index
    %101 = vector.load %arg9[%c0_55, %c2304] : memref<16x3584xbf16, #tpu.memory_space<vmem>>, vector<16x256xbf16>
    tpu.vector_store %arg9[%c0_55, %c2304], %100 {strides = array<i32>} : memref<16x3584xbf16, #tpu.memory_space<vmem>>, vector<16x256xbf16>,
    %c0_56 = arith.constant 0 : index
    %c640 = arith.constant 640 : index
    %102 = vector.load %arg1[%c0_56, %c640] : memref<16x1024xbf16, #tpu.memory_space<vmem>>, vector<16x192xbf16>
    %cst_57 = arith.constant dense<0.000000e+00> : vector<16x256xf32>
    %103 = tpu.matmul %102, %0, %cst_57 {dimension_numbers = #tpu.dot_dimension_numbers<[1], [0], [0], [1], [0, 0, 1, 1], [], []>} : vector<16x192xbf16>, vector<192x256xbf16>, vector<16x256xf32> -> vector<16x256xf32>
    %cst_58 = arith.constant 0.00392156886 : f32
    %104 = vector.broadcast %cst_58 : f32 to vector<16x256xf32>
    %105 = arith.mulf %103, %104 : vector<16x256xf32>
    %106 = vector.broadcast %1 : vector<1x256xf32> to vector<16x256xf32>
    %107 = arith.addf %105, %106 : vector<16x256xf32>
    %cst_59 = arith.constant 0.000000e+00 : f32
    %108 = vector.broadcast %cst_59 : f32 to vector<16x256xf32>
    %109 = arith.maximumf %107, %108 : vector<16x256xf32>
    %110 = arith.truncf %109 : vector<16x256xf32> to vector<16x256xbf16>
    %c0_60 = arith.constant 0 : index
    %c2560 = arith.constant 2560 : index
    %111 = vector.load %arg9[%c0_60, %c2560] : memref<16x3584xbf16, #tpu.memory_space<vmem>>, vector<16x256xbf16>
    tpu.vector_store %arg9[%c0_60, %c2560], %110 {strides = array<i32>} : memref<16x3584xbf16, #tpu.memory_space<vmem>>, vector<16x256xbf16>,
    %c0_61 = arith.constant 0 : index
    %c704 = arith.constant 704 : index
    %112 = vector.load %arg1[%c0_61, %c704] : memref<16x1024xbf16, #tpu.memory_space<vmem>>, vector<16x192xbf16>
    %cst_62 = arith.constant dense<0.000000e+00> : vector<16x256xf32>
    %113 = tpu.matmul %112, %0, %cst_62 {dimension_numbers = #tpu.dot_dimension_numbers<[1], [0], [0], [1], [0, 0, 1, 1], [], []>} : vector<16x192xbf16>, vector<192x256xbf16>, vector<16x256xf32> -> vector<16x256xf32>
    %cst_63 = arith.constant 0.00392156886 : f32
    %114 = vector.broadcast %cst_63 : f32 to vector<16x256xf32>
    %115 = arith.mulf %113, %114 : vector<16x256xf32>
    %116 = vector.broadcast %1 : vector<1x256xf32> to vector<16x256xf32>
    %117 = arith.addf %115, %116 : vector<16x256xf32>
    %cst_64 = arith.constant 0.000000e+00 : f32
    %118 = vector.broadcast %cst_64 : f32 to vector<16x256xf32>
    %119 = arith.maximumf %117, %118 : vector<16x256xf32>
    %120 = arith.truncf %119 : vector<16x256xf32> to vector<16x256xbf16>
    %c0_65 = arith.constant 0 : index
    %c2816 = arith.constant 2816 : index
    %121 = vector.load %arg9[%c0_65, %c2816] : memref<16x3584xbf16, #tpu.memory_space<vmem>>, vector<16x256xbf16>
    tpu.vector_store %arg9[%c0_65, %c2816], %120 {strides = array<i32>} : memref<16x3584xbf16, #tpu.memory_space<vmem>>, vector<16x256xbf16>,
    %c0_66 = arith.constant 0 : index
    %c768_67 = arith.constant 768 : index
    %122 = vector.load %arg1[%c0_66, %c768_67] : memref<16x1024xbf16, #tpu.memory_space<vmem>>, vector<16x192xbf16>
    %cst_68 = arith.constant dense<0.000000e+00> : vector<16x256xf32>
    %123 = tpu.matmul %122, %0, %cst_68 {dimension_numbers = #tpu.dot_dimension_numbers<[1], [0], [0], [1], [0, 0, 1, 1], [], []>} : vector<16x192xbf16>, vector<192x256xbf16>, vector<16x256xf32> -> vector<16x256xf32>
    %cst_69 = arith.constant 0.00392156886 : f32
    %124 = vector.broadcast %cst_69 : f32 to vector<16x256xf32>
    %125 = arith.mulf %123, %124 : vector<16x256xf32>
    %126 = vector.broadcast %1 : vector<1x256xf32> to vector<16x256xf32>
    %127 = arith.addf %125, %126 : vector<16x256xf32>
    %cst_70 = arith.constant 0.000000e+00 : f32
    %128 = vector.broadcast %cst_70 : f32 to vector<16x256xf32>
    %129 = arith.maximumf %127, %128 : vector<16x256xf32>
    %130 = arith.truncf %129 : vector<16x256xf32> to vector<16x256xbf16>
    %c0_71 = arith.constant 0 : index
    %c3072 = arith.constant 3072 : index
    %131 = vector.load %arg9[%c0_71, %c3072] : memref<16x3584xbf16, #tpu.memory_space<vmem>>, vector<16x256xbf16>
    tpu.vector_store %arg9[%c0_71, %c3072], %130 {strides = array<i32>} : memref<16x3584xbf16, #tpu.memory_space<vmem>>, vector<16x256xbf16>,
    %c0_72 = arith.constant 0 : index
    %c832 = arith.constant 832 : index
    %132 = vector.load %arg1[%c0_72, %c832] : memref<16x1024xbf16, #tpu.memory_space<vmem>>, vector<16x192xbf16>
    %cst_73 = arith.constant dense<0.000000e+00> : vector<16x256xf32>
    %133 = tpu.matmul %132, %0, %cst_73 {dimension_numbers = #tpu.dot_dimension_numbers<[1], [0], [0], [1], [0, 0, 1, 1], [], []>} : vector<16x192xbf16>, vector<192x256xbf16>, vector<16x256xf32> -> vector<16x256xf32>
    %cst_74 = arith.constant 0.00392156886 : f32
    %134 = vector.broadcast %cst_74 : f32 to vector<16x256xf32>
    %135 = arith.mulf %133, %134 : vector<16x256xf32>
    %136 = vector.broadcast %1 : vector<1x256xf32> to vector<16x256xf32>
    %137 = arith.addf %135, %136 : vector<16x256xf32>
    %cst_75 = arith.constant 0.000000e+00 : f32
    %138 = vector.broadcast %cst_75 : f32 to vector<16x256xf32>
    %139 = arith.maximumf %137, %138 : vector<16x256xf32>
    %140 = arith.truncf %139 : vector<16x256xf32> to vector<16x256xbf16>
    %c0_76 = arith.constant 0 : index
    %c3328 = arith.constant 3328 : index
    %141 = vector.load %arg9[%c0_76, %c3328] : memref<16x3584xbf16, #tpu.memory_space<vmem>>, vector<16x256xbf16>
    tpu.vector_store %arg9[%c0_76, %c3328], %140 {strides = array<i32>} : memref<16x3584xbf16, #tpu.memory_space<vmem>>, vector<16x256xbf16>,
    %c0_77 = arith.constant 0 : index
    %c0_78 = arith.constant 0 : index
    %142 = vector.load %arg9[%c0_77, %c0_78] : memref<16x3584xbf16, #tpu.memory_space<vmem>>, vector<16x3584xbf16>
    %c0_79 = arith.constant 0 : index
    %c0_80 = arith.constant 0 : index
    %143 = vector.load %arg4[%c0_79, %c0_80] : memref<3584x32xbf16, #tpu.memory_space<vmem>>, vector<3584x32xbf16>
    %cst_81 = arith.constant dense<0.000000e+00> : vector<16x32xf32>
    %144 = tpu.matmul %142, %143, %cst_81 {dimension_numbers = #tpu.dot_dimension_numbers<[1], [0], [0], [1], [0, 0, 1, 1], [], []>} : vector<16x3584xbf16>, vector<3584x32xbf16>, vector<16x32xf32> -> vector<16x32xf32>
    %c0_82 = arith.constant 0 : index
    %c0_83 = arith.constant 0 : index
    %145 = vector.load %arg5[%c0_82, %c0_83] : memref<1x32xf32, #tpu.memory_space<vmem>>, vector<1x32xf32>
    %146 = vector.broadcast %145 : vector<1x32xf32> to vector<16x32xf32>
    %147 = arith.addf %144, %146 : vector<16x32xf32>
    %cst_84 = arith.constant 0.000000e+00 : f32
    %148 = vector.broadcast %cst_84 : f32 to vector<16x32xf32>
    %149 = arith.maximumf %147, %148 : vector<16x32xf32>
    %150 = arith.truncf %149 : vector<16x32xf32> to vector<16x32xbf16>
    %c0_85 = arith.constant 0 : index
    %c0_86 = arith.constant 0 : index
    %151 = vector.load %arg6[%c0_85, %c0_86] : memref<32x32xbf16, #tpu.memory_space<vmem>>, vector<32x32xbf16>
    %cst_87 = arith.constant dense<0.000000e+00> : vector<16x32xf32>
    %152 = tpu.matmul %150, %151, %cst_87 {dimension_numbers = #tpu.dot_dimension_numbers<[1], [0], [0], [1], [0, 0, 1, 1], [], []>} : vector<16x32xbf16>, vector<32x32xbf16>, vector<16x32xf32> -> vector<16x32xf32>
    %c0_88 = arith.constant 0 : index
    %c0_89 = arith.constant 0 : index
    %153 = vector.load %arg7[%c0_88, %c0_89] : memref<1x32xf32, #tpu.memory_space<vmem>>, vector<1x32xf32>
    %154 = vector.broadcast %153 : vector<1x32xf32> to vector<16x32xf32>
    %155 = arith.addf %152, %154 : vector<16x32xf32>
    %cst_90 = arith.constant 0.000000e+00 : f32
    %156 = vector.broadcast %cst_90 : f32 to vector<16x32xf32>
    %157 = arith.maximumf %155, %156 : vector<16x32xf32>
    %c0_91 = arith.constant 0 : index
    %c0_92 = arith.constant 0 : index
    %158 = vector.load %arg8[%c0_91, %c0_92] : memref<16x32xf32, #tpu.memory_space<vmem>>, vector<16x32xf32>
    tpu.vector_store %arg8[%c0_91, %c0_92], %157 {strides = array<i32>} : memref<16x32xf32, #tpu.memory_space<vmem>>, vector<16x32xf32>,
    return
  }
  func.func @transform_0(%arg0: i32) -> (i32, i32) {
    %c0_i32 = arith.constant 0 : i32
    %c0_i32_0 = arith.constant 0 : i32
    return %arg0, %c0_i32 : i32, i32
  }
  func.func @transform_1(%arg0: i32) -> (i32, i32) {
    %c0_i32 = arith.constant 0 : i32
    %c0_i32_0 = arith.constant 0 : i32
    %c0_i32_1 = arith.constant 0 : i32
    return %c0_i32, %c0_i32_0 : i32, i32
  }
  func.func @transform_2(%arg0: i32) -> (i32, i32) {
    %c0_i32 = arith.constant 0 : i32
    %c0_i32_0 = arith.constant 0 : i32
    %c0_i32_1 = arith.constant 0 : i32
    return %c0_i32, %c0_i32_0 : i32, i32
  }
  func.func @transform_3(%arg0: i32) -> (i32, i32) {
    %c0_i32 = arith.constant 0 : i32
    %c0_i32_0 = arith.constant 0 : i32
    %c0_i32_1 = arith.constant 0 : i32
    return %c0_i32, %c0_i32_0 : i32, i32
  }
  func.func @transform_4(%arg0: i32) -> (i32, i32) {
    %c0_i32 = arith.constant 0 : i32
    %c0_i32_0 = arith.constant 0 : i32
    %c0_i32_1 = arith.constant 0 : i32
    return %c0_i32, %c0_i32_0 : i32, i32
  }
  func.func @transform_5(%arg0: i32) -> (i32, i32) {
    %c0_i32 = arith.constant 0 : i32
    %c0_i32_0 = arith.constant 0 : i32
    %c0_i32_1 = arith.constant 0 : i32
    return %c0_i32, %c0_i32_0 : i32, i32
  }
  func.func @transform_6(%arg0: i32) -> (i32, i32) {
    %c0_i32 = arith.constant 0 : i32
    %c0_i32_0 = arith.constant 0 : i32
    %c0_i32_1 = arith.constant 0 : i32
    return %c0_i32, %c0_i32_0 : i32, i32
  }
  func.func @transform_7(%arg0: i32) -> (i32, i32) {
    %c0_i32 = arith.constant 0 : i32
    %c0_i32_0 = arith.constant 0 : i32
    return %arg0, %c0_i32 : i32, i32
  }
}

</mosaic_0001>

<llo_original>
// kernel: cnn_forward.1
$region0: #{cnn_forward.1}
  #allocation0 [shape = 'u32[]', space=smem, size = 0x4, offset = 0x4, fixed_abs, tag = 'smem constant byte address 0x4 - core index']
  #allocation1 [shape = 'u32[72,128]{1,0:T(1,128)}', space=vmem, size = 0x9000, scoped, tag = 'internal scratch']
  #allocation2 [shape = 'bf16[16,3584]{1,0:T(8,128)(2,1)}', space=vmem, size = 0x1c000, scoped, tag = 'scratch operand']
  %s0 = inlined_call_operand.vmem [shape: bf16[16,1024], index: 0, kind: input, shape index: {}]
  %s1 = inlined_call_operand.vmem [shape: bf16[192,256], index: 1, kind: input, shape index: {}]
  %s2 = inlined_call_operand.vmem [shape: f32[1,256], index: 2, kind: input, shape index: {}]
  %s3 = inlined_call_operand.vmem [shape: bf16[3584,32], index: 3, kind: input, shape index: {}]
  %s4 = inlined_call_operand.vmem [shape: f32[1,32], index: 4, kind: input, shape index: {}]
  %s5 = inlined_call_operand.vmem [shape: bf16[32,32], index: 5, kind: input, shape index: {}]
  %s6 = inlined_call_operand.vmem [shape: f32[1,32], index: 6, kind: input, shape index: {}]
  %s7 = inlined_call_operand.vmem [shape: f32[16,32], index: 7, kind: output, shape index: {}]
  %s8 = sld [smem:[#allocation0]]
  $region38: #{cnn_forward.1} parent=0
    _
  %s10 = ssub.s32 1, %s8
  %s11 = scalar_select 0, %s10, %s8
  // Predicated region
  $region2: #{cnn_forward.1} parent=0 // pred_check
    _
  $region3: #{cnn_forward.1} parent=0 // pred_check_branch
    %13 = sbr.rel (0) target = $region5
  $region4: #{cnn_forward.1} parent=0 // pred_region
    _
  $region5: #{cnn_forward.1} parent=0 // pred_fallthru
    _
  // Predicated region
  $region6: #{cnn_forward.1} parent=0 // pred_check
    _
  $region7: #{cnn_forward.1} parent=0 // pred_check_branch
    %15 = sbr.rel (0) target = $region9
  $region8: #{cnn_forward.1} parent=0 // pred_region
    _
  $region9: #{cnn_forward.1} parent=0 // pred_fallthru
    _
  // Predicated region
  $region10: #{cnn_forward.1} parent=0 // pred_check
    _
  $region11: #{cnn_forward.1} parent=0 // pred_check_branch
    %17 = sbr.rel (0) target = $region13
  $region12: #{cnn_forward.1} parent=0 // pred_region
    _
  $region13: #{cnn_forward.1} parent=0 // pred_fallthru
    _
  // Predicated region
  $region14: #{cnn_forward.1} parent=0 // pred_check
    _
  $region15: #{cnn_forward.1} parent=0 // pred_check_branch
    %19 = sbr.rel (0) target = $region17
  $region16: #{cnn_forward.1} parent=0 // pred_region
    _
  $region17: #{cnn_forward.1} parent=0 // pred_fallthru
    _
  // Predicated region
  $region18: #{cnn_forward.1} parent=0 // pred_check
    _
  $region19: #{cnn_forward.1} parent=0 // pred_check_branch
    %21 = sbr.rel (0) target = $region21
  $region20: #{cnn_forward.1} parent=0 // pred_region
    _
  $region21: #{cnn_forward.1} parent=0 // pred_fallthru
    _
  // Predicated region
  $region22: #{cnn_forward.1} parent=0 // pred_check
    _
  $region23: #{cnn_forward.1} parent=0 // pred_check_branch
    %23 = sbr.rel (0) target = $region25
  $region24: #{cnn_forward.1} parent=0 // pred_region
    _
  $region25: #{cnn_forward.1} parent=0 // pred_fallthru
    _
  // Predicated region
  $region26: #{cnn_forward.1} parent=0 // pred_check
    _
  $region27: #{cnn_forward.1} parent=0 // pred_check_branch
    %25 = sbr.rel (0) target = $region29
  $region28: #{cnn_forward.1} parent=0 // pred_region
    _
  $region29: #{cnn_forward.1} parent=0 // pred_fallthru
    _
  %v27 = vld [vmem:[%s1] sm:$0xff]
  %v28 = vld [vmem:[%s1 + $0x8] sm:$0xff]
  %v29 = vld [vmem:[%s1 + $0x10] sm:$0xff]
  %v30 = vld [vmem:[%s1 + $0x18] sm:$0xff]
  %v31 = vld [vmem:[%s1 + $0x20] sm:$0xff]
  %v32 = vld [vmem:[%s1 + $0x28] sm:$0xff]
  %v33 = vld [vmem:[%s1 + $0x30] sm:$0xff]
  %v34 = vld [vmem:[%s1 + $0x38] sm:$0xff]
  %v35 = vld [vmem:[%s1 + $0x40] sm:$0xff]
  %v36 = vld [vmem:[%s1 + $0x48] sm:$0xff]
  %v37 = vld [vmem:[%s1 + $0x50] sm:$0xff]
  %v38 = vld [vmem:[%s1 + $0x58] sm:$0xff]
  %v39 = vld [vmem:[%s1 + $0x60] sm:$0xff]
  %v40 = vld [vmem:[%s1 + $0x68] sm:$0xff]
  %v41 = vld [vmem:[%s1 + $0x70] sm:$0xff]
  %v42 = vld [vmem:[%s1 + $0x78] sm:$0xff]
  %v43 = vld [vmem:[%s1 + $0x80] sm:$0xff]
  %v44 = vld [vmem:[%s1 + $0x88] sm:$0xff]
  %v45 = vld [vmem:[%s1 + $0x90] sm:$0xff]
  %v46 = vld [vmem:[%s1 + $0x98] sm:$0xff]
  %v47 = vld [vmem:[%s1 + $0xa0] sm:$0xff]
  %v48 = vld [vmem:[%s1 + $0xa8] sm:$0xff]
  %v49 = vld [vmem:[%s1 + $0xb0] sm:$0xff]
  %v50 = vld [vmem:[%s1 + $0xb8] sm:$0xff]
  %v51 = vld [vmem:[%s2] sm:$0x3]
  %v52 = vld [vmem:[%s0] sm:$0xff]
  %v53 = vld [vmem:[%s0 + $0x20] sm:$0xff]
  %v56 = vunpack.c.l.b16 %v52
  %v57 = vunpack.c.h.b16 %v52
  %v58 = vunpack.c.l.b16 %v53
  %v59 = vunpack.c.h.b16 %v53
  %v60 = vpack.c.b16 %v58, %v56
  %v61 = vpack.c.b16 %v59, %v57
  %v87 = vunpack.c.l.b16 %v27
  %v88 = vunpack.c.h.b16 %v27
  %v89 = vunpack.c.l.b16 %v28
  %v90 = vunpack.c.h.b16 %v28
  %v91 = vunpack.c.l.b16 %v29
  %v92 = vunpack.c.h.b16 %v29
  %v93 = vunpack.c.l.b16 %v30
  %v94 = vunpack.c.h.b16 %v30
  %v95 = vunpack.c.l.b16 %v31
  %v96 = vunpack.c.h.b16 %v31
  %v97 = vunpack.c.l.b16 %v32
  %v98 = vunpack.c.h.b16 %v32
  %v99 = vunpack.c.l.b16 %v33
  %v100 = vunpack.c.h.b16 %v33
  %v101 = vunpack.c.l.b16 %v34
  %v102 = vunpack.c.h.b16 %v34
  %v103 = vunpack.c.l.b16 %v35
  %v104 = vunpack.c.h.b16 %v35
  %v105 = vunpack.c.l.b16 %v36
  %v106 = vunpack.c.h.b16 %v36
  %v107 = vunpack.c.l.b16 %v37
  %v108 = vunpack.c.h.b16 %v37
  %v109 = vunpack.c.l.b16 %v38
  %v110 = vunpack.c.h.b16 %v38
  %v111 = vunpack.c.l.b16 %v39
  %v112 = vunpack.c.h.b16 %v39
  %v113 = vunpack.c.l.b16 %v40
  %v114 = vunpack.c.h.b16 %v40
  %v115 = vunpack.c.l.b16 %v41
  %v116 = vunpack.c.h.b16 %v41
  %v117 = vunpack.c.l.b16 %v42
  %v118 = vunpack.c.h.b16 %v42
  %v119 = vunpack.c.l.b16 %v43
  %v120 = vunpack.c.h.b16 %v43
  %v121 = vunpack.c.l.b16 %v44
  %v122 = vunpack.c.h.b16 %v44
  %v123 = vunpack.c.l.b16 %v45
  %v124 = vunpack.c.h.b16 %v45
  %v125 = vunpack.c.l.b16 %v46
  %v126 = vunpack.c.h.b16 %v46
  %v127 = vunpack.c.l.b16 %v47
  %v128 = vunpack.c.h.b16 %v47
  %v129 = vunpack.c.l.b16 %v48
  %v130 = vunpack.c.h.b16 %v48
  %v131 = vunpack.c.l.b16 %v49
  %v132 = vunpack.c.h.b16 %v49
  %v133 = vunpack.c.l.b16 %v50
  %v134 = vunpack.c.h.b16 %v50
  %v135 = vpack.c.b16 %v89, %v87
  %v136 = vpack.c.b16 %v90, %v88
  %v137 = vpack.c.b16 %v93, %v91
  %v138 = vpack.c.b16 %v94, %v92
  %v139 = vpack.c.b16 %v97, %v95
  %v140 = vpack.c.b16 %v98, %v96
  %v141 = vpack.c.b16 %v101, %v99
  %v142 = vpack.c.b16 %v102, %v100
  %v143 = vpack.c.b16 %v105, %v103
  %v144 = vpack.c.b16 %v106, %v104
  %v145 = vpack.c.b16 %v109, %v107
  %v146 = vpack.c.b16 %v110, %v108
  %v147 = vpack.c.b16 %v113, %v111
  %v148 = vpack.c.b16 %v114, %v112
  %v149 = vpack.c.b16 %v117, %v115
  %v150 = vpack.c.b16 %v118, %v116
  %v151 = vpack.c.b16 %v121, %v119
  %v152 = vpack.c.b16 %v122, %v120
  %v153 = vpack.c.b16 %v125, %v123
  %v154 = vpack.c.b16 %v126, %v124
  %v155 = vpack.c.b16 %v129, %v127
  %v156 = vpack.c.b16 %v130, %v128
  %v157 = vpack.c.b16 %v133, %v131
  %v158 = vpack.c.b16 %v134, %v132
  %vm183 = vcmask 523264
  %v185 = vsel %vm183, %v61, 0
  %187 = vmatpush.bf16.msra.mxu0 %v149
  %188 = vmatpush.bf16.msra.mxu0 %v147
  %189 = vmatpush.bf16.msra.mxu0 %v145
  %190 = vmatpush.bf16.msra.mxu0 %v143
  %191 = vmatpush.bf16.msra.mxu0 %v141
  %192 = vmatpush.bf16.msra.mxu0 %v139
  %193 = vmatpush.bf16.msra.mxu0 %v137
  %194 = vmatpush.bf16.msra.mxu0 %v135
  %195 = vmatmul.bf16.gmra.mxu0 %v60
  %v196 = vpop.f32.mrf.mxu0
  %v197 = vadd.f32 0.0, %v196
  %v198 = vpop.f32.mrf.mxu0
  %v199 = vadd.f32 0.0, %v198
  %200 = vdwg.mxu0
  %201 = vmatpush.bf16.msra.mxu0 0
  %202 = vmatpush.bf16.msra.mxu0 0
  %203 = vmatpush.bf16.msra.mxu0 0
  %204 = vmatpush.bf16.msra.mxu0 0
  %205 = vmatpush.bf16.msra.mxu0 %v157
  %206 = vmatpush.bf16.msra.mxu0 %v155
  %207 = vmatpush.bf16.msra.mxu0 %v153
  %208 = vmatpush.bf16.msra.mxu0 %v151
  %209 = vmatmul.bf16.gmra.mxu0 %v185
  %v210 = vpop.f32.mrf.mxu0
  %v211 = vadd.f32 %v197, %v210
  %v212 = vpop.f32.mrf.mxu0
  %v213 = vadd.f32 %v199, %v212
  %214 = vdwg.mxu0
  %215 = vmatpush.bf16.msra.mxu0 %v150
  %216 = vmatpush.bf16.msra.mxu0 %v148
  %217 = vmatpush.bf16.msra.mxu0 %v146
  %218 = vmatpush.bf16.msra.mxu0 %v144
  %219 = vmatpush.bf16.msra.mxu0 %v142
  %220 = vmatpush.bf16.msra.mxu0 %v140
  %221 = vmatpush.bf16.msra.mxu0 %v138
  %222 = vmatpush.bf16.msra.mxu0 %v136
  %223 = vmatmul.bf16.gmra.mxu0 %v60
  %v224 = vpop.f32.mrf.mxu0
  %v225 = vadd.f32 0.0, %v224
  %v226 = vpop.f32.mrf.mxu0
  %v227 = vadd.f32 0.0, %v226
  %228 = vdwg.mxu0
  %229 = vmatpush.bf16.msra.mxu0 0
  %230 = vmatpush.bf16.msra.mxu0 0
  %231 = vmatpush.bf16.msra.mxu0 0
  %232 = vmatpush.bf16.msra.mxu0 0
  %233 = vmatpush.bf16.msra.mxu0 %v158
  %234 = vmatpush.bf16.msra.mxu0 %v156
  %235 = vmatpush.bf16.msra.mxu0 %v154
  %236 = vmatpush.bf16.msra.mxu0 %v152
  %237 = vmatmul.bf16.gmra.mxu0 %v185
  %v238 = vpop.f32.mrf.mxu0
  %v239 = vadd.f32 %v225, %v238
  %v240 = vpop.f32.mrf.mxu0
  %v241 = vadd.f32 %v227, %v240
  %242 = vdwg.mxu0
  %v243 = vmul.f32 %v211, 0.003921569
  %v244 = vmul.f32 %v239, 0.003921569
  %v245 = vmul.f32 %v213, 0.003921569
  %v246 = vmul.f32 %v241, 0.003921569
  %v248 = vperm.slane %v51, 0
  %v249 = vperm.slane %v51, 1
  %v252 = vadd.f32 %v243, %v248
  %v253 = vadd.f32 %v244, %v249
  %v254 = vadd.f32 %v245, %v248
  %v255 = vadd.f32 %v246, %v249
  %v256 = vmax.f32 %v252, 0.0
  %v257 = vmax.f32 %v253, 0.0
  %v258 = vmax.f32 %v254, 0.0
  %v259 = vmax.f32 %v255, 0.0
  %v260 = vpack.c.bf16 %v257, %v256
  %v261 = vpack.c.bf16 %v259, %v258
  %262 = vst [vmem:[#allocation2] sm:$0xff] %v260
  %263 = vst [vmem:[#allocation2 + $0x70] sm:$0xff] %v261
  %v264 = vld [vmem:[%s0] sm:$0xff]
  %v265 = vld [vmem:[%s0 + $0x20] sm:$0xff]
  %v268 = vunpack.c.l.b16 %v264
  %v269 = vunpack.c.h.b16 %v264
  %v270 = vunpack.c.l.b16 %v265
  %v271 = vunpack.c.h.b16 %v265
  %v272 = vpack.c.b16 %v270, %v268
  %v273 = vpack.c.b16 %v271, %v269
  %274 = vrot.lane.b32.xlu0 %v272, 64
  %v275 = vpop.permute.xlu0 %274
  %276 = vrot.lane.b32.xlu0 %v273, 64
  %v277 = vpop.permute.xlu0 %276
  %vm278 = vcmask 523264
  %v279 = vsel %vm278, %v275, %v277
  %v282 = vsel %vm183, %v277, 0
  %284 = vmatpush.bf16.msra.mxu0 %v149
  %285 = vmatpush.bf16.msra.mxu0 %v147
  %286 = vmatpush.bf16.msra.mxu0 %v145
  %287 = vmatpush.bf16.msra.mxu0 %v143
  %288 = vmatpush.bf16.msra.mxu0 %v141
  %289 = vmatpush.bf16.msra.mxu0 %v139
  %290 = vmatpush.bf16.msra.mxu0 %v137
  %291 = vmatpush.bf16.msra.mxu0 %v135
  %292 = vmatmul.bf16.gmra.mxu0 %v279
  %v293 = vpop.f32.mrf.mxu0
  %v294 = vadd.f32 0.0, %v293
  %v295 = vpop.f32.mrf.mxu0
  %v296 = vadd.f32 0.0, %v295
  %297 = vdwg.mxu0
  %298 = vmatpush.bf16.msra.mxu0 0
  %299 = vmatpush.bf16.msra.mxu0 0
  %300 = vmatpush.bf16.msra.mxu0 0
  %301 = vmatpush.bf16.msra.mxu0 0
  %302 = vmatpush.bf16.msra.mxu0 %v157
  %303 = vmatpush.bf16.msra.mxu0 %v155
  %304 = vmatpush.bf16.msra.mxu0 %v153
  %305 = vmatpush.bf16.msra.mxu0 %v151
  %306 = vmatmul.bf16.gmra.mxu0 %v282
  %v307 = vpop.f32.mrf.mxu0
  %v308 = vadd.f32 %v294, %v307
  %v309 = vpop.f32.mrf.mxu0
  %v310 = vadd.f32 %v296, %v309
  %311 = vdwg.mxu0
  %312 = vmatpush.bf16.msra.mxu0 %v150
  %313 = vmatpush.bf16.msra.mxu0 %v148
  %314 = vmatpush.bf16.msra.mxu0 %v146
  %315 = vmatpush.bf16.msra.mxu0 %v144
  %316 = vmatpush.bf16.msra.mxu0 %v142
  %317 = vmatpush.bf16.msra.mxu0 %v140
  %318 = vmatpush.bf16.msra.mxu0 %v138
  %319 = vmatpush.bf16.msra.mxu0 %v136
  %320 = vmatmul.bf16.gmra.mxu0 %v279
  %v321 = vpop.f32.mrf.mxu0
  %v322 = vadd.f32 0.0, %v321
  %v323 = vpop.f32.mrf.mxu0
  %v324 = vadd.f32 0.0, %v323
  %325 = vdwg.mxu0
  %326 = vmatpush.bf16.msra.mxu0 0
  %327 = vmatpush.bf16.msra.mxu0 0
  %328 = vmatpush.bf16.msra.mxu0 0
  %329 = vmatpush.bf16.msra.mxu0 0
  %330 = vmatpush.bf16.msra.mxu0 %v158
  %331 = vmatpush.bf16.msra.mxu0 %v156
  %332 = vmatpush.bf16.msra.mxu0 %v154
  %333 = vmatpush.bf16.msra.mxu0 %v152
  %334 = vmatmul.bf16.gmra.mxu0 %v282
  %v335 = vpop.f32.mrf.mxu0
  %v336 = vadd.f32 %v322, %v335
  %v337 = vpop.f32.mrf.mxu0
  %v338 = vadd.f32 %v324, %v337
  %339 = vdwg.mxu0
  %v340 = vmul.f32 %v308, 0.003921569
  %v341 = vmul.f32 %v336, 0.003921569
  %v342 = vmul.f32 %v310, 0.003921569
  %v343 = vmul.f32 %v338, 0.003921569
  %v344 = vadd.f32 %v340, %v248
  %v345 = vadd.f32 %v341, %v249
  %v346 = vadd.f32 %v342, %v248
  %v347 = vadd.f32 %v343, %v249
  %v348 = vmax.f32 %v344, 0.0
  %v349 = vmax.f32 %v345, 0.0
  %v350 = vmax.f32 %v346, 0.0
  %v351 = vmax.f32 %v347, 0.0
  %v352 = vpack.c.bf16 %v349, %v348
  %v353 = vpack.c.bf16 %v351, %v350
  %354 = vst [vmem:[#allocation2 + $0x8] sm:$0xff] %v352
  %355 = vst [vmem:[#allocation2 + $0x78] sm:$0xff] %v353
  %v356 = vld [vmem:[%s0 + $0x4] sm:$0xff]
  %v357 = vld [vmem:[%s0 + $0x24] sm:$0xff]
  %v360 = vunpack.c.l.b16 %v356
  %v361 = vunpack.c.h.b16 %v356
  %v362 = vunpack.c.l.b16 %v357
  %v363 = vunpack.c.h.b16 %v357
  %v364 = vpack.c.b16 %v362, %v360
  %v365 = vpack.c.b16 %v363, %v361
  %v368 = vsel %vm183, %v365, 0
  %370 = vmatpush.bf16.msra.mxu0 %v149
  %371 = vmatpush.bf16.msra.mxu0 %v147
  %372 = vmatpush.bf16.msra.mxu0 %v145
  %373 = vmatpush.bf16.msra.mxu0 %v143
  %374 = vmatpush.bf16.msra.mxu0 %v141
  %375 = vmatpush.bf16.msra.mxu0 %v139
  %376 = vmatpush.bf16.msra.mxu0 %v137
  %377 = vmatpush.bf16.msra.mxu0 %v135
  %378 = vmatmul.bf16.gmra.mxu0 %v364
  %v379 = vpop.f32.mrf.mxu0
  %v380 = vadd.f32 0.0, %v379
  %v381 = vpop.f32.mrf.mxu0
  %v382 = vadd.f32 0.0, %v381
  %383 = vdwg.mxu0
  %384 = vmatpush.bf16.msra.mxu0 0
  %385 = vmatpush.bf16.msra.mxu0 0
  %386 = vmatpush.bf16.msra.mxu0 0
  %387 = vmatpush.bf16.msra.mxu0 0
  %388 = vmatpush.bf16.msra.mxu0 %v157
  %389 = vmatpush.bf16.msra.mxu0 %v155
  %390 = vmatpush.bf16.msra.mxu0 %v153
  %391 = vmatpush.bf16.msra.mxu0 %v151
  %392 = vmatmul.bf16.gmra.mxu0 %v368
  %v393 = vpop.f32.mrf.mxu0
  %v394 = vadd.f32 %v380, %v393
  %v395 = vpop.f32.mrf.mxu0
  %v396 = vadd.f32 %v382, %v395
  %397 = vdwg.mxu0
  %398 = vmatpush.bf16.msra.mxu0 %v150
  %399 = vmatpush.bf16.msra.mxu0 %v148
  %400 = vmatpush.bf16.msra.mxu0 %v146
  %401 = vmatpush.bf16.msra.mxu0 %v144
  %402 = vmatpush.bf16.msra.mxu0 %v142
  %403 = vmatpush.bf16.msra.mxu0 %v140
  %404 = vmatpush.bf16.msra.mxu0 %v138
  %405 = vmatpush.bf16.msra.mxu0 %v136
  %406 = vmatmul.bf16.gmra.mxu0 %v364
  %v407 = vpop.f32.mrf.mxu0
  %v408 = vadd.f32 0.0, %v407
  %v409 = vpop.f32.mrf.mxu0
  %v410 = vadd.f32 0.0, %v409
  %411 = vdwg.mxu0
  %412 = vmatpush.bf16.msra.mxu0 0
  %413 = vmatpush.bf16.msra.mxu0 0
  %414 = vmatpush.bf16.msra.mxu0 0
  %415 = vmatpush.bf16.msra.mxu0 0
  %416 = vmatpush.bf16.msra.mxu0 %v158
  %417 = vmatpush.bf16.msra.mxu0 %v156
  %418 = vmatpush.bf16.msra.mxu0 %v154
  %419 = vmatpush.bf16.msra.mxu0 %v152
  %420 = vmatmul.bf16.gmra.mxu0 %v368
  %v421 = vpop.f32.mrf.mxu0
  %v422 = vadd.f32 %v408, %v421
  %v423 = vpop.f32.mrf.mxu0
  %v424 = vadd.f32 %v410, %v423
  %425 = vdwg.mxu0
  %v426 = vmul.f32 %v394, 0.003921569
  %v427 = vmul.f32 %v422, 0.003921569
  %v428 = vmul.f32 %v396, 0.003921569
  %v429 = vmul.f32 %v424, 0.003921569
  %v430 = vadd.f32 %v426, %v248
  %v431 = vadd.f32 %v427, %v249
  %v432 = vadd.f32 %v428, %v248
  %v433 = vadd.f32 %v429, %v249
  %v434 = vmax.f32 %v430, 0.0
  %v435 = vmax.f32 %v431, 0.0
  %v436 = vmax.f32 %v432, 0.0
  %v437 = vmax.f32 %v433, 0.0
  %v438 = vpack.c.bf16 %v435, %v434
  %v439 = vpack.c.bf16 %v437, %v436
  %440 = vst [vmem:[#allocation2 + $0x10] sm:$0xff] %v438
  %441 = vst [vmem:[#allocation2 + $0x80] sm:$0xff] %v439
  %v442 = vld [vmem:[%s0 + $0x4] sm:$0xff]
  %v443 = vld [vmem:[%s0 + $0x24] sm:$0xff]
  %v446 = vunpack.c.l.b16 %v442
  %v447 = vunpack.c.h.b16 %v442
  %v448 = vunpack.c.l.b16 %v443
  %v449 = vunpack.c.h.b16 %v443
  %v450 = vpack.c.b16 %v448, %v446
  %v451 = vpack.c.b16 %v449, %v447
  %452 = vrot.lane.b32.xlu0 %v450, 64
  %v453 = vpop.permute.xlu0 %452
  %454 = vrot.lane.b32.xlu0 %v451, 64
  %v455 = vpop.permute.xlu0 %454
  %v456 = vsel %vm278, %v453, %v455
  %v459 = vsel %vm183, %v455, 0
  %461 = vmatpush.bf16.msra.mxu0 %v149
  %462 = vmatpush.bf16.msra.mxu0 %v147
  %463 = vmatpush.bf16.msra.mxu0 %v145
  %464 = vmatpush.bf16.msra.mxu0 %v143
  %465 = vmatpush.bf16.msra.mxu0 %v141
  %466 = vmatpush.bf16.msra.mxu0 %v139
  %467 = vmatpush.bf16.msra.mxu0 %v137
  %468 = vmatpush.bf16.msra.mxu0 %v135
  %469 = vmatmul.bf16.gmra.mxu0 %v456
  %v470 = vpop.f32.mrf.mxu0
  %v471 = vadd.f32 0.0, %v470
  %v472 = vpop.f32.mrf.mxu0
  %v473 = vadd.f32 0.0, %v472
  %474 = vdwg.mxu0
  %475 = vmatpush.bf16.msra.mxu0 0
  %476 = vmatpush.bf16.msra.mxu0 0
  %477 = vmatpush.bf16.msra.mxu0 0
  %478 = vmatpush.bf16.msra.mxu0 0
  %479 = vmatpush.bf16.msra.mxu0 %v157
  %480 = vmatpush.bf16.msra.mxu0 %v155
  %481 = vmatpush.bf16.msra.mxu0 %v153
  %482 = vmatpush.bf16.msra.mxu0 %v151
  %483 = vmatmul.bf16.gmra.mxu0 %v459
  %v484 = vpop.f32.mrf.mxu0
  %v485 = vadd.f32 %v471, %v484
  %v486 = vpop.f32.mrf.mxu0
  %v487 = vadd.f32 %v473, %v486
  %488 = vdwg.mxu0
  %489 = vmatpush.bf16.msra.mxu0 %v150
  %490 = vmatpush.bf16.msra.mxu0 %v148
  %491 = vmatpush.bf16.msra.mxu0 %v146
  %492 = vmatpush.bf16.msra.mxu0 %v144
  %493 = vmatpush.bf16.msra.mxu0 %v142
  %494 = vmatpush.bf16.msra.mxu0 %v140
  %495 = vmatpush.bf16.msra.mxu0 %v138
  %496 = vmatpush.bf16.msra.mxu0 %v136
  %497 = vmatmul.bf16.gmra.mxu0 %v456
  %v498 = vpop.f32.mrf.mxu0
  %v499 = vadd.f32 0.0, %v498
  %v500 = vpop.f32.mrf.mxu0
  %v501 = vadd.f32 0.0, %v500
  %502 = vdwg.mxu0
  %503 = vmatpush.bf16.msra.mxu0 0
  %504 = vmatpush.bf16.msra.mxu0 0
  %505 = vmatpush.bf16.msra.mxu0 0
  %506 = vmatpush.bf16.msra.mxu0 0
  %507 = vmatpush.bf16.msra.mxu0 %v158
  %508 = vmatpush.bf16.msra.mxu0 %v156
  %509 = vmatpush.bf16.msra.mxu0 %v154
  %510 = vmatpush.bf16.msra.mxu0 %v152
  %511 = vmatmul.bf16.gmra.mxu0 %v459
  %v512 = vpop.f32.mrf.mxu0
  %v513 = vadd.f32 %v499, %v512
  %v514 = vpop.f32.mrf.mxu0
  %v515 = vadd.f32 %v501, %v514
  %516 = vdwg.mxu0
  %v517 = vmul.f32 %v485, 0.003921569
  %v518 = vmul.f32 %v513, 0.003921569
  %v519 = vmul.f32 %v487, 0.003921569
  %v520 = vmul.f32 %v515, 0.003921569
  %v521 = vadd.f32 %v517, %v248
  %v522 = vadd.f32 %v518, %v249
  %v523 = vadd.f32 %v519, %v248
  %v524 = vadd.f32 %v520, %v249
  %v525 = vmax.f32 %v521, 0.0
  %v526 = vmax.f32 %v522, 0.0
  %v527 = vmax.f32 %v523, 0.0
  %v528 = vmax.f32 %v524, 0.0
  %v529 = vpack.c.bf16 %v526, %v525
  %v530 = vpack.c.bf16 %v528, %v527
  %531 = vst [vmem:[#allocation2 + $0x18] sm:$0xff] %v529
  %532 = vst [vmem:[#allocation2 + $0x88] sm:$0xff] %v530
  %v533 = vld [vmem:[%s0 + $0x8] sm:$0xff]
  %v534 = vld [vmem:[%s0 + $0x28] sm:$0xff]
  %v537 = vunpack.c.l.b16 %v533
  %v538 = vunpack.c.h.b16 %v533
  %v539 = vunpack.c.l.b16 %v534
  %v540 = vunpack.c.h.b16 %v534
  %v541 = vpack.c.b16 %v539, %v537
  %v542 = vpack.c.b16 %v540, %v538
  %v545 = vsel %vm183, %v542, 0
  %547 = vmatpush.bf16.msra.mxu0 %v149
  %548 = vmatpush.bf16.msra.mxu0 %v147
  %549 = vmatpush.bf16.msra.mxu0 %v145
  %550 = vmatpush.bf16.msra.mxu0 %v143
  %551 = vmatpush.bf16.msra.mxu0 %v141
  %552 = vmatpush.bf16.msra.mxu0 %v139
  %553 = vmatpush.bf16.msra.mxu0 %v137
  %554 = vmatpush.bf16.msra.mxu0 %v135
  %555 = vmatmul.bf16.gmra.mxu0 %v541
  %v556 = vpop.f32.mrf.mxu0
  %v557 = vadd.f32 0.0, %v556
  %v558 = vpop.f32.mrf.mxu0
  %v559 = vadd.f32 0.0, %v558
  %560 = vdwg.mxu0
  %561 = vmatpush.bf16.msra.mxu0 0
  %562 = vmatpush.bf16.msra.mxu0 0
  %563 = vmatpush.bf16.msra.mxu0 0
  %564 = vmatpush.bf16.msra.mxu0 0
  %565 = vmatpush.bf16.msra.mxu0 %v157
  %566 = vmatpush.bf16.msra.mxu0 %v155
  %567 = vmatpush.bf16.msra.mxu0 %v153
  %568 = vmatpush.bf16.msra.mxu0 %v151
  %569 = vmatmul.bf16.gmra.mxu0 %v545
  %v570 = vpop.f32.mrf.mxu0
  %v571 = vadd.f32 %v557, %v570
  %v572 = vpop.f32.mrf.mxu0
  %v573 = vadd.f32 %v559, %v572
  %574 = vdwg.mxu0
  %575 = vmatpush.bf16.msra.mxu0 %v150
  %576 = vmatpush.bf16.msra.mxu0 %v148
  %577 = vmatpush.bf16.msra.mxu0 %v146
  %578 = vmatpush.bf16.msra.mxu0 %v144
  %579 = vmatpush.bf16.msra.mxu0 %v142
  %580 = vmatpush.bf16.msra.mxu0 %v140
  %581 = vmatpush.bf16.msra.mxu0 %v138
  %582 = vmatpush.bf16.msra.mxu0 %v136
  %583 = vmatmul.bf16.gmra.mxu0 %v541
  %v584 = vpop.f32.mrf.mxu0
  %v585 = vadd.f32 0.0, %v584
  %v586 = vpop.f32.mrf.mxu0
  %v587 = vadd.f32 0.0, %v586
  %588 = vdwg.mxu0
  %589 = vmatpush.bf16.msra.mxu0 0
  %590 = vmatpush.bf16.msra.mxu0 0
  %591 = vmatpush.bf16.msra.mxu0 0
  %592 = vmatpush.bf16.msra.mxu0 0
  %593 = vmatpush.bf16.msra.mxu0 %v158
  %594 = vmatpush.bf16.msra.mxu0 %v156
  %595 = vmatpush.bf16.msra.mxu0 %v154
  %596 = vmatpush.bf16.msra.mxu0 %v152
  %597 = vmatmul.bf16.gmra.mxu0 %v545
  %v598 = vpop.f32.mrf.mxu0
  %v599 = vadd.f32 %v585, %v598
  %v600 = vpop.f32.mrf.mxu0
  %v601 = vadd.f32 %v587, %v600
  %602 = vdwg.mxu0
  %v603 = vmul.f32 %v571, 0.003921569
  %v604 = vmul.f32 %v599, 0.003921569
  %v605 = vmul.f32 %v573, 0.003921569
  %v606 = vmul.f32 %v601, 0.003921569
  %v607 = vadd.f32 %v603, %v248
  %v608 = vadd.f32 %v604, %v249
  %v609 = vadd.f32 %v605, %v248
  %v610 = vadd.f32 %v606, %v249
  %v611 = vmax.f32 %v607, 0.0
  %v612 = vmax.f32 %v608, 0.0
  %v613 = vmax.f32 %v609, 0.0
  %v614 = vmax.f32 %v610, 0.0
  %v615 = vpack.c.bf16 %v612, %v611
  %v616 = vpack.c.bf16 %v614, %v613
  %617 = vst [vmem:[#allocation2 + $0x20] sm:$0xff] %v615
  %618 = vst [vmem:[#allocation2 + $0x90] sm:$0xff] %v616
  %v619 = vld [vmem:[%s0 + $0x8] sm:$0xff]
  %v620 = vld [vmem:[%s0 + $0x28] sm:$0xff]
  %v623 = vunpack.c.l.b16 %v619
  %v624 = vunpack.c.h.b16 %v619
  %v625 = vunpack.c.l.b16 %v620
  %v626 = vunpack.c.h.b16 %v620
  %v627 = vpack.c.b16 %v625, %v623
  %v628 = vpack.c.b16 %v626, %v624
  %629 = vrot.lane.b32.xlu0 %v627, 64
  %v630 = vpop.permute.xlu0 %629
  %631 = vrot.lane.b32.xlu0 %v628, 64
  %v632 = vpop.permute.xlu0 %631
  %v633 = vsel %vm278, %v630, %v632
  %v636 = vsel %vm183, %v632, 0
  %638 = vmatpush.bf16.msra.mxu0 %v149
  %639 = vmatpush.bf16.msra.mxu0 %v147
  %640 = vmatpush.bf16.msra.mxu0 %v145
  %641 = vmatpush.bf16.msra.mxu0 %v143
  %642 = vmatpush.bf16.msra.mxu0 %v141
  %643 = vmatpush.bf16.msra.mxu0 %v139
  %644 = vmatpush.bf16.msra.mxu0 %v137
  %645 = vmatpush.bf16.msra.mxu0 %v135
  %646 = vmatmul.bf16.gmra.mxu0 %v633
  %v647 = vpop.f32.mrf.mxu0
  %v648 = vadd.f32 0.0, %v647
  %v649 = vpop.f32.mrf.mxu0
  %v650 = vadd.f32 0.0, %v649
  %651 = vdwg.mxu0
  %652 = vmatpush.bf16.msra.mxu0 0
  %653 = vmatpush.bf16.msra.mxu0 0
  %654 = vmatpush.bf16.msra.mxu0 0
  %655 = vmatpush.bf16.msra.mxu0 0
  %656 = vmatpush.bf16.msra.mxu0 %v157
  %657 = vmatpush.bf16.msra.mxu0 %v155
  %658 = vmatpush.bf16.msra.mxu0 %v153
  %659 = vmatpush.bf16.msra.mxu0 %v151
  %660 = vmatmul.bf16.gmra.mxu0 %v636
  %v661 = vpop.f32.mrf.mxu0
  %v662 = vadd.f32 %v648, %v661
  %v663 = vpop.f32.mrf.mxu0
  %v664 = vadd.f32 %v650, %v663
  %665 = vdwg.mxu0
  %666 = vmatpush.bf16.msra.mxu0 %v150
  %667 = vmatpush.bf16.msra.mxu0 %v148
  %668 = vmatpush.bf16.msra.mxu0 %v146
  %669 = vmatpush.bf16.msra.mxu0 %v144
  %670 = vmatpush.bf16.msra.mxu0 %v142
  %671 = vmatpush.bf16.msra.mxu0 %v140
  %672 = vmatpush.bf16.msra.mxu0 %v138
  %673 = vmatpush.bf16.msra.mxu0 %v136
  %674 = vmatmul.bf16.gmra.mxu0 %v633
  %v675 = vpop.f32.mrf.mxu0
  %v676 = vadd.f32 0.0, %v675
  %v677 = vpop.f32.mrf.mxu0
  %v678 = vadd.f32 0.0, %v677
  %679 = vdwg.mxu0
  %680 = vmatpush.bf16.msra.mxu0 0
  %681 = vmatpush.bf16.msra.mxu0 0
  %682 = vmatpush.bf16.msra.mxu0 0
  %683 = vmatpush.bf16.msra.mxu0 0
  %684 = vmatpush.bf16.msra.mxu0 %v158
  %685 = vmatpush.bf16.msra.mxu0 %v156
  %686 = vmatpush.bf16.msra.mxu0 %v154
  %687 = vmatpush.bf16.msra.mxu0 %v152
  %688 = vmatmul.bf16.gmra.mxu0 %v636
  %v689 = vpop.f32.mrf.mxu0
  %v690 = vadd.f32 %v676, %v689
  %v691 = vpop.f32.mrf.mxu0
  %v692 = vadd.f32 %v678, %v691
  %693 = vdwg.mxu0
  %v694 = vmul.f32 %v662, 0.003921569
  %v695 = vmul.f32 %v690, 0.003921569
  %v696 = vmul.f32 %v664, 0.003921569
  %v697 = vmul.f32 %v692, 0.003921569
  %v698 = vadd.f32 %v694, %v248
  %v699 = vadd.f32 %v695, %v249
  %v700 = vadd.f32 %v696, %v248
  %v701 = vadd.f32 %v697, %v249
  %v702 = vmax.f32 %v698, 0.0
  %v703 = vmax.f32 %v699, 0.0
  %v704 = vmax.f32 %v700, 0.0
  %v705 = vmax.f32 %v701, 0.0
  %v706 = vpack.c.bf16 %v703, %v702
  %v707 = vpack.c.bf16 %v705, %v704
  %708 = vst [vmem:[#allocation2 + $0x28] sm:$0xff] %v706
  %709 = vst [vmem:[#allocation2 + $0x98] sm:$0xff] %v707
  %v710 = vld [vmem:[%s0 + $0xc] sm:$0xff]
  %v711 = vld [vmem:[%s0 + $0x2c] sm:$0xff]
  %v714 = vunpack.c.l.b16 %v710
  %v715 = vunpack.c.h.b16 %v710
  %v716 = vunpack.c.l.b16 %v711
  %v717 = vunpack.c.h.b16 %v711
  %v718 = vpack.c.b16 %v716, %v714
  %v719 = vpack.c.b16 %v717, %v715
  %v722 = vsel %vm183, %v719, 0
  %724 = vmatpush.bf16.msra.mxu0 %v149
  %725 = vmatpush.bf16.msra.mxu0 %v147
  %726 = vmatpush.bf16.msra.mxu0 %v145
  %727 = vmatpush.bf16.msra.mxu0 %v143
  %728 = vmatpush.bf16.msra.mxu0 %v141
  %729 = vmatpush.bf16.msra.mxu0 %v139
  %730 = vmatpush.bf16.msra.mxu0 %v137
  %731 = vmatpush.bf16.msra.mxu0 %v135
  %732 = vmatmul.bf16.gmra.mxu0 %v718
  %v733 = vpop.f32.mrf.mxu0
  %v734 = vadd.f32 0.0, %v733
  %v735 = vpop.f32.mrf.mxu0
  %v736 = vadd.f32 0.0, %v735
  %737 = vdwg.mxu0
  %738 = vmatpush.bf16.msra.mxu0 0
  %739 = vmatpush.bf16.msra.mxu0 0
  %740 = vmatpush.bf16.msra.mxu0 0
  %741 = vmatpush.bf16.msra.mxu0 0
  %742 = vmatpush.bf16.msra.mxu0 %v157
  %743 = vmatpush.bf16.msra.mxu0 %v155
  %744 = vmatpush.bf16.msra.mxu0 %v153
  %745 = vmatpush.bf16.msra.mxu0 %v151
  %746 = vmatmul.bf16.gmra.mxu0 %v722
  %v747 = vpop.f32.mrf.mxu0
  %v748 = vadd.f32 %v734, %v747
  %v749 = vpop.f32.mrf.mxu0
  %v750 = vadd.f32 %v736, %v749
  %751 = vdwg.mxu0
  %752 = vmatpush.bf16.msra.mxu0 %v150
  %753 = vmatpush.bf16.msra.mxu0 %v148
  %754 = vmatpush.bf16.msra.mxu0 %v146
  %755 = vmatpush.bf16.msra.mxu0 %v144
  %756 = vmatpush.bf16.msra.mxu0 %v142
  %757 = vmatpush.bf16.msra.mxu0 %v140
  %758 = vmatpush.bf16.msra.mxu0 %v138
  %759 = vmatpush.bf16.msra.mxu0 %v136
  %760 = vmatmul.bf16.gmra.mxu0 %v718
  %v761 = vpop.f32.mrf.mxu0
  %v762 = vadd.f32 0.0, %v761
  %v763 = vpop.f32.mrf.mxu0
  %v764 = vadd.f32 0.0, %v763
  %765 = vdwg.mxu0
  %766 = vmatpush.bf16.msra.mxu0 0
  %767 = vmatpush.bf16.msra.mxu0 0
  %768 = vmatpush.bf16.msra.mxu0 0
  %769 = vmatpush.bf16.msra.mxu0 0
  %770 = vmatpush.bf16.msra.mxu0 %v158
  %771 = vmatpush.bf16.msra.mxu0 %v156
  %772 = vmatpush.bf16.msra.mxu0 %v154
  %773 = vmatpush.bf16.msra.mxu0 %v152
  %774 = vmatmul.bf16.gmra.mxu0 %v722
  %v775 = vpop.f32.mrf.mxu0
  %v776 = vadd.f32 %v762, %v775
  %v777 = vpop.f32.mrf.mxu0
  %v778 = vadd.f32 %v764, %v777
  %779 = vdwg.mxu0
  %v780 = vmul.f32 %v748, 0.003921569
  %v781 = vmul.f32 %v776, 0.003921569
  %v782 = vmul.f32 %v750, 0.003921569
  %v783 = vmul.f32 %v778, 0.003921569
  %v784 = vadd.f32 %v780, %v248
  %v785 = vadd.f32 %v781, %v249
  %v786 = vadd.f32 %v782, %v248
  %v787 = vadd.f32 %v783, %v249
  %v788 = vmax.f32 %v784, 0.0
  %v789 = vmax.f32 %v785, 0.0
  %v790 = vmax.f32 %v786, 0.0
  %v791 = vmax.f32 %v787, 0.0
  %v792 = vpack.c.bf16 %v789, %v788
  %v793 = vpack.c.bf16 %v791, %v790
  %794 = vst [vmem:[#allocation2 + $0x30] sm:$0xff] %v792
  %795 = vst [vmem:[#allocation2 + $0xa0] sm:$0xff] %v793
  %v796 = vld [vmem:[%s0 + $0xc] sm:$0xff]
  %v797 = vld [vmem:[%s0 + $0x2c] sm:$0xff]
  %v800 = vunpack.c.l.b16 %v796
  %v801 = vunpack.c.h.b16 %v796
  %v802 = vunpack.c.l.b16 %v797
  %v803 = vunpack.c.h.b16 %v797
  %v804 = vpack.c.b16 %v802, %v800
  %v805 = vpack.c.b16 %v803, %v801
  %806 = vrot.lane.b32.xlu0 %v804, 64
  %v807 = vpop.permute.xlu0 %806
  %808 = vrot.lane.b32.xlu0 %v805, 64
  %v809 = vpop.permute.xlu0 %808
  %v810 = vsel %vm278, %v807, %v809
  %v813 = vsel %vm183, %v809, 0
  %815 = vmatpush.bf16.msra.mxu0 %v149
  %816 = vmatpush.bf16.msra.mxu0 %v147
  %817 = vmatpush.bf16.msra.mxu0 %v145
  %818 = vmatpush.bf16.msra.mxu0 %v143
  %819 = vmatpush.bf16.msra.mxu0 %v141
  %820 = vmatpush.bf16.msra.mxu0 %v139
  %821 = vmatpush.bf16.msra.mxu0 %v137
  %822 = vmatpush.bf16.msra.mxu0 %v135
  %823 = vmatmul.bf16.gmra.mxu0 %v810
  %v824 = vpop.f32.mrf.mxu0
  %v825 = vadd.f32 0.0, %v824
  %v826 = vpop.f32.mrf.mxu0
  %v827 = vadd.f32 0.0, %v826
  %828 = vdwg.mxu0
  %829 = vmatpush.bf16.msra.mxu0 0
  %830 = vmatpush.bf16.msra.mxu0 0
  %831 = vmatpush.bf16.msra.mxu0 0
  %832 = vmatpush.bf16.msra.mxu0 0
  %833 = vmatpush.bf16.msra.mxu0 %v157
  %834 = vmatpush.bf16.msra.mxu0 %v155
  %835 = vmatpush.bf16.msra.mxu0 %v153
  %836 = vmatpush.bf16.msra.mxu0 %v151
  %837 = vmatmul.bf16.gmra.mxu0 %v813
  %v838 = vpop.f32.mrf.mxu0
  %v839 = vadd.f32 %v825, %v838
  %v840 = vpop.f32.mrf.mxu0
  %v841 = vadd.f32 %v827, %v840
  %842 = vdwg.mxu0
  %843 = vmatpush.bf16.msra.mxu0 %v150
  %844 = vmatpush.bf16.msra.mxu0 %v148
  %845 = vmatpush.bf16.msra.mxu0 %v146
  %846 = vmatpush.bf16.msra.mxu0 %v144
  %847 = vmatpush.bf16.msra.mxu0 %v142
  %848 = vmatpush.bf16.msra.mxu0 %v140
  %849 = vmatpush.bf16.msra.mxu0 %v138
  %850 = vmatpush.bf16.msra.mxu0 %v136
  %851 = vmatmul.bf16.gmra.mxu0 %v810
  %v852 = vpop.f32.mrf.mxu0
  %v853 = vadd.f32 0.0, %v852
  %v854 = vpop.f32.mrf.mxu0
  %v855 = vadd.f32 0.0, %v854
  %856 = vdwg.mxu0
  %857 = vmatpush.bf16.msra.mxu0 0
  %858 = vmatpush.bf16.msra.mxu0 0
  %859 = vmatpush.bf16.msra.mxu0 0
  %860 = vmatpush.bf16.msra.mxu0 0
  %861 = vmatpush.bf16.msra.mxu0 %v158
  %862 = vmatpush.bf16.msra.mxu0 %v156
  %863 = vmatpush.bf16.msra.mxu0 %v154
  %864 = vmatpush.bf16.msra.mxu0 %v152
  %865 = vmatmul.bf16.gmra.mxu0 %v813
  %v866 = vpop.f32.mrf.mxu0
  %v867 = vadd.f32 %v853, %v866
  %v868 = vpop.f32.mrf.mxu0
  %v869 = vadd.f32 %v855, %v868
  %870 = vdwg.mxu0
  %v871 = vmul.f32 %v839, 0.003921569
  %v872 = vmul.f32 %v867, 0.003921569
  %v873 = vmul.f32 %v841, 0.003921569
  %v874 = vmul.f32 %v869, 0.003921569
  %v875 = vadd.f32 %v871, %v248
  %v876 = vadd.f32 %v872, %v249
  %v877 = vadd.f32 %v873, %v248
  %v878 = vadd.f32 %v874, %v249
  %v879 = vmax.f32 %v875, 0.0
  %v880 = vmax.f32 %v876, 0.0
  %v881 = vmax.f32 %v877, 0.0
  %v882 = vmax.f32 %v878, 0.0
  %v883 = vpack.c.bf16 %v880, %v879
  %v884 = vpack.c.bf16 %v882, %v881
  %885 = vst [vmem:[#allocation2 + $0x38] sm:$0xff] %v883
  %886 = vst [vmem:[#allocation2 + $0xa8] sm:$0xff] %v884
  %v887 = vld [vmem:[%s0 + $0x10] sm:$0xff]
  %v888 = vld [vmem:[%s0 + $0x30] sm:$0xff]
  %v891 = vunpack.c.l.b16 %v887
  %v892 = vunpack.c.h.b16 %v887
  %v893 = vunpack.c.l.b16 %v888
  %v894 = vunpack.c.h.b16 %v888
  %v895 = vpack.c.b16 %v893, %v891
  %v896 = vpack.c.b16 %v894, %v892
  %v899 = vsel %vm183, %v896, 0
  %901 = vmatpush.bf16.msra.mxu0 %v149
  %902 = vmatpush.bf16.msra.mxu0 %v147
  %903 = vmatpush.bf16.msra.mxu0 %v145
  %904 = vmatpush.bf16.msra.mxu0 %v143
  %905 = vmatpush.bf16.msra.mxu0 %v141
  %906 = vmatpush.bf16.msra.mxu0 %v139
  %907 = vmatpush.bf16.msra.mxu0 %v137
  %908 = vmatpush.bf16.msra.mxu0 %v135
  %909 = vmatmul.bf16.gmra.mxu0 %v895
  %v910 = vpop.f32.mrf.mxu0
  %v911 = vadd.f32 0.0, %v910
  %v912 = vpop.f32.mrf.mxu0
  %v913 = vadd.f32 0.0, %v912
  %914 = vdwg.mxu0
  %915 = vmatpush.bf16.msra.mxu0 0
  %916 = vmatpush.bf16.msra.mxu0 0
  %917 = vmatpush.bf16.msra.mxu0 0
  %918 = vmatpush.bf16.msra.mxu0 0
  %919 = vmatpush.bf16.msra.mxu0 %v157
  %920 = vmatpush.bf16.msra.mxu0 %v155
  %921 = vmatpush.bf16.msra.mxu0 %v153
  %922 = vmatpush.bf16.msra.mxu0 %v151
  %923 = vmatmul.bf16.gmra.mxu0 %v899
  %v924 = vpop.f32.mrf.mxu0
  %v925 = vadd.f32 %v911, %v924
  %v926 = vpop.f32.mrf.mxu0
  %v927 = vadd.f32 %v913, %v926
  %928 = vdwg.mxu0
  %929 = vmatpush.bf16.msra.mxu0 %v150
  %930 = vmatpush.bf16.msra.mxu0 %v148
  %931 = vmatpush.bf16.msra.mxu0 %v146
  %932 = vmatpush.bf16.msra.mxu0 %v144
  %933 = vmatpush.bf16.msra.mxu0 %v142
  %934 = vmatpush.bf16.msra.mxu0 %v140
  %935 = vmatpush.bf16.msra.mxu0 %v138
  %936 = vmatpush.bf16.msra.mxu0 %v136
  %937 = vmatmul.bf16.gmra.mxu0 %v895
  %v938 = vpop.f32.mrf.mxu0
  %v939 = vadd.f32 0.0, %v938
  %v940 = vpop.f32.mrf.mxu0
  %v941 = vadd.f32 0.0, %v940
  %942 = vdwg.mxu0
  %943 = vmatpush.bf16.msra.mxu0 0
  %944 = vmatpush.bf16.msra.mxu0 0
  %945 = vmatpush.bf16.msra.mxu0 0
  %946 = vmatpush.bf16.msra.mxu0 0
  %947 = vmatpush.bf16.msra.mxu0 %v158
  %948 = vmatpush.bf16.msra.mxu0 %v156
  %949 = vmatpush.bf16.msra.mxu0 %v154
  %950 = vmatpush.bf16.msra.mxu0 %v152
  %951 = vmatmul.bf16.gmra.mxu0 %v899
  %v952 = vpop.f32.mrf.mxu0
  %v953 = vadd.f32 %v939, %v952
  %v954 = vpop.f32.mrf.mxu0
  %v955 = vadd.f32 %v941, %v954
  %956 = vdwg.mxu0
  %v957 = vmul.f32 %v925, 0.003921569
  %v958 = vmul.f32 %v953, 0.003921569
  %v959 = vmul.f32 %v927, 0.003921569
  %v960 = vmul.f32 %v955, 0.003921569
  %v961 = vadd.f32 %v957, %v248
  %v962 = vadd.f32 %v958, %v249
  %v963 = vadd.f32 %v959, %v248
  %v964 = vadd.f32 %v960, %v249
  %v965 = vmax.f32 %v961, 0.0
  %v966 = vmax.f32 %v962, 0.0
  %v967 = vmax.f32 %v963, 0.0
  %v968 = vmax.f32 %v964, 0.0
  %v969 = vpack.c.bf16 %v966, %v965
  %v970 = vpack.c.bf16 %v968, %v967
  %971 = vst [vmem:[#allocation2 + $0x40] sm:$0xff] %v969
  %972 = vst [vmem:[#allocation2 + $0xb0] sm:$0xff] %v970
  %v973 = vld [vmem:[%s0 + $0x10] sm:$0xff]
  %v974 = vld [vmem:[%s0 + $0x30] sm:$0xff]
  %v977 = vunpack.c.l.b16 %v973
  %v978 = vunpack.c.h.b16 %v973
  %v979 = vunpack.c.l.b16 %v974
  %v980 = vunpack.c.h.b16 %v974
  %v981 = vpack.c.b16 %v979, %v977
  %v982 = vpack.c.b16 %v980, %v978
  %983 = vrot.lane.b32.xlu0 %v981, 64
  %v984 = vpop.permute.xlu0 %983
  %985 = vrot.lane.b32.xlu0 %v982, 64
  %v986 = vpop.permute.xlu0 %985
  %v987 = vsel %vm278, %v984, %v986
  %v990 = vsel %vm183, %v986, 0
  %992 = vmatpush.bf16.msra.mxu0 %v149
  %993 = vmatpush.bf16.msra.mxu0 %v147
  %994 = vmatpush.bf16.msra.mxu0 %v145
  %995 = vmatpush.bf16.msra.mxu0 %v143
  %996 = vmatpush.bf16.msra.mxu0 %v141
  %997 = vmatpush.bf16.msra.mxu0 %v139
  %998 = vmatpush.bf16.msra.mxu0 %v137
  %999 = vmatpush.bf16.msra.mxu0 %v135
  %1000 = vmatmul.bf16.gmra.mxu0 %v987
  %v1001 = vpop.f32.mrf.mxu0
  %v1002 = vadd.f32 0.0, %v1001
  %v1003 = vpop.f32.mrf.mxu0
  %v1004 = vadd.f32 0.0, %v1003
  %1005 = vdwg.mxu0
  %1006 = vmatpush.bf16.msra.mxu0 0
  %1007 = vmatpush.bf16.msra.mxu0 0
  %1008 = vmatpush.bf16.msra.mxu0 0
  %1009 = vmatpush.bf16.msra.mxu0 0
  %1010 = vmatpush.bf16.msra.mxu0 %v157
  %1011 = vmatpush.bf16.msra.mxu0 %v155
  %1012 = vmatpush.bf16.msra.mxu0 %v153
  %1013 = vmatpush.bf16.msra.mxu0 %v151
  %1014 = vmatmul.bf16.gmra.mxu0 %v990
  %v1015 = vpop.f32.mrf.mxu0
  %v1016 = vadd.f32 %v1002, %v1015
  %v1017 = vpop.f32.mrf.mxu0
  %v1018 = vadd.f32 %v1004, %v1017
  %1019 = vdwg.mxu0
  %1020 = vmatpush.bf16.msra.mxu0 %v150
  %1021 = vmatpush.bf16.msra.mxu0 %v148
  %1022 = vmatpush.bf16.msra.mxu0 %v146
  %1023 = vmatpush.bf16.msra.mxu0 %v144
  %1024 = vmatpush.bf16.msra.mxu0 %v142
  %1025 = vmatpush.bf16.msra.mxu0 %v140
  %1026 = vmatpush.bf16.msra.mxu0 %v138
  %1027 = vmatpush.bf16.msra.mxu0 %v136
  %1028 = vmatmul.bf16.gmra.mxu0 %v987
  %v1029 = vpop.f32.mrf.mxu0
  %v1030 = vadd.f32 0.0, %v1029
  %v1031 = vpop.f32.mrf.mxu0
  %v1032 = vadd.f32 0.0, %v1031
  %1033 = vdwg.mxu0
  %1034 = vmatpush.bf16.msra.mxu0 0
  %1035 = vmatpush.bf16.msra.mxu0 0
  %1036 = vmatpush.bf16.msra.mxu0 0
  %1037 = vmatpush.bf16.msra.mxu0 0
  %1038 = vmatpush.bf16.msra.mxu0 %v158
  %1039 = vmatpush.bf16.msra.mxu0 %v156
  %1040 = vmatpush.bf16.msra.mxu0 %v154
  %1041 = vmatpush.bf16.msra.mxu0 %v152
  %1042 = vmatmul.bf16.gmra.mxu0 %v990
  %v1043 = vpop.f32.mrf.mxu0
  %v1044 = vadd.f32 %v1030, %v1043
  %v1045 = vpop.f32.mrf.mxu0
  %v1046 = vadd.f32 %v1032, %v1045
  %1047 = vdwg.mxu0
  %v1048 = vmul.f32 %v1016, 0.003921569
  %v1049 = vmul.f32 %v1044, 0.003921569
  %v1050 = vmul.f32 %v1018, 0.003921569
  %v1051 = vmul.f32 %v1046, 0.003921569
  %v1052 = vadd.f32 %v1048, %v248
  %v1053 = vadd.f32 %v1049, %v249
  %v1054 = vadd.f32 %v1050, %v248
  %v1055 = vadd.f32 %v1051, %v249
  %v1056 = vmax.f32 %v1052, 0.0
  %v1057 = vmax.f32 %v1053, 0.0
  %v1058 = vmax.f32 %v1054, 0.0
  %v1059 = vmax.f32 %v1055, 0.0
  %v1060 = vpack.c.bf16 %v1057, %v1056
  %v1061 = vpack.c.bf16 %v1059, %v1058
  %1062 = vst [vmem:[#allocation2 + $0x48] sm:$0xff] %v1060
  %1063 = vst [vmem:[#allocation2 + $0xb8] sm:$0xff] %v1061
  %v1064 = vld [vmem:[%s0 + $0x14] sm:$0xff]
  %v1065 = vld [vmem:[%s0 + $0x34] sm:$0xff]
  %v1068 = vunpack.c.l.b16 %v1064
  %v1069 = vunpack.c.h.b16 %v1064
  %v1070 = vunpack.c.l.b16 %v1065
  %v1071 = vunpack.c.h.b16 %v1065
  %v1072 = vpack.c.b16 %v1070, %v1068
  %v1073 = vpack.c.b16 %v1071, %v1069
  %v1076 = vsel %vm183, %v1073, 0
  %1078 = vmatpush.bf16.msra.mxu0 %v149
  %1079 = vmatpush.bf16.msra.mxu0 %v147
  %1080 = vmatpush.bf16.msra.mxu0 %v145
  %1081 = vmatpush.bf16.msra.mxu0 %v143
  %1082 = vmatpush.bf16.msra.mxu0 %v141
  %1083 = vmatpush.bf16.msra.mxu0 %v139
  %1084 = vmatpush.bf16.msra.mxu0 %v137
  %1085 = vmatpush.bf16.msra.mxu0 %v135
  %1086 = vmatmul.bf16.gmra.mxu0 %v1072
  %v1087 = vpop.f32.mrf.mxu0
  %v1088 = vadd.f32 0.0, %v1087
  %v1089 = vpop.f32.mrf.mxu0
  %v1090 = vadd.f32 0.0, %v1089
  %1091 = vdwg.mxu0
  %1092 = vmatpush.bf16.msra.mxu0 0
  %1093 = vmatpush.bf16.msra.mxu0 0
  %1094 = vmatpush.bf16.msra.mxu0 0
  %1095 = vmatpush.bf16.msra.mxu0 0
  %1096 = vmatpush.bf16.msra.mxu0 %v157
  %1097 = vmatpush.bf16.msra.mxu0 %v155
  %1098 = vmatpush.bf16.msra.mxu0 %v153
  %1099 = vmatpush.bf16.msra.mxu0 %v151
  %1100 = vmatmul.bf16.gmra.mxu0 %v1076
  %v1101 = vpop.f32.mrf.mxu0
  %v1102 = vadd.f32 %v1088, %v1101
  %v1103 = vpop.f32.mrf.mxu0
  %v1104 = vadd.f32 %v1090, %v1103
  %1105 = vdwg.mxu0
  %1106 = vmatpush.bf16.msra.mxu0 %v150
  %1107 = vmatpush.bf16.msra.mxu0 %v148
  %1108 = vmatpush.bf16.msra.mxu0 %v146
  %1109 = vmatpush.bf16.msra.mxu0 %v144
  %1110 = vmatpush.bf16.msra.mxu0 %v142
  %1111 = vmatpush.bf16.msra.mxu0 %v140
  %1112 = vmatpush.bf16.msra.mxu0 %v138
  %1113 = vmatpush.bf16.msra.mxu0 %v136
  %1114 = vmatmul.bf16.gmra.mxu0 %v1072
  %v1115 = vpop.f32.mrf.mxu0
  %v1116 = vadd.f32 0.0, %v1115
  %v1117 = vpop.f32.mrf.mxu0
  %v1118 = vadd.f32 0.0, %v1117
  %1119 = vdwg.mxu0
  %1120 = vmatpush.bf16.msra.mxu0 0
  %1121 = vmatpush.bf16.msra.mxu0 0
  %1122 = vmatpush.bf16.msra.mxu0 0
  %1123 = vmatpush.bf16.msra.mxu0 0
  %1124 = vmatpush.bf16.msra.mxu0 %v158
  %1125 = vmatpush.bf16.msra.mxu0 %v156
  %1126 = vmatpush.bf16.msra.mxu0 %v154
  %1127 = vmatpush.bf16.msra.mxu0 %v152
  %1128 = vmatmul.bf16.gmra.mxu0 %v1076
  %v1129 = vpop.f32.mrf.mxu0
  %v1130 = vadd.f32 %v1116, %v1129
  %v1131 = vpop.f32.mrf.mxu0
  %v1132 = vadd.f32 %v1118, %v1131
  %1133 = vdwg.mxu0
  %v1134 = vmul.f32 %v1102, 0.003921569
  %v1135 = vmul.f32 %v1130, 0.003921569
  %v1136 = vmul.f32 %v1104, 0.003921569
  %v1137 = vmul.f32 %v1132, 0.003921569
  %v1138 = vadd.f32 %v1134, %v248
  %v1139 = vadd.f32 %v1135, %v249
  %v1140 = vadd.f32 %v1136, %v248
  %v1141 = vadd.f32 %v1137, %v249
  %v1142 = vmax.f32 %v1138, 0.0
  %v1143 = vmax.f32 %v1139, 0.0
  %v1144 = vmax.f32 %v1140, 0.0
  %v1145 = vmax.f32 %v1141, 0.0
  %v1146 = vpack.c.bf16 %v1143, %v1142
  %v1147 = vpack.c.bf16 %v1145, %v1144
  %1148 = vst [vmem:[#allocation2 + $0x50] sm:$0xff] %v1146
  %1149 = vst [vmem:[#allocation2 + $0xc0] sm:$0xff] %v1147
  %v1150 = vld [vmem:[%s0 + $0x14] sm:$0xff]
  %v1151 = vld [vmem:[%s0 + $0x34] sm:$0xff]
  %v1154 = vunpack.c.l.b16 %v1150
  %v1155 = vunpack.c.h.b16 %v1150
  %v1156 = vunpack.c.l.b16 %v1151
  %v1157 = vunpack.c.h.b16 %v1151
  %v1158 = vpack.c.b16 %v1156, %v1154
  %v1159 = vpack.c.b16 %v1157, %v1155
  %1160 = vrot.lane.b32.xlu0 %v1158, 64
  %v1161 = vpop.permute.xlu0 %1160
  %1162 = vrot.lane.b32.xlu0 %v1159, 64
  %v1163 = vpop.permute.xlu0 %1162
  %v1164 = vsel %vm278, %v1161, %v1163
  %v1167 = vsel %vm183, %v1163, 0
  %1169 = vmatpush.bf16.msra.mxu0 %v149
  %1170 = vmatpush.bf16.msra.mxu0 %v147
  %1171 = vmatpush.bf16.msra.mxu0 %v145
  %1172 = vmatpush.bf16.msra.mxu0 %v143
  %1173 = vmatpush.bf16.msra.mxu0 %v141
  %1174 = vmatpush.bf16.msra.mxu0 %v139
  %1175 = vmatpush.bf16.msra.mxu0 %v137
  %1176 = vmatpush.bf16.msra.mxu0 %v135
  %1177 = vmatmul.bf16.gmra.mxu0 %v1164
  %v1178 = vpop.f32.mrf.mxu0
  %v1179 = vadd.f32 0.0, %v1178
  %v1180 = vpop.f32.mrf.mxu0
  %v1181 = vadd.f32 0.0, %v1180
  %1182 = vdwg.mxu0
  %1183 = vmatpush.bf16.msra.mxu0 0
  %1184 = vmatpush.bf16.msra.mxu0 0
  %1185 = vmatpush.bf16.msra.mxu0 0
  %1186 = vmatpush.bf16.msra.mxu0 0
  %1187 = vmatpush.bf16.msra.mxu0 %v157
  %1188 = vmatpush.bf16.msra.mxu0 %v155
  %1189 = vmatpush.bf16.msra.mxu0 %v153
  %1190 = vmatpush.bf16.msra.mxu0 %v151
  %1191 = vmatmul.bf16.gmra.mxu0 %v1167
  %v1192 = vpop.f32.mrf.mxu0
  %v1193 = vadd.f32 %v1179, %v1192
  %v1194 = vpop.f32.mrf.mxu0
  %v1195 = vadd.f32 %v1181, %v1194
  %1196 = vdwg.mxu0
  %1197 = vmatpush.bf16.msra.mxu0 %v150
  %1198 = vmatpush.bf16.msra.mxu0 %v148
  %1199 = vmatpush.bf16.msra.mxu0 %v146
  %1200 = vmatpush.bf16.msra.mxu0 %v144
  %1201 = vmatpush.bf16.msra.mxu0 %v142
  %1202 = vmatpush.bf16.msra.mxu0 %v140
  %1203 = vmatpush.bf16.msra.mxu0 %v138
  %1204 = vmatpush.bf16.msra.mxu0 %v136
  %1205 = vmatmul.bf16.gmra.mxu0 %v1164
  %v1206 = vpop.f32.mrf.mxu0
  %v1207 = vadd.f32 0.0, %v1206
  %v1208 = vpop.f32.mrf.mxu0
  %v1209 = vadd.f32 0.0, %v1208
  %1210 = vdwg.mxu0
  %1211 = vmatpush.bf16.msra.mxu0 0
  %1212 = vmatpush.bf16.msra.mxu0 0
  %1213 = vmatpush.bf16.msra.mxu0 0
  %1214 = vmatpush.bf16.msra.mxu0 0
  %1215 = vmatpush.bf16.msra.mxu0 %v158
  %1216 = vmatpush.bf16.msra.mxu0 %v156
  %1217 = vmatpush.bf16.msra.mxu0 %v154
  %1218 = vmatpush.bf16.msra.mxu0 %v152
  %1219 = vmatmul.bf16.gmra.mxu0 %v1167
  %v1220 = vpop.f32.mrf.mxu0
  %v1221 = vadd.f32 %v1207, %v1220
  %v1222 = vpop.f32.mrf.mxu0
  %v1223 = vadd.f32 %v1209, %v1222
  %1224 = vdwg.mxu0
  %v1225 = vmul.f32 %v1193, 0.003921569
  %v1226 = vmul.f32 %v1221, 0.003921569
  %v1227 = vmul.f32 %v1195, 0.003921569
  %v1228 = vmul.f32 %v1223, 0.003921569
  %v1229 = vadd.f32 %v1225, %v248
  %v1230 = vadd.f32 %v1226, %v249
  %v1231 = vadd.f32 %v1227, %v248
  %v1232 = vadd.f32 %v1228, %v249
  %v1233 = vmax.f32 %v1229, 0.0
  %v1234 = vmax.f32 %v1230, 0.0
  %v1235 = vmax.f32 %v1231, 0.0
  %v1236 = vmax.f32 %v1232, 0.0
  %v1237 = vpack.c.bf16 %v1234, %v1233
  %v1238 = vpack.c.bf16 %v1236, %v1235
  %1239 = vst [vmem:[#allocation2 + $0x58] sm:$0xff] %v1237
  %1240 = vst [vmem:[#allocation2 + $0xc8] sm:$0xff] %v1238
  %v1241 = vld [vmem:[%s0 + $0x18] sm:$0xff]
  %v1242 = vld [vmem:[%s0 + $0x38] sm:$0xff]
  %v1245 = vunpack.c.l.b16 %v1241
  %v1246 = vunpack.c.h.b16 %v1241
  %v1247 = vunpack.c.l.b16 %v1242
  %v1248 = vunpack.c.h.b16 %v1242
  %v1249 = vpack.c.b16 %v1247, %v1245
  %v1250 = vpack.c.b16 %v1248, %v1246
  %v1253 = vsel %vm183, %v1250, 0
  %1255 = vmatpush.bf16.msra.mxu0 %v149
  %1256 = vmatpush.bf16.msra.mxu0 %v147
  %1257 = vmatpush.bf16.msra.mxu0 %v145
  %1258 = vmatpush.bf16.msra.mxu0 %v143
  %1259 = vmatpush.bf16.msra.mxu0 %v141
  %1260 = vmatpush.bf16.msra.mxu0 %v139
  %1261 = vmatpush.bf16.msra.mxu0 %v137
  %1262 = vmatpush.bf16.msra.mxu0 %v135
  %1263 = vmatmul.bf16.gmra.mxu0 %v1249
  %v1264 = vpop.f32.mrf.mxu0
  %v1265 = vadd.f32 0.0, %v1264
  %v1266 = vpop.f32.mrf.mxu0
  %v1267 = vadd.f32 0.0, %v1266
  %1268 = vdwg.mxu0
  %1269 = vmatpush.bf16.msra.mxu0 0
  %1270 = vmatpush.bf16.msra.mxu0 0
  %1271 = vmatpush.bf16.msra.mxu0 0
  %1272 = vmatpush.bf16.msra.mxu0 0
  %1273 = vmatpush.bf16.msra.mxu0 %v157
  %1274 = vmatpush.bf16.msra.mxu0 %v155
  %1275 = vmatpush.bf16.msra.mxu0 %v153
  %1276 = vmatpush.bf16.msra.mxu0 %v151
  %1277 = vmatmul.bf16.gmra.mxu0 %v1253
  %v1278 = vpop.f32.mrf.mxu0
  %v1279 = vadd.f32 %v1265, %v1278
  %v1280 = vpop.f32.mrf.mxu0
  %v1281 = vadd.f32 %v1267, %v1280
  %1282 = vdwg.mxu0
  %1283 = vmatpush.bf16.msra.mxu0 %v150
  %1284 = vmatpush.bf16.msra.mxu0 %v148
  %1285 = vmatpush.bf16.msra.mxu0 %v146
  %1286 = vmatpush.bf16.msra.mxu0 %v144
  %1287 = vmatpush.bf16.msra.mxu0 %v142
  %1288 = vmatpush.bf16.msra.mxu0 %v140
  %1289 = vmatpush.bf16.msra.mxu0 %v138
  %1290 = vmatpush.bf16.msra.mxu0 %v136
  %1291 = vmatmul.bf16.gmra.mxu0 %v1249
  %v1292 = vpop.f32.mrf.mxu0
  %v1293 = vadd.f32 0.0, %v1292
  %v1294 = vpop.f32.mrf.mxu0
  %v1295 = vadd.f32 0.0, %v1294
  %1296 = vdwg.mxu0
  %1297 = vmatpush.bf16.msra.mxu0 0
  %1298 = vmatpush.bf16.msra.mxu0 0
  %1299 = vmatpush.bf16.msra.mxu0 0
  %1300 = vmatpush.bf16.msra.mxu0 0
  %1301 = vmatpush.bf16.msra.mxu0 %v158
  %1302 = vmatpush.bf16.msra.mxu0 %v156
  %1303 = vmatpush.bf16.msra.mxu0 %v154
  %1304 = vmatpush.bf16.msra.mxu0 %v152
  %1305 = vmatmul.bf16.gmra.mxu0 %v1253
  %v1306 = vpop.f32.mrf.mxu0
  %v1307 = vadd.f32 %v1293, %v1306
  %v1308 = vpop.f32.mrf.mxu0
  %v1309 = vadd.f32 %v1295, %v1308
  %1310 = vdwg.mxu0
  %v1311 = vmul.f32 %v1279, 0.003921569
  %v1312 = vmul.f32 %v1307, 0.003921569
  %v1313 = vmul.f32 %v1281, 0.003921569
  %v1314 = vmul.f32 %v1309, 0.003921569
  %v1315 = vadd.f32 %v1311, %v248
  %v1316 = vadd.f32 %v1312, %v249
  %v1317 = vadd.f32 %v1313, %v248
  %v1318 = vadd.f32 %v1314, %v249
  %v1319 = vmax.f32 %v1315, 0.0
  %v1320 = vmax.f32 %v1316, 0.0
  %v1321 = vmax.f32 %v1317, 0.0
  %v1322 = vmax.f32 %v1318, 0.0
  %v1323 = vpack.c.bf16 %v1320, %v1319
  %v1324 = vpack.c.bf16 %v1322, %v1321
  %1325 = vst [vmem:[#allocation2 + $0x60] sm:$0xff] %v1323
  %1326 = vst [vmem:[#allocation2 + $0xd0] sm:$0xff] %v1324
  %v1327 = vld [vmem:[%s0 + $0x18] sm:$0xff]
  %v1328 = vld [vmem:[%s0 + $0x38] sm:$0xff]
  %v1331 = vunpack.c.l.b16 %v1327
  %v1332 = vunpack.c.h.b16 %v1327
  %v1333 = vunpack.c.l.b16 %v1328
  %v1334 = vunpack.c.h.b16 %v1328
  %v1335 = vpack.c.b16 %v1333, %v1331
  %v1336 = vpack.c.b16 %v1334, %v1332
  %1337 = vrot.lane.b32.xlu0 %v1335, 64
  %v1338 = vpop.permute.xlu0 %1337
  %1339 = vrot.lane.b32.xlu0 %v1336, 64
  %v1340 = vpop.permute.xlu0 %1339
  %v1341 = vsel %vm278, %v1338, %v1340
  %v1344 = vsel %vm183, %v1340, 0
  %1346 = vmatpush.bf16.msra.mxu0 %v149
  %1347 = vmatpush.bf16.msra.mxu0 %v147
  %1348 = vmatpush.bf16.msra.mxu0 %v145
  %1349 = vmatpush.bf16.msra.mxu0 %v143
  %1350 = vmatpush.bf16.msra.mxu0 %v141
  %1351 = vmatpush.bf16.msra.mxu0 %v139
  %1352 = vmatpush.bf16.msra.mxu0 %v137
  %1353 = vmatpush.bf16.msra.mxu0 %v135
  %1354 = vmatmul.bf16.gmra.mxu0 %v1341
  %v1355 = vpop.f32.mrf.mxu0
  %v1356 = vadd.f32 0.0, %v1355
  %v1357 = vpop.f32.mrf.mxu0
  %v1358 = vadd.f32 0.0, %v1357
  %1359 = vdwg.mxu0
  %1360 = vmatpush.bf16.msra.mxu0 0
  %1361 = vmatpush.bf16.msra.mxu0 0
  %1362 = vmatpush.bf16.msra.mxu0 0
  %1363 = vmatpush.bf16.msra.mxu0 0
  %1364 = vmatpush.bf16.msra.mxu0 %v157
  %1365 = vmatpush.bf16.msra.mxu0 %v155
  %1366 = vmatpush.bf16.msra.mxu0 %v153
  %1367 = vmatpush.bf16.msra.mxu0 %v151
  %1368 = vmatmul.bf16.gmra.mxu0 %v1344
  %v1369 = vpop.f32.mrf.mxu0
  %v1370 = vadd.f32 %v1356, %v1369
  %v1371 = vpop.f32.mrf.mxu0
  %v1372 = vadd.f32 %v1358, %v1371
  %1373 = vdwg.mxu0
  %1374 = vmatpush.bf16.msra.mxu0 %v150
  %1375 = vmatpush.bf16.msra.mxu0 %v148
  %1376 = vmatpush.bf16.msra.mxu0 %v146
  %1377 = vmatpush.bf16.msra.mxu0 %v144
  %1378 = vmatpush.bf16.msra.mxu0 %v142
  %1379 = vmatpush.bf16.msra.mxu0 %v140
  %1380 = vmatpush.bf16.msra.mxu0 %v138
  %1381 = vmatpush.bf16.msra.mxu0 %v136
  %1382 = vmatmul.bf16.gmra.mxu0 %v1341
  %v1383 = vpop.f32.mrf.mxu0
  %v1384 = vadd.f32 0.0, %v1383
  %v1385 = vpop.f32.mrf.mxu0
  %v1386 = vadd.f32 0.0, %v1385
  %1387 = vdwg.mxu0
  %1388 = vmatpush.bf16.msra.mxu0 0
  %1389 = vmatpush.bf16.msra.mxu0 0
  %1390 = vmatpush.bf16.msra.mxu0 0
  %1391 = vmatpush.bf16.msra.mxu0 0
  %1392 = vmatpush.bf16.msra.mxu0 %v158
  %1393 = vmatpush.bf16.msra.mxu0 %v156
  %1394 = vmatpush.bf16.msra.mxu0 %v154
  %1395 = vmatpush.bf16.msra.mxu0 %v152
  %1396 = vmatmul.bf16.gmra.mxu0 %v1344
  %v1397 = vpop.f32.mrf.mxu0
  %v1398 = vadd.f32 %v1384, %v1397
  %v1399 = vpop.f32.mrf.mxu0
  %v1400 = vadd.f32 %v1386, %v1399
  %1401 = vdwg.mxu0
  %v1402 = vmul.f32 %v1370, 0.003921569
  %v1403 = vmul.f32 %v1398, 0.003921569
  %v1404 = vmul.f32 %v1372, 0.003921569
  %v1405 = vmul.f32 %v1400, 0.003921569
  %v1406 = vadd.f32 %v1402, %v248
  %v1407 = vadd.f32 %v1403, %v249
  %v1408 = vadd.f32 %v1404, %v248
  %v1409 = vadd.f32 %v1405, %v249
  %v1410 = vmax.f32 %v1406, 0.0
  %v1411 = vmax.f32 %v1407, 0.0
  %v1412 = vmax.f32 %v1408, 0.0
  %v1413 = vmax.f32 %v1409, 0.0
  %v1414 = vpack.c.bf16 %v1411, %v1410
  %v1415 = vpack.c.bf16 %v1413, %v1412
  %1416 = vst [vmem:[#allocation2 + $0x68] sm:$0xff] %v1414
  %1417 = vst [vmem:[#allocation2 + $0xd8] sm:$0xff] %v1415
  %v1418 = vld [vmem:[#allocation2] sm:$0xff]
  %v1419 = vld [vmem:[#allocation2 + $0x8] sm:$0xff]
  %v1420 = vld [vmem:[#allocation2 + $0x10] sm:$0xff]
  %v1421 = vld [vmem:[#allocation2 + $0x18] sm:$0xff]
  %v1422 = vld [vmem:[#allocation2 + $0x20] sm:$0xff]
  %v1423 = vld [vmem:[#allocation2 + $0x28] sm:$0xff]
  %v1424 = vld [vmem:[#allocation2 + $0x30] sm:$0xff]
  %v1425 = vld [vmem:[#allocation2 + $0x38] sm:$0xff]
  %v1426 = vld [vmem:[#allocation2 + $0x40] sm:$0xff]
  %v1427 = vld [vmem:[#allocation2 + $0x48] sm:$0xff]
  %v1428 = vld [vmem:[#allocation2 + $0x50] sm:$0xff]
  %v1429 = vld [vmem:[#allocation2 + $0x58] sm:$0xff]
  %v1430 = vld [vmem:[#allocation2 + $0x60] sm:$0xff]
  %v1431 = vld [vmem:[#allocation2 + $0x68] sm:$0xff]
  %v1432 = vld [vmem:[#allocation2 + $0x70] sm:$0xff]
  %v1433 = vld [vmem:[#allocation2 + $0x78] sm:$0xff]
  %v1434 = vld [vmem:[#allocation2 + $0x80] sm:$0xff]
  %v1435 = vld [vmem:[#allocation2 + $0x88] sm:$0xff]
  %v1436 = vld [vmem:[#allocation2 + $0x90] sm:$0xff]
  %v1437 = vld [vmem:[#allocation2 + $0x98] sm:$0xff]
  %v1438 = vld [vmem:[#allocation2 + $0xa0] sm:$0xff]
  %v1439 = vld [vmem:[#allocation2 + $0xa8] sm:$0xff]
  %v1440 = vld [vmem:[#allocation2 + $0xb0] sm:$0xff]
  %v1441 = vld [vmem:[#allocation2 + $0xb8] sm:$0xff]
  %v1442 = vld [vmem:[#allocation2 + $0xc0] sm:$0xff]
  %v1443 = vld [vmem:[#allocation2 + $0xc8] sm:$0xff]
  %v1444 = vld [vmem:[#allocation2 + $0xd0] sm:$0xff]
  %v1445 = vld [vmem:[#allocation2 + $0xd8] sm:$0xff]
  %v1446 = vld [vmem:[%s3] sm:$0xf]
  %v1447 = vld [vmem:[%s3 + $0x4] sm:$0xf]
  %v1448 = vld [vmem:[%s3 + $0x8] sm:$0xf]
  %v1449 = vld [vmem:[%s3 + $0xc] sm:$0xf]
  %v1450 = vld [vmem:[%s3 + $0x10] sm:$0xf]
  %v1451 = vld [vmem:[%s3 + $0x14] sm:$0xf]
  %v1452 = vld [vmem:[%s3 + $0x18] sm:$0xf]
  %v1453 = vld [vmem:[%s3 + $0x1c] sm:$0xf]
  %v1454 = vld [vmem:[%s3 + $0x20] sm:$0xf]
  %v1455 = vld [vmem:[%s3 + $0x24] sm:$0xf]
  %v1456 = vld [vmem:[%s3 + $0x28] sm:$0xf]
  %v1457 = vld [vmem:[%s3 + $0x2c] sm:$0xf]
  %v1458 = vld [vmem:[%s3 + $0x30] sm:$0xf]
  %v1459 = vld [vmem:[%s3 + $0x34] sm:$0xf]
  %v1460 = vld [vmem:[%s3 + $0x38] sm:$0xf]
  %v1461 = vld [vmem:[%s3 + $0x3c] sm:$0xf]
  %v1462 = vld [vmem:[%s3 + $0x40] sm:$0xf]
  %v1463 = vld [vmem:[%s3 + $0x44] sm:$0xf]
  %v1464 = vld [vmem:[%s3 + $0x48] sm:$0xf]
  %v1465 = vld [vmem:[%s3 + $0x4c] sm:$0xf]
  %v1466 = vld [vmem:[%s3 + $0x50] sm:$0xf]
  %v1467 = vld [vmem:[%s3 + $0x54] sm:$0xf]
  %v1468 = vld [vmem:[%s3 + $0x58] sm:$0xf]
  %v1469 = vld [vmem:[%s3 + $0x5c] sm:$0xf]
  %v1470 = vld [vmem:[%s3 + $0x60] sm:$0xf]
  %v1471 = vld [vmem:[%s3 + $0x64] sm:$0xf]
  %v1472 = vld [vmem:[%s3 + $0x68] sm:$0xf]
  %v1473 = vld [vmem:[%s3 + $0x6c] sm:$0xf]
  %v1474 = vld [vmem:[%s3 + $0x70] sm:$0xf]
  %v1475 = vld [vmem:[%s3 + $0x74] sm:$0xf]
  %v1476 = vld [vmem:[%s3 + $0x78] sm:$0xf]
  %v1477 = vld [vmem:[%s3 + $0x7c] sm:$0xf]
  %v1478 = vld [vmem:[%s3 + $0x80] sm:$0xf]
  %v1479 = vld [vmem:[%s3 + $0x84] sm:$0xf]
  %v1480 = vld [vmem:[%s3 + $0x88] sm:$0xf]
  %v1481 = vld [vmem:[%s3 + $0x8c] sm:$0xf]
  %v1482 = vld [vmem:[%s3 + $0x90] sm:$0xf]
  %v1483 = vld [vmem:[%s3 + $0x94] sm:$0xf]
  %v1484 = vld [vmem:[%s3 + $0x98] sm:$0xf]
  %v1485 = vld [vmem:[%s3 + $0x9c] sm:$0xf]
  %v1486 = vld [vmem:[%s3 + $0xa0] sm:$0xf]
  %v1487 = vld [vmem:[%s3 + $0xa4] sm:$0xf]
  %v1488 = vld [vmem:[%s3 + $0xa8] sm:$0xf]
  %v1489 = vld [vmem:[%s3 + $0xac] sm:$0xf]
  %v1490 = vld [vmem:[%s3 + $0xb0] sm:$0xf]
  %v1491 = vld [vmem:[%s3 + $0xb4] sm:$0xf]
  %v1492 = vld [vmem:[%s3 + $0xb8] sm:$0xf]
  %v1493 = vld [vmem:[%s3 + $0xbc] sm:$0xf]
  %v1494 = vld [vmem:[%s3 + $0xc0] sm:$0xf]
  %v1495 = vld [vmem:[%s3 + $0xc4] sm:$0xf]
  %v1496 = vld [vmem:[%s3 + $0xc8] sm:$0xf]
  %v1497 = vld [vmem:[%s3 + $0xcc] sm:$0xf]
  %v1498 = vld [vmem:[%s3 + $0xd0] sm:$0xf]
  %v1499 = vld [vmem:[%s3 + $0xd4] sm:$0xf]
  %v1500 = vld [vmem:[%s3 + $0xd8] sm:$0xf]
  %v1501 = vld [vmem:[%s3 + $0xdc] sm:$0xf]
  %v1502 = vld [vmem:[%s3 + $0xe0] sm:$0xf]
  %v1503 = vld [vmem:[%s3 + $0xe4] sm:$0xf]
  %v1504 = vld [vmem:[%s3 + $0xe8] sm:$0xf]
  %v1505 = vld [vmem:[%s3 + $0xec] sm:$0xf]
  %v1506 = vld [vmem:[%s3 + $0xf0] sm:$0xf]
  %v1507 = vld [vmem:[%s3 + $0xf4] sm:$0xf]
  %v1508 = vld [vmem:[%s3 + $0xf8] sm:$0xf]
  %v1509 = vld [vmem:[%s3 + $0xfc] sm:$0xf]
  %v1510 = vld [vmem:[%s3 + $0x100] sm:$0xf]
  %v1511 = vld [vmem:[%s3 + $0x104] sm:$0xf]
  %v1512 = vld [vmem:[%s3 + $0x108] sm:$0xf]
  %v1513 = vld [vmem:[%s3 + $0x10c] sm:$0xf]
  %v1514 = vld [vmem:[%s3 + $0x110] sm:$0xf]
  %v1515 = vld [vmem:[%s3 + $0x114] sm:$0xf]
  %v1516 = vld [vmem:[%s3 + $0x118] sm:$0xf]
  %v1517 = vld [vmem:[%s3 + $0x11c] sm:$0xf]
  %v1518 = vld [vmem:[%s3 + $0x120] sm:$0xf]
  %v1519 = vld [vmem:[%s3 + $0x124] sm:$0xf]
  %v1520 = vld [vmem:[%s3 + $0x128] sm:$0xf]
  %v1521 = vld [vmem:[%s3 + $0x12c] sm:$0xf]
  %v1522 = vld [vmem:[%s3 + $0x130] sm:$0xf]
  %v1523 = vld [vmem:[%s3 + $0x134] sm:$0xf]
  %v1524 = vld [vmem:[%s3 + $0x138] sm:$0xf]
  %v1525 = vld [vmem:[%s3 + $0x13c] sm:$0xf]
  %v1526 = vld [vmem:[%s3 + $0x140] sm:$0xf]
  %v1527 = vld [vmem:[%s3 + $0x144] sm:$0xf]
  %v1528 = vld [vmem:[%s3 + $0x148] sm:$0xf]
  %v1529 = vld [vmem:[%s3 + $0x14c] sm:$0xf]
  %v1530 = vld [vmem:[%s3 + $0x150] sm:$0xf]
  %v1531 = vld [vmem:[%s3 + $0x154] sm:$0xf]
  %v1532 = vld [vmem:[%s3 + $0x158] sm:$0xf]
  %v1533 = vld [vmem:[%s3 + $0x15c] sm:$0xf]
  %v1534 = vld [vmem:[%s3 + $0x160] sm:$0xf]
  %v1535 = vld [vmem:[%s3 + $0x164] sm:$0xf]
  %v1536 = vld [vmem:[%s3 + $0x168] sm:$0xf]
  %v1537 = vld [vmem:[%s3 + $0x16c] sm:$0xf]
  %v1538 = vld [vmem:[%s3 + $0x170] sm:$0xf]
  %v1539 = vld [vmem:[%s3 + $0x174] sm:$0xf]
  %v1540 = vld [vmem:[%s3 + $0x178] sm:$0xf]
  %v1541 = vld [vmem:[%s3 + $0x17c] sm:$0xf]
  %v1542 = vld [vmem:[%s3 + $0x180] sm:$0xf]
  %v1543 = vld [vmem:[%s3 + $0x184] sm:$0xf]
  %v1544 = vld [vmem:[%s3 + $0x188] sm:$0xf]
  %v1545 = vld [vmem:[%s3 + $0x18c] sm:$0xf]
  %v1546 = vld [vmem:[%s3 + $0x190] sm:$0xf]
  %v1547 = vld [vmem:[%s3 + $0x194] sm:$0xf]
  %v1548 = vld [vmem:[%s3 + $0x198] sm:$0xf]
  %v1549 = vld [vmem:[%s3 + $0x19c] sm:$0xf]
  %v1550 = vld [vmem:[%s3 + $0x1a0] sm:$0xf]
  %v1551 = vld [vmem:[%s3 + $0x1a4] sm:$0xf]
  %v1552 = vld [vmem:[%s3 + $0x1a8] sm:$0xf]
  %v1553 = vld [vmem:[%s3 + $0x1ac] sm:$0xf]
  %v1554 = vld [vmem:[%s3 + $0x1b0] sm:$0xf]
  %v1555 = vld [vmem:[%s3 + $0x1b4] sm:$0xf]
  %v1556 = vld [vmem:[%s3 + $0x1b8] sm:$0xf]
  %v1557 = vld [vmem:[%s3 + $0x1bc] sm:$0xf]
  %v1558 = vld [vmem:[%s3 + $0x1c0] sm:$0xf]
  %v1559 = vld [vmem:[%s3 + $0x1c4] sm:$0xf]
  %v1560 = vld [vmem:[%s3 + $0x1c8] sm:$0xf]
  %v1561 = vld [vmem:[%s3 + $0x1cc] sm:$0xf]
  %v1562 = vld [vmem:[%s3 + $0x1d0] sm:$0xf]
  %v1563 = vld [vmem:[%s3 + $0x1d4] sm:$0xf]
  %v1564 = vld [vmem:[%s3 + $0x1d8] sm:$0xf]
  %v1565 = vld [vmem:[%s3 + $0x1dc] sm:$0xf]
  %v1566 = vld [vmem:[%s3 + $0x1e0] sm:$0xf]
  %v1567 = vld [vmem:[%s3 + $0x1e4] sm:$0xf]
  %v1568 = vld [vmem:[%s3 + $0x1e8] sm:$0xf]
  %v1569 = vld [vmem:[%s3 + $0x1ec] sm:$0xf]
  %v1570 = vld [vmem:[%s3 + $0x1f0] sm:$0xf]
  %v1571 = vld [vmem:[%s3 + $0x1f4] sm:$0xf]
  %v1572 = vld [vmem:[%s3 + $0x1f8] sm:$0xf]
  %v1573 = vld [vmem:[%s3 + $0x1fc] sm:$0xf]
  %v1574 = vld [vmem:[%s3 + $0x200] sm:$0xf]
  %v1575 = vld [vmem:[%s3 + $0x204] sm:$0xf]
  %v1576 = vld [vmem:[%s3 + $0x208] sm:$0xf]
  %v1577 = vld [vmem:[%s3 + $0x20c] sm:$0xf]
  %v1578 = vld [vmem:[%s3 + $0x210] sm:$0xf]
  %v1579 = vld [vmem:[%s3 + $0x214] sm:$0xf]
  %v1580 = vld [vmem:[%s3 + $0x218] sm:$0xf]
  %v1581 = vld [vmem:[%s3 + $0x21c] sm:$0xf]
  %v1582 = vld [vmem:[%s3 + $0x220] sm:$0xf]
  %v1583 = vld [vmem:[%s3 + $0x224] sm:$0xf]
  %v1584 = vld [vmem:[%s3 + $0x228] sm:$0xf]
  %v1585 = vld [vmem:[%s3 + $0x22c] sm:$0xf]
  %v1586 = vld [vmem:[%s3 + $0x230] sm:$0xf]
  %v1587 = vld [vmem:[%s3 + $0x234] sm:$0xf]
  %v1588 = vld [vmem:[%s3 + $0x238] sm:$0xf]
  %v1589 = vld [vmem:[%s3 + $0x23c] sm:$0xf]
  %v1590 = vld [vmem:[%s3 + $0x240] sm:$0xf]
  %v1591 = vld [vmem:[%s3 + $0x244] sm:$0xf]
  %v1592 = vld [vmem:[%s3 + $0x248] sm:$0xf]
  %v1593 = vld [vmem:[%s3 + $0x24c] sm:$0xf]
  %v1594 = vld [vmem:[%s3 + $0x250] sm:$0xf]
  %v1595 = vld [vmem:[%s3 + $0x254] sm:$0xf]
  %v1596 = vld [vmem:[%s3 + $0x258] sm:$0xf]
  %v1597 = vld [vmem:[%s3 + $0x25c] sm:$0xf]
  %v1598 = vld [vmem:[%s3 + $0x260] sm:$0xf]
  %v1599 = vld [vmem:[%s3 + $0x264] sm:$0xf]
  %v1600 = vld [vmem:[%s3 + $0x268] sm:$0xf]
  %v1601 = vld [vmem:[%s3 + $0x26c] sm:$0xf]
  %v1602 = vld [vmem:[%s3 + $0x270] sm:$0xf]
  %v1603 = vld [vmem:[%s3 + $0x274] sm:$0xf]
  %v1604 = vld [vmem:[%s3 + $0x278] sm:$0xf]
  %v1605 = vld [vmem:[%s3 + $0x27c] sm:$0xf]
  %v1606 = vld [vmem:[%s3 + $0x280] sm:$0xf]
  %v1607 = vld [vmem:[%s3 + $0x284] sm:$0xf]
  %v1608 = vld [vmem:[%s3 + $0x288] sm:$0xf]
  %v1609 = vld [vmem:[%s3 + $0x28c] sm:$0xf]
  %v1610 = vld [vmem:[%s3 + $0x290] sm:$0xf]
  %v1611 = vld [vmem:[%s3 + $0x294] sm:$0xf]
  %v1612 = vld [vmem:[%s3 + $0x298] sm:$0xf]
  %v1613 = vld [vmem:[%s3 + $0x29c] sm:$0xf]
  %v1614 = vld [vmem:[%s3 + $0x2a0] sm:$0xf]
  %v1615 = vld [vmem:[%s3 + $0x2a4] sm:$0xf]
  %v1616 = vld [vmem:[%s3 + $0x2a8] sm:$0xf]
  %v1617 = vld [vmem:[%s3 + $0x2ac] sm:$0xf]
  %v1618 = vld [vmem:[%s3 + $0x2b0] sm:$0xf]
  %v1619 = vld [vmem:[%s3 + $0x2b4] sm:$0xf]
  %v1620 = vld [vmem:[%s3 + $0x2b8] sm:$0xf]
  %v1621 = vld [vmem:[%s3 + $0x2bc] sm:$0xf]
  %v1622 = vld [vmem:[%s3 + $0x2c0] sm:$0xf]
  %v1623 = vld [vmem:[%s3 + $0x2c4] sm:$0xf]
  %v1624 = vld [vmem:[%s3 + $0x2c8] sm:$0xf]
  %v1625 = vld [vmem:[%s3 + $0x2cc] sm:$0xf]
  %v1626 = vld [vmem:[%s3 + $0x2d0] sm:$0xf]
  %v1627 = vld [vmem:[%s3 + $0x2d4] sm:$0xf]
  %v1628 = vld [vmem:[%s3 + $0x2d8] sm:$0xf]
  %v1629 = vld [vmem:[%s3 + $0x2dc] sm:$0xf]
  %v1630 = vld [vmem:[%s3 + $0x2e0] sm:$0xf]
  %v1631 = vld [vmem:[%s3 + $0x2e4] sm:$0xf]
  %v1632 = vld [vmem:[%s3 + $0x2e8] sm:$0xf]
  %v1633 = vld [vmem:[%s3 + $0x2ec] sm:$0xf]
  %v1634 = vld [vmem:[%s3 + $0x2f0] sm:$0xf]
  %v1635 = vld [vmem:[%s3 + $0x2f4] sm:$0xf]
  %v1636 = vld [vmem:[%s3 + $0x2f8] sm:$0xf]
  %v1637 = vld [vmem:[%s3 + $0x2fc] sm:$0xf]
  %v1638 = vld [vmem:[%s3 + $0x300] sm:$0xf]
  %v1639 = vld [vmem:[%s3 + $0x304] sm:$0xf]
  %v1640 = vld [vmem:[%s3 + $0x308] sm:$0xf]
  %v1641 = vld [vmem:[%s3 + $0x30c] sm:$0xf]
  %v1642 = vld [vmem:[%s3 + $0x310] sm:$0xf]
  %v1643 = vld [vmem:[%s3 + $0x314] sm:$0xf]
  %v1644 = vld [vmem:[%s3 + $0x318] sm:$0xf]
  %v1645 = vld [vmem:[%s3 + $0x31c] sm:$0xf]
  %v1646 = vld [vmem:[%s3 + $0x320] sm:$0xf]
  %v1647 = vld [vmem:[%s3 + $0x324] sm:$0xf]
  %v1648 = vld [vmem:[%s3 + $0x328] sm:$0xf]
  %v1649 = vld [vmem:[%s3 + $0x32c] sm:$0xf]
  %v1650 = vld [vmem:[%s3 + $0x330] sm:$0xf]
  %v1651 = vld [vmem:[%s3 + $0x334] sm:$0xf]
  %v1652 = vld [vmem:[%s3 + $0x338] sm:$0xf]
  %v1653 = vld [vmem:[%s3 + $0x33c] sm:$0xf]
  %v1654 = vld [vmem:[%s3 + $0x340] sm:$0xf]
  %v1655 = vld [vmem:[%s3 + $0x344] sm:$0xf]
  %v1656 = vld [vmem:[%s3 + $0x348] sm:$0xf]
  %v1657 = vld [vmem:[%s3 + $0x34c] sm:$0xf]
  %v1658 = vld [vmem:[%s3 + $0x350] sm:$0xf]
  %v1659 = vld [vmem:[%s3 + $0x354] sm:$0xf]
  %v1660 = vld [vmem:[%s3 + $0x358] sm:$0xf]
  %v1661 = vld [vmem:[%s3 + $0x35c] sm:$0xf]
  %v1662 = vld [vmem:[%s3 + $0x360] sm:$0xf]
  %v1663 = vld [vmem:[%s3 + $0x364] sm:$0xf]
  %v1664 = vld [vmem:[%s3 + $0x368] sm:$0xf]
  %v1665 = vld [vmem:[%s3 + $0x36c] sm:$0xf]
  %v1666 = vld [vmem:[%s3 + $0x370] sm:$0xf]
  %v1667 = vld [vmem:[%s3 + $0x374] sm:$0xf]
  %v1668 = vld [vmem:[%s3 + $0x378] sm:$0xf]
  %v1669 = vld [vmem:[%s3 + $0x37c] sm:$0xf]
  %v1670 = vld [vmem:[%s3 + $0x380] sm:$0xf]
  %v1671 = vld [vmem:[%s3 + $0x384] sm:$0xf]
  %v1672 = vld [vmem:[%s3 + $0x388] sm:$0xf]
  %v1673 = vld [vmem:[%s3 + $0x38c] sm:$0xf]
  %v1674 = vld [vmem:[%s3 + $0x390] sm:$0xf]
  %v1675 = vld [vmem:[%s3 + $0x394] sm:$0xf]
  %v1676 = vld [vmem:[%s3 + $0x398] sm:$0xf]
  %v1677 = vld [vmem:[%s3 + $0x39c] sm:$0xf]
  %v1678 = vld [vmem:[%s3 + $0x3a0] sm:$0xf]
  %v1679 = vld [vmem:[%s3 + $0x3a4] sm:$0xf]
  %v1680 = vld [vmem:[%s3 + $0x3a8] sm:$0xf]
  %v1681 = vld [vmem:[%s3 + $0x3ac] sm:$0xf]
  %v1682 = vld [vmem:[%s3 + $0x3b0] sm:$0xf]
  %v1683 = vld [vmem:[%s3 + $0x3b4] sm:$0xf]
  %v1684 = vld [vmem:[%s3 + $0x3b8] sm:$0xf]
  %v1685 = vld [vmem:[%s3 + $0x3bc] sm:$0xf]
  %v1686 = vld [vmem:[%s3 + $0x3c0] sm:$0xf]
  %v1687 = vld [vmem:[%s3 + $0x3c4] sm:$0xf]
  %v1688 = vld [vmem:[%s3 + $0x3c8] sm:$0xf]
  %v1689 = vld [vmem:[%s3 + $0x3cc] sm:$0xf]
  %v1690 = vld [vmem:[%s3 + $0x3d0] sm:$0xf]
  %v1691 = vld [vmem:[%s3 + $0x3d4] sm:$0xf]
  %v1692 = vld [vmem:[%s3 + $0x3d8] sm:$0xf]
  %v1693 = vld [vmem:[%s3 + $0x3dc] sm:$0xf]
  %v1694 = vld [vmem:[%s3 + $0x3e0] sm:$0xf]
  %v1695 = vld [vmem:[%s3 + $0x3e4] sm:$0xf]
  %v1696 = vld [vmem:[%s3 + $0x3e8] sm:$0xf]
  %v1697 = vld [vmem:[%s3 + $0x3ec] sm:$0xf]
  %v1698 = vld [vmem:[%s3 + $0x3f0] sm:$0xf]
  %v1699 = vld [vmem:[%s3 + $0x3f4] sm:$0xf]
  %v1700 = vld [vmem:[%s3 + $0x3f8] sm:$0xf]
  %v1701 = vld [vmem:[%s3 + $0x3fc] sm:$0xf]
  %v1702 = vld [vmem:[%s3 + $0x400] sm:$0xf]
  %v1703 = vld [vmem:[%s3 + $0x404] sm:$0xf]
  %v1704 = vld [vmem:[%s3 + $0x408] sm:$0xf]
  %v1705 = vld [vmem:[%s3 + $0x40c] sm:$0xf]
  %v1706 = vld [vmem:[%s3 + $0x410] sm:$0xf]
  %v1707 = vld [vmem:[%s3 + $0x414] sm:$0xf]
  %v1708 = vld [vmem:[%s3 + $0x418] sm:$0xf]
  %v1709 = vld [vmem:[%s3 + $0x41c] sm:$0xf]
  %v1710 = vld [vmem:[%s3 + $0x420] sm:$0xf]
  %v1711 = vld [vmem:[%s3 + $0x424] sm:$0xf]
  %v1712 = vld [vmem:[%s3 + $0x428] sm:$0xf]
  %v1713 = vld [vmem:[%s3 + $0x42c] sm:$0xf]
  %v1714 = vld [vmem:[%s3 + $0x430] sm:$0xf]
  %v1715 = vld [vmem:[%s3 + $0x434] sm:$0xf]
  %v1716 = vld [vmem:[%s3 + $0x438] sm:$0xf]
  %v1717 = vld [vmem:[%s3 + $0x43c] sm:$0xf]
  %v1718 = vld [vmem:[%s3 + $0x440] sm:$0xf]
  %v1719 = vld [vmem:[%s3 + $0x444] sm:$0xf]
  %v1720 = vld [vmem:[%s3 + $0x448] sm:$0xf]
  %v1721 = vld [vmem:[%s3 + $0x44c] sm:$0xf]
  %v1722 = vld [vmem:[%s3 + $0x450] sm:$0xf]
  %v1723 = vld [vmem:[%s3 + $0x454] sm:$0xf]
  %v1724 = vld [vmem:[%s3 + $0x458] sm:$0xf]
  %v1725 = vld [vmem:[%s3 + $0x45c] sm:$0xf]
  %v1726 = vld [vmem:[%s3 + $0x460] sm:$0xf]
  %v1727 = vld [vmem:[%s3 + $0x464] sm:$0xf]
  %v1728 = vld [vmem:[%s3 + $0x468] sm:$0xf]
  %v1729 = vld [vmem:[%s3 + $0x46c] sm:$0xf]
  %v1730 = vld [vmem:[%s3 + $0x470] sm:$0xf]
  %v1731 = vld [vmem:[%s3 + $0x474] sm:$0xf]
  %v1732 = vld [vmem:[%s3 + $0x478] sm:$0xf]
  %v1733 = vld [vmem:[%s3 + $0x47c] sm:$0xf]
  %v1734 = vld [vmem:[%s3 + $0x480] sm:$0xf]
  %v1735 = vld [vmem:[%s3 + $0x484] sm:$0xf]
  %v1736 = vld [vmem:[%s3 + $0x488] sm:$0xf]
  %v1737 = vld [vmem:[%s3 + $0x48c] sm:$0xf]
  %v1738 = vld [vmem:[%s3 + $0x490] sm:$0xf]
  %v1739 = vld [vmem:[%s3 + $0x494] sm:$0xf]
  %v1740 = vld [vmem:[%s3 + $0x498] sm:$0xf]
  %v1741 = vld [vmem:[%s3 + $0x49c] sm:$0xf]
  %v1742 = vld [vmem:[%s3 + $0x4a0] sm:$0xf]
  %v1743 = vld [vmem:[%s3 + $0x4a4] sm:$0xf]
  %v1744 = vld [vmem:[%s3 + $0x4a8] sm:$0xf]
  %v1745 = vld [vmem:[%s3 + $0x4ac] sm:$0xf]
  %v1746 = vld [vmem:[%s3 + $0x4b0] sm:$0xf]
  %v1747 = vld [vmem:[%s3 + $0x4b4] sm:$0xf]
  %v1748 = vld [vmem:[%s3 + $0x4b8] sm:$0xf]
  %v1749 = vld [vmem:[%s3 + $0x4bc] sm:$0xf]
  %v1750 = vld [vmem:[%s3 + $0x4c0] sm:$0xf]
  %v1751 = vld [vmem:[%s3 + $0x4c4] sm:$0xf]
  %v1752 = vld [vmem:[%s3 + $0x4c8] sm:$0xf]
  %v1753 = vld [vmem:[%s3 + $0x4cc] sm:$0xf]
  %v1754 = vld [vmem:[%s3 + $0x4d0] sm:$0xf]
  %v1755 = vld [vmem:[%s3 + $0x4d4] sm:$0xf]
  %v1756 = vld [vmem:[%s3 + $0x4d8] sm:$0xf]
  %v1757 = vld [vmem:[%s3 + $0x4dc] sm:$0xf]
  %v1758 = vld [vmem:[%s3 + $0x4e0] sm:$0xf]
  %v1759 = vld [vmem:[%s3 + $0x4e4] sm:$0xf]
  %v1760 = vld [vmem:[%s3 + $0x4e8] sm:$0xf]
  %v1761 = vld [vmem:[%s3 + $0x4ec] sm:$0xf]
  %v1762 = vld [vmem:[%s3 + $0x4f0] sm:$0xf]
  %v1763 = vld [vmem:[%s3 + $0x4f4] sm:$0xf]
  %v1764 = vld [vmem:[%s3 + $0x4f8] sm:$0xf]
  %v1765 = vld [vmem:[%s3 + $0x4fc] sm:$0xf]
  %v1766 = vld [vmem:[%s3 + $0x500] sm:$0xf]
  %v1767 = vld [vmem:[%s3 + $0x504] sm:$0xf]
  %v1768 = vld [vmem:[%s3 + $0x508] sm:$0xf]
  %v1769 = vld [vmem:[%s3 + $0x50c] sm:$0xf]
  %v1770 = vld [vmem:[%s3 + $0x510] sm:$0xf]
  %v1771 = vld [vmem:[%s3 + $0x514] sm:$0xf]
  %v1772 = vld [vmem:[%s3 + $0x518] sm:$0xf]
  %v1773 = vld [vmem:[%s3 + $0x51c] sm:$0xf]
  %v1774 = vld [vmem:[%s3 + $0x520] sm:$0xf]
  %v1775 = vld [vmem:[%s3 + $0x524] sm:$0xf]
  %v1776 = vld [vmem:[%s3 + $0x528] sm:$0xf]
  %v1777 = vld [vmem:[%s3 + $0x52c] sm:$0xf]
  %v1778 = vld [vmem:[%s3 + $0x530] sm:$0xf]
  %v1779 = vld [vmem:[%s3 + $0x534] sm:$0xf]
  %v1780 = vld [vmem:[%s3 + $0x538] sm:$0xf]
  %v1781 = vld [vmem:[%s3 + $0x53c] sm:$0xf]
  %v1782 = vld [vmem:[%s3 + $0x540] sm:$0xf]
  %v1783 = vld [vmem:[%s3 + $0x544] sm:$0xf]
  %v1784 = vld [vmem:[%s3 + $0x548] sm:$0xf]
  %v1785 = vld [vmem:[%s3 + $0x54c] sm:$0xf]
  %v1786 = vld [vmem:[%s3 + $0x550] sm:$0xf]
  %v1787 = vld [vmem:[%s3 + $0x554] sm:$0xf]
  %v1788 = vld [vmem:[%s3 + $0x558] sm:$0xf]
  %v1789 = vld [vmem:[%s3 + $0x55c] sm:$0xf]
  %v1790 = vld [vmem:[%s3 + $0x560] sm:$0xf]
  %v1791 = vld [vmem:[%s3 + $0x564] sm:$0xf]
  %v1792 = vld [vmem:[%s3 + $0x568] sm:$0xf]
  %v1793 = vld [vmem:[%s3 + $0x56c] sm:$0xf]
  %v1794 = vld [vmem:[%s3 + $0x570] sm:$0xf]
  %v1795 = vld [vmem:[%s3 + $0x574] sm:$0xf]
  %v1796 = vld [vmem:[%s3 + $0x578] sm:$0xf]
  %v1797 = vld [vmem:[%s3 + $0x57c] sm:$0xf]
  %v1798 = vld [vmem:[%s3 + $0x580] sm:$0xf]
  %v1799 = vld [vmem:[%s3 + $0x584] sm:$0xf]
  %v1800 = vld [vmem:[%s3 + $0x588] sm:$0xf]
  %v1801 = vld [vmem:[%s3 + $0x58c] sm:$0xf]
  %v1802 = vld [vmem:[%s3 + $0x590] sm:$0xf]
  %v1803 = vld [vmem:[%s3 + $0x594] sm:$0xf]
  %v1804 = vld [vmem:[%s3 + $0x598] sm:$0xf]
  %v1805 = vld [vmem:[%s3 + $0x59c] sm:$0xf]
  %v1806 = vld [vmem:[%s3 + $0x5a0] sm:$0xf]
  %v1807 = vld [vmem:[%s3 + $0x5a4] sm:$0xf]
  %v1808 = vld [vmem:[%s3 + $0x5a8] sm:$0xf]
  %v1809 = vld [vmem:[%s3 + $0x5ac] sm:$0xf]
  %v1810 = vld [vmem:[%s3 + $0x5b0] sm:$0xf]
  %v1811 = vld [vmem:[%s3 + $0x5b4] sm:$0xf]
  %v1812 = vld [vmem:[%s3 + $0x5b8] sm:$0xf]
  %v1813 = vld [vmem:[%s3 + $0x5bc] sm:$0xf]
  %v1814 = vld [vmem:[%s3 + $0x5c0] sm:$0xf]
  %v1815 = vld [vmem:[%s3 + $0x5c4] sm:$0xf]
  %v1816 = vld [vmem:[%s3 + $0x5c8] sm:$0xf]
  %v1817 = vld [vmem:[%s3 + $0x5cc] sm:$0xf]
  %v1818 = vld [vmem:[%s3 + $0x5d0] sm:$0xf]
  %v1819 = vld [vmem:[%s3 + $0x5d4] sm:$0xf]
  %v1820 = vld [vmem:[%s3 + $0x5d8] sm:$0xf]
  %v1821 = vld [vmem:[%s3 + $0x5dc] sm:$0xf]
  %v1822 = vld [vmem:[%s3 + $0x5e0] sm:$0xf]
  %v1823 = vld [vmem:[%s3 + $0x5e4] sm:$0xf]
  %v1824 = vld [vmem:[%s3 + $0x5e8] sm:$0xf]
  %v1825 = vld [vmem:[%s3 + $0x5ec] sm:$0xf]
  %v1826 = vld [vmem:[%s3 + $0x5f0] sm:$0xf]
  %v1827 = vld [vmem:[%s3 + $0x5f4] sm:$0xf]
  %v1828 = vld [vmem:[%s3 + $0x5f8] sm:$0xf]
  %v1829 = vld [vmem:[%s3 + $0x5fc] sm:$0xf]
  %v1830 = vld [vmem:[%s3 + $0x600] sm:$0xf]
  %v1831 = vld [vmem:[%s3 + $0x604] sm:$0xf]
  %v1832 = vld [vmem:[%s3 + $0x608] sm:$0xf]
  %v1833 = vld [vmem:[%s3 + $0x60c] sm:$0xf]
  %v1834 = vld [vmem:[%s3 + $0x610] sm:$0xf]
  %v1835 = vld [vmem:[%s3 + $0x614] sm:$0xf]
  %v1836 = vld [vmem:[%s3 + $0x618] sm:$0xf]
  %v1837 = vld [vmem:[%s3 + $0x61c] sm:$0xf]
  %v1838 = vld [vmem:[%s3 + $0x620] sm:$0xf]
  %v1839 = vld [vmem:[%s3 + $0x624] sm:$0xf]
  %v1840 = vld [vmem:[%s3 + $0x628] sm:$0xf]
  %v1841 = vld [vmem:[%s3 + $0x62c] sm:$0xf]
  %v1842 = vld [vmem:[%s3 + $0x630] sm:$0xf]
  %v1843 = vld [vmem:[%s3 + $0x634] sm:$0xf]
  %v1844 = vld [vmem:[%s3 + $0x638] sm:$0xf]
  %v1845 = vld [vmem:[%s3 + $0x63c] sm:$0xf]
  %v1846 = vld [vmem:[%s3 + $0x640] sm:$0xf]
  %v1847 = vld [vmem:[%s3 + $0x644] sm:$0xf]
  %v1848 = vld [vmem:[%s3 + $0x648] sm:$0xf]
  %v1849 = vld [vmem:[%s3 + $0x64c] sm:$0xf]
  %v1850 = vld [vmem:[%s3 + $0x650] sm:$0xf]
  %v1851 = vld [vmem:[%s3 + $0x654] sm:$0xf]
  %v1852 = vld [vmem:[%s3 + $0x658] sm:$0xf]
  %v1853 = vld [vmem:[%s3 + $0x65c] sm:$0xf]
  %v1854 = vld [vmem:[%s3 + $0x660] sm:$0xf]
  %v1855 = vld [vmem:[%s3 + $0x664] sm:$0xf]
  %v1856 = vld [vmem:[%s3 + $0x668] sm:$0xf]
  %v1857 = vld [vmem:[%s3 + $0x66c] sm:$0xf]
  %v1858 = vld [vmem:[%s3 + $0x670] sm:$0xf]
  %v1859 = vld [vmem:[%s3 + $0x674] sm:$0xf]
  %v1860 = vld [vmem:[%s3 + $0x678] sm:$0xf]
  %v1861 = vld [vmem:[%s3 + $0x67c] sm:$0xf]
  %v1862 = vld [vmem:[%s3 + $0x680] sm:$0xf]
  %v1863 = vld [vmem:[%s3 + $0x684] sm:$0xf]
  %v1864 = vld [vmem:[%s3 + $0x688] sm:$0xf]
  %v1865 = vld [vmem:[%s3 + $0x68c] sm:$0xf]
  %v1866 = vld [vmem:[%s3 + $0x690] sm:$0xf]
  %v1867 = vld [vmem:[%s3 + $0x694] sm:$0xf]
  %v1868 = vld [vmem:[%s3 + $0x698] sm:$0xf]
  %v1869 = vld [vmem:[%s3 + $0x69c] sm:$0xf]
  %v1870 = vld [vmem:[%s3 + $0x6a0] sm:$0xf]
  %v1871 = vld [vmem:[%s3 + $0x6a4] sm:$0xf]
  %v1872 = vld [vmem:[%s3 + $0x6a8] sm:$0xf]
  %v1873 = vld [vmem:[%s3 + $0x6ac] sm:$0xf]
  %v1874 = vld [vmem:[%s3 + $0x6b0] sm:$0xf]
  %v1875 = vld [vmem:[%s3 + $0x6b4] sm:$0xf]
  %v1876 = vld [vmem:[%s3 + $0x6b8] sm:$0xf]
  %v1877 = vld [vmem:[%s3 + $0x6bc] sm:$0xf]
  %v1878 = vld [vmem:[%s3 + $0x6c0] sm:$0xf]
  %v1879 = vld [vmem:[%s3 + $0x6c4] sm:$0xf]
  %v1880 = vld [vmem:[%s3 + $0x6c8] sm:$0xf]
  %v1881 = vld [vmem:[%s3 + $0x6cc] sm:$0xf]
  %v1882 = vld [vmem:[%s3 + $0x6d0] sm:$0xf]
  %v1883 = vld [vmem:[%s3 + $0x6d4] sm:$0xf]
  %v1884 = vld [vmem:[%s3 + $0x6d8] sm:$0xf]
  %v1885 = vld [vmem:[%s3 + $0x6dc] sm:$0xf]
  %v1886 = vld [vmem:[%s3 + $0x6e0] sm:$0xf]
  %v1887 = vld [vmem:[%s3 + $0x6e4] sm:$0xf]
  %v1888 = vld [vmem:[%s3 + $0x6e8] sm:$0xf]
  %v1889 = vld [vmem:[%s3 + $0x6ec] sm:$0xf]
  %v1890 = vld [vmem:[%s3 + $0x6f0] sm:$0xf]
  %v1891 = vld [vmem:[%s3 + $0x6f4] sm:$0xf]
  %v1892 = vld [vmem:[%s3 + $0x6f8] sm:$0xf]
  %v1893 = vld [vmem:[%s3 + $0x6fc] sm:$0xf]
  %v1894 = vld [vmem:[%s4] sm:$0x1]
  %v1896 = vperm.slane %v1894, 0
  %v1926 = vunpack.c.l.b16 %v1418
  %v1927 = vunpack.c.h.b16 %v1418
  %v1928 = vunpack.c.l.b16 %v1419
  %v1929 = vunpack.c.h.b16 %v1419
  %v1930 = vunpack.c.l.b16 %v1420
  %v1931 = vunpack.c.h.b16 %v1420
  %v1932 = vunpack.c.l.b16 %v1421
  %v1933 = vunpack.c.h.b16 %v1421
  %v1934 = vunpack.c.l.b16 %v1422
  %v1935 = vunpack.c.h.b16 %v1422
  %v1936 = vunpack.c.l.b16 %v1423
  %v1937 = vunpack.c.h.b16 %v1423
  %v1938 = vunpack.c.l.b16 %v1424
  %v1939 = vunpack.c.h.b16 %v1424
  %v1940 = vunpack.c.l.b16 %v1425
  %v1941 = vunpack.c.h.b16 %v1425
  %v1942 = vunpack.c.l.b16 %v1426
  %v1943 = vunpack.c.h.b16 %v1426
  %v1944 = vunpack.c.l.b16 %v1427
  %v1945 = vunpack.c.h.b16 %v1427
  %v1946 = vunpack.c.l.b16 %v1428
  %v1947 = vunpack.c.h.b16 %v1428
  %v1948 = vunpack.c.l.b16 %v1429
  %v1949 = vunpack.c.h.b16 %v1429
  %v1950 = vunpack.c.l.b16 %v1430
  %v1951 = vunpack.c.h.b16 %v1430
  %v1952 = vunpack.c.l.b16 %v1431
  %v1953 = vunpack.c.h.b16 %v1431
  %v1954 = vunpack.c.l.b16 %v1432
  %v1955 = vunpack.c.h.b16 %v1432
  %v1956 = vunpack.c.l.b16 %v1433
  %v1957 = vunpack.c.h.b16 %v1433
  %v1958 = vunpack.c.l.b16 %v1434
  %v1959 = vunpack.c.h.b16 %v1434
  %v1960 = vunpack.c.l.b16 %v1435
  %v1961 = vunpack.c.h.b16 %v1435
  %v1962 = vunpack.c.l.b16 %v1436
  %v1963 = vunpack.c.h.b16 %v1436
  %v1964 = vunpack.c.l.b16 %v1437
  %v1965 = vunpack.c.h.b16 %v1437
  %v1966 = vunpack.c.l.b16 %v1438
  %v1967 = vunpack.c.h.b16 %v1438
  %v1968 = vunpack.c.l.b16 %v1439
  %v1969 = vunpack.c.h.b16 %v1439
  %v1970 = vunpack.c.l.b16 %v1440
  %v1971 = vunpack.c.h.b16 %v1440
  %v1972 = vunpack.c.l.b16 %v1441
  %v1973 = vunpack.c.h.b16 %v1441
  %v1974 = vunpack.c.l.b16 %v1442
  %v1975 = vunpack.c.h.b16 %v1442
  %v1976 = vunpack.c.l.b16 %v1443
  %v1977 = vunpack.c.h.b16 %v1443
  %v1978 = vunpack.c.l.b16 %v1444
  %v1979 = vunpack.c.h.b16 %v1444
  %v1980 = vunpack.c.l.b16 %v1445
  %v1981 = vunpack.c.h.b16 %v1445
  %v1982 = vpack.c.b16 %v1954, %v1926
  %v1983 = vpack.c.b16 %v1955, %v1927
  %v1984 = vpack.c.b16 %v1956, %v1928
  %v1985 = vpack.c.b16 %v1957, %v1929
  %v1986 = vpack.c.b16 %v1958, %v1930
  %v1987 = vpack.c.b16 %v1959, %v1931
  %v1988 = vpack.c.b16 %v1960, %v1932
  %v1989 = vpack.c.b16 %v1961, %v1933
  %v1990 = vpack.c.b16 %v1962, %v1934
  %v1991 = vpack.c.b16 %v1963, %v1935
  %v1992 = vpack.c.b16 %v1964, %v1936
  %v1993 = vpack.c.b16 %v1965, %v1937
  %v1994 = vpack.c.b16 %v1966, %v1938
  %v1995 = vpack.c.b16 %v1967, %v1939
  %v1996 = vpack.c.b16 %v1968, %v1940
  %v1997 = vpack.c.b16 %v1969, %v1941
  %v1998 = vpack.c.b16 %v1970, %v1942
  %v1999 = vpack.c.b16 %v1971, %v1943
  %v2000 = vpack.c.b16 %v1972, %v1944
  %v2001 = vpack.c.b16 %v1973, %v1945
  %v2002 = vpack.c.b16 %v1974, %v1946
  %v2003 = vpack.c.b16 %v1975, %v1947
  %v2004 = vpack.c.b16 %v1976, %v1948
  %v2005 = vpack.c.b16 %v1977, %v1949
  %v2006 = vpack.c.b16 %v1978, %v1950
  %v2007 = vpack.c.b16 %v1979, %v1951
  %v2008 = vpack.c.b16 %v1980, %v1952
  %v2009 = vpack.c.b16 %v1981, %v1953
  %v2486 = vunpack.c.l.b16 %v1446
  %v2487 = vunpack.c.l.b16 %v1447
  %v2488 = vunpack.c.l.b16 %v1448
  %v2489 = vunpack.c.l.b16 %v1449
  %v2490 = vunpack.c.l.b16 %v1450
  %v2491 = vunpack.c.l.b16 %v1451
  %v2492 = vunpack.c.l.b16 %v1452
  %v2493 = vunpack.c.l.b16 %v1453
  %v2494 = vunpack.c.l.b16 %v1454
  %v2495 = vunpack.c.l.b16 %v1455
  %v2496 = vunpack.c.l.b16 %v1456
  %v2497 = vunpack.c.l.b16 %v1457
  %v2498 = vunpack.c.l.b16 %v1458
  %v2499 = vunpack.c.l.b16 %v1459
  %v2500 = vunpack.c.l.b16 %v1460
  %v2501 = vunpack.c.l.b16 %v1461
  %v2502 = vunpack.c.l.b16 %v1462
  %v2503 = vunpack.c.l.b16 %v1463
  %v2504 = vunpack.c.l.b16 %v1464
  %v2505 = vunpack.c.l.b16 %v1465
  %v2506 = vunpack.c.l.b16 %v1466
  %v2507 = vunpack.c.l.b16 %v1467
  %v2508 = vunpack.c.l.b16 %v1468
  %v2509 = vunpack.c.l.b16 %v1469
  %v2510 = vunpack.c.l.b16 %v1470
  %v2511 = vunpack.c.l.b16 %v1471
  %v2512 = vunpack.c.l.b16 %v1472
  %v2513 = vunpack.c.l.b16 %v1473
  %v2514 = vunpack.c.l.b16 %v1474
  %v2515 = vunpack.c.l.b16 %v1475
  %v2516 = vunpack.c.l.b16 %v1476
  %v2517 = vunpack.c.l.b16 %v1477
  %v2518 = vunpack.c.l.b16 %v1478
  %v2519 = vunpack.c.l.b16 %v1479
  %v2520 = vunpack.c.l.b16 %v1480
  %v2521 = vunpack.c.l.b16 %v1481
  %v2522 = vunpack.c.l.b16 %v1482
  %v2523 = vunpack.c.l.b16 %v1483
  %v2524 = vunpack.c.l.b16 %v1484
  %v2525 = vunpack.c.l.b16 %v1485
  %v2526 = vunpack.c.l.b16 %v1486
  %v2527 = vunpack.c.l.b16 %v1487
  %v2528 = vunpack.c.l.b16 %v1488
  %v2529 = vunpack.c.l.b16 %v1489
  %v2530 = vunpack.c.l.b16 %v1490
  %v2531 = vunpack.c.l.b16 %v1491
  %v2532 = vunpack.c.l.b16 %v1492
  %v2533 = vunpack.c.l.b16 %v1493
  %v2534 = vunpack.c.l.b16 %v1494
  %v2535 = vunpack.c.l.b16 %v1495
  %v2536 = vunpack.c.l.b16 %v1496
  %v2537 = vunpack.c.l.b16 %v1497
  %v2538 = vunpack.c.l.b16 %v1498
  %v2539 = vunpack.c.l.b16 %v1499
  %v2540 = vunpack.c.l.b16 %v1500
  %v2541 = vunpack.c.l.b16 %v1501
  %v2542 = vunpack.c.l.b16 %v1502
  %v2543 = vunpack.c.l.b16 %v1503
  %v2544 = vunpack.c.l.b16 %v1504
  %v2545 = vunpack.c.l.b16 %v1505
  %v2546 = vunpack.c.l.b16 %v1506
  %v2547 = vunpack.c.l.b16 %v1507
  %v2548 = vunpack.c.l.b16 %v1508
  %v2549 = vunpack.c.l.b16 %v1509
  %v2550 = vunpack.c.l.b16 %v1510
  %v2551 = vunpack.c.l.b16 %v1511
  %v2552 = vunpack.c.l.b16 %v1512
  %v2553 = vunpack.c.l.b16 %v1513
  %v2554 = vunpack.c.l.b16 %v1514
  %v2555 = vunpack.c.l.b16 %v1515
  %v2556 = vunpack.c.l.b16 %v1516
  %v2557 = vunpack.c.l.b16 %v1517
  %v2558 = vunpack.c.l.b16 %v1518
  %v2559 = vunpack.c.l.b16 %v1519
  %v2560 = vunpack.c.l.b16 %v1520
  %v2561 = vunpack.c.l.b16 %v1521
  %v2562 = vunpack.c.l.b16 %v1522
  %v2563 = vunpack.c.l.b16 %v1523
  %v2564 = vunpack.c.l.b16 %v1524
  %v2565 = vunpack.c.l.b16 %v1525
  %v2566 = vunpack.c.l.b16 %v1526
  %v2567 = vunpack.c.l.b16 %v1527
  %v2568 = vunpack.c.l.b16 %v1528
  %v2569 = vunpack.c.l.b16 %v1529
  %v2570 = vunpack.c.l.b16 %v1530
  %v2571 = vunpack.c.l.b16 %v1531
  %v2572 = vunpack.c.l.b16 %v1532
  %v2573 = vunpack.c.l.b16 %v1533
  %v2574 = vunpack.c.l.b16 %v1534
  %v2575 = vunpack.c.l.b16 %v1535
  %v2576 = vunpack.c.l.b16 %v1536
  %v2577 = vunpack.c.l.b16 %v1537
  %v2578 = vunpack.c.l.b16 %v1538
  %v2579 = vunpack.c.l.b16 %v1539
  %v2580 = vunpack.c.l.b16 %v1540
  %v2581 = vunpack.c.l.b16 %v1541
  %v2582 = vunpack.c.l.b16 %v1542
  %v2583 = vunpack.c.l.b16 %v1543
  %v2584 = vunpack.c.l.b16 %v1544
  %v2585 = vunpack.c.l.b16 %v1545
  %v2586 = vunpack.c.l.b16 %v1546
  %v2587 = vunpack.c.l.b16 %v1547
  %v2588 = vunpack.c.l.b16 %v1548
  %v2589 = vunpack.c.l.b16 %v1549
  %v2590 = vunpack.c.l.b16 %v1550
  %v2591 = vunpack.c.l.b16 %v1551
  %v2592 = vunpack.c.l.b16 %v1552
  %v2593 = vunpack.c.l.b16 %v1553
  %v2594 = vunpack.c.l.b16 %v1554
  %v2595 = vunpack.c.l.b16 %v1555
  %v2596 = vunpack.c.l.b16 %v1556
  %v2597 = vunpack.c.l.b16 %v1557
  %v2598 = vunpack.c.l.b16 %v1558
  %v2599 = vunpack.c.l.b16 %v1559
  %v2600 = vunpack.c.l.b16 %v1560
  %v2601 = vunpack.c.l.b16 %v1561
  %v2602 = vunpack.c.l.b16 %v1562
  %v2603 = vunpack.c.l.b16 %v1563
  %v2604 = vunpack.c.l.b16 %v1564
  %v2605 = vunpack.c.l.b16 %v1565
  %v2606 = vunpack.c.l.b16 %v1566
  %v2607 = vunpack.c.l.b16 %v1567
  %v2608 = vunpack.c.l.b16 %v1568
  %v2609 = vunpack.c.l.b16 %v1569
  %v2610 = vunpack.c.l.b16 %v1570
  %v2611 = vunpack.c.l.b16 %v1571
  %v2612 = vunpack.c.l.b16 %v1572
  %v2613 = vunpack.c.l.b16 %v1573
  %v2614 = vunpack.c.l.b16 %v1574
  %v2615 = vunpack.c.l.b16 %v1575
  %v2616 = vunpack.c.l.b16 %v1576
  %v2617 = vunpack.c.l.b16 %v1577
  %v2618 = vunpack.c.l.b16 %v1578
  %v2619 = vunpack.c.l.b16 %v1579
  %v2620 = vunpack.c.l.b16 %v1580
  %v2621 = vunpack.c.l.b16 %v1581
  %v2622 = vunpack.c.l.b16 %v1582
  %v2623 = vunpack.c.l.b16 %v1583
  %v2624 = vunpack.c.l.b16 %v1584
  %v2625 = vunpack.c.l.b16 %v1585
  %v2626 = vunpack.c.l.b16 %v1586
  %v2627 = vunpack.c.l.b16 %v1587
  %v2628 = vunpack.c.l.b16 %v1588
  %v2629 = vunpack.c.l.b16 %v1589
  %v2630 = vunpack.c.l.b16 %v1590
  %v2631 = vunpack.c.l.b16 %v1591
  %v2632 = vunpack.c.l.b16 %v1592
  %v2633 = vunpack.c.l.b16 %v1593
  %v2634 = vunpack.c.l.b16 %v1594
  %v2635 = vunpack.c.l.b16 %v1595
  %v2636 = vunpack.c.l.b16 %v1596
  %v2637 = vunpack.c.l.b16 %v1597
  %v2638 = vunpack.c.l.b16 %v1598
  %v2639 = vunpack.c.l.b16 %v1599
  %v2640 = vunpack.c.l.b16 %v1600
  %v2641 = vunpack.c.l.b16 %v1601
  %v2642 = vunpack.c.l.b16 %v1602
  %v2643 = vunpack.c.l.b16 %v1603
  %v2644 = vunpack.c.l.b16 %v1604
  %v2645 = vunpack.c.l.b16 %v1605
  %v2646 = vunpack.c.l.b16 %v1606
  %v2647 = vunpack.c.l.b16 %v1607
  %v2648 = vunpack.c.l.b16 %v1608
  %v2649 = vunpack.c.l.b16 %v1609
  %v2650 = vunpack.c.l.b16 %v1610
  %v2651 = vunpack.c.l.b16 %v1611
  %v2652 = vunpack.c.l.b16 %v1612
  %v2653 = vunpack.c.l.b16 %v1613
  %v2654 = vunpack.c.l.b16 %v1614
  %v2655 = vunpack.c.l.b16 %v1615
  %v2656 = vunpack.c.l.b16 %v1616
  %v2657 = vunpack.c.l.b16 %v1617
  %v2658 = vunpack.c.l.b16 %v1618
  %v2659 = vunpack.c.l.b16 %v1619
  %v2660 = vunpack.c.l.b16 %v1620
  %v2661 = vunpack.c.l.b16 %v1621
  %v2662 = vunpack.c.l.b16 %v1622
  %v2663 = vunpack.c.l.b16 %v1623
  %v2664 = vunpack.c.l.b16 %v1624
  %v2665 = vunpack.c.l.b16 %v1625
  %v2666 = vunpack.c.l.b16 %v1626
  %v2667 = vunpack.c.l.b16 %v1627
  %v2668 = vunpack.c.l.b16 %v1628
  %v2669 = vunpack.c.l.b16 %v1629
  %v2670 = vunpack.c.l.b16 %v1630
  %v2671 = vunpack.c.l.b16 %v1631
  %v2672 = vunpack.c.l.b16 %v1632
  %v2673 = vunpack.c.l.b16 %v1633
  %v2674 = vunpack.c.l.b16 %v1634
  %v2675 = vunpack.c.l.b16 %v1635
  %v2676 = vunpack.c.l.b16 %v1636
  %v2677 = vunpack.c.l.b16 %v1637
  %v2678 = vunpack.c.l.b16 %v1638
  %v2679 = vunpack.c.l.b16 %v1639
  %v2680 = vunpack.c.l.b16 %v1640
  %v2681 = vunpack.c.l.b16 %v1641
  %v2682 = vunpack.c.l.b16 %v1642
  %v2683 = vunpack.c.l.b16 %v1643
  %v2684 = vunpack.c.l.b16 %v1644
  %v2685 = vunpack.c.l.b16 %v1645
  %v2686 = vunpack.c.l.b16 %v1646
  %v2687 = vunpack.c.l.b16 %v1647
  %v2688 = vunpack.c.l.b16 %v1648
  %v2689 = vunpack.c.l.b16 %v1649
  %v2690 = vunpack.c.l.b16 %v1650
  %v2691 = vunpack.c.l.b16 %v1651
  %v2692 = vunpack.c.l.b16 %v1652
  %v2693 = vunpack.c.l.b16 %v1653
  %v2694 = vunpack.c.l.b16 %v1654
  %v2695 = vunpack.c.l.b16 %v1655
  %v2696 = vunpack.c.l.b16 %v1656
  %v2697 = vunpack.c.l.b16 %v1657
  %v2698 = vunpack.c.l.b16 %v1658
  %v2699 = vunpack.c.l.b16 %v1659
  %v2700 = vunpack.c.l.b16 %v1660
  %v2701 = vunpack.c.l.b16 %v1661
  %v2702 = vunpack.c.l.b16 %v1662
  %v2703 = vunpack.c.l.b16 %v1663
  %v2704 = vunpack.c.l.b16 %v1664
  %v2705 = vunpack.c.l.b16 %v1665
  %v2706 = vunpack.c.l.b16 %v1666
  %v2707 = vunpack.c.l.b16 %v1667
  %v2708 = vunpack.c.l.b16 %v1668
  %v2709 = vunpack.c.l.b16 %v1669
  %v2710 = vunpack.c.l.b16 %v1670
  %v2711 = vunpack.c.l.b16 %v1671
  %v2712 = vunpack.c.l.b16 %v1672
  %v2713 = vunpack.c.l.b16 %v1673
  %v2714 = vunpack.c.l.b16 %v1674
  %v2715 = vunpack.c.l.b16 %v1675
  %v2716 = vunpack.c.l.b16 %v1676
  %v2717 = vunpack.c.l.b16 %v1677
  %v2718 = vunpack.c.l.b16 %v1678
  %v2719 = vunpack.c.l.b16 %v1679
  %v2720 = vunpack.c.l.b16 %v1680
  %v2721 = vunpack.c.l.b16 %v1681
  %v2722 = vunpack.c.l.b16 %v1682
  %v2723 = vunpack.c.l.b16 %v1683
  %v2724 = vunpack.c.l.b16 %v1684
  %v2725 = vunpack.c.l.b16 %v1685
  %v2726 = vunpack.c.l.b16 %v1686
  %v2727 = vunpack.c.l.b16 %v1687
  %v2728 = vunpack.c.l.b16 %v1688
  %v2729 = vunpack.c.l.b16 %v1689
  %v2730 = vunpack.c.l.b16 %v1690
  %v2731 = vunpack.c.l.b16 %v1691
  %v2732 = vunpack.c.l.b16 %v1692
  %v2733 = vunpack.c.l.b16 %v1693
  %v2734 = vunpack.c.l.b16 %v1694
  %v2735 = vunpack.c.l.b16 %v1695
  %v2736 = vunpack.c.l.b16 %v1696
  %v2737 = vunpack.c.l.b16 %v1697
  %v2738 = vunpack.c.l.b16 %v1698
  %v2739 = vunpack.c.l.b16 %v1699
  %v2740 = vunpack.c.l.b16 %v1700
  %v2741 = vunpack.c.l.b16 %v1701
  %v2742 = vunpack.c.l.b16 %v1702
  %v2743 = vunpack.c.l.b16 %v1703
  %v2744 = vunpack.c.l.b16 %v1704
  %v2745 = vunpack.c.l.b16 %v1705
  %v2746 = vunpack.c.l.b16 %v1706
  %v2747 = vunpack.c.l.b16 %v1707
  %v2748 = vunpack.c.l.b16 %v1708
  %v2749 = vunpack.c.l.b16 %v1709
  %v2750 = vunpack.c.l.b16 %v1710
  %v2751 = vunpack.c.l.b16 %v1711
  %v2752 = vunpack.c.l.b16 %v1712
  %v2753 = vunpack.c.l.b16 %v1713
  %v2754 = vunpack.c.l.b16 %v1714
  %v2755 = vunpack.c.l.b16 %v1715
  %v2756 = vunpack.c.l.b16 %v1716
  %v2757 = vunpack.c.l.b16 %v1717
  %v2758 = vunpack.c.l.b16 %v1718
  %v2759 = vunpack.c.l.b16 %v1719
  %v2760 = vunpack.c.l.b16 %v1720
  %v2761 = vunpack.c.l.b16 %v1721
  %v2762 = vunpack.c.l.b16 %v1722
  %v2763 = vunpack.c.l.b16 %v1723
  %v2764 = vunpack.c.l.b16 %v1724
  %v2765 = vunpack.c.l.b16 %v1725
  %v2766 = vunpack.c.l.b16 %v1726
  %v2767 = vunpack.c.l.b16 %v1727
  %v2768 = vunpack.c.l.b16 %v1728
  %v2769 = vunpack.c.l.b16 %v1729
  %v2770 = vunpack.c.l.b16 %v1730
  %v2771 = vunpack.c.l.b16 %v1731
  %v2772 = vunpack.c.l.b16 %v1732
  %v2773 = vunpack.c.l.b16 %v1733
  %v2774 = vunpack.c.l.b16 %v1734
  %v2775 = vunpack.c.l.b16 %v1735
  %v2776 = vunpack.c.l.b16 %v1736
  %v2777 = vunpack.c.l.b16 %v1737
  %v2778 = vunpack.c.l.b16 %v1738
  %v2779 = vunpack.c.l.b16 %v1739
  %v2780 = vunpack.c.l.b16 %v1740
  %v2781 = vunpack.c.l.b16 %v1741
  %v2782 = vunpack.c.l.b16 %v1742
  %v2783 = vunpack.c.l.b16 %v1743
  %v2784 = vunpack.c.l.b16 %v1744
  %v2785 = vunpack.c.l.b16 %v1745
  %v2786 = vunpack.c.l.b16 %v1746
  %v2787 = vunpack.c.l.b16 %v1747
  %v2788 = vunpack.c.l.b16 %v1748
  %v2789 = vunpack.c.l.b16 %v1749
  %v2790 = vunpack.c.l.b16 %v1750
  %v2791 = vunpack.c.l.b16 %v1751
  %v2792 = vunpack.c.l.b16 %v1752
  %v2793 = vunpack.c.l.b16 %v1753
  %v2794 = vunpack.c.l.b16 %v1754
  %v2795 = vunpack.c.l.b16 %v1755
  %v2796 = vunpack.c.l.b16 %v1756
  %v2797 = vunpack.c.l.b16 %v1757
  %v2798 = vunpack.c.l.b16 %v1758
  %v2799 = vunpack.c.l.b16 %v1759
  %v2800 = vunpack.c.l.b16 %v1760
  %v2801 = vunpack.c.l.b16 %v1761
  %v2802 = vunpack.c.l.b16 %v1762
  %v2803 = vunpack.c.l.b16 %v1763
  %v2804 = vunpack.c.l.b16 %v1764
  %v2805 = vunpack.c.l.b16 %v1765
  %v2806 = vunpack.c.l.b16 %v1766
  %v2807 = vunpack.c.l.b16 %v1767
  %v2808 = vunpack.c.l.b16 %v1768
  %v2809 = vunpack.c.l.b16 %v1769
  %v2810 = vunpack.c.l.b16 %v1770
  %v2811 = vunpack.c.l.b16 %v1771
  %v2812 = vunpack.c.l.b16 %v1772
  %v2813 = vunpack.c.l.b16 %v1773
  %v2814 = vunpack.c.l.b16 %v1774
  %v2815 = vunpack.c.l.b16 %v1775
  %v2816 = vunpack.c.l.b16 %v1776
  %v2817 = vunpack.c.l.b16 %v1777
  %v2818 = vunpack.c.l.b16 %v1778
  %v2819 = vunpack.c.l.b16 %v1779
  %v2820 = vunpack.c.l.b16 %v1780
  %v2821 = vunpack.c.l.b16 %v1781
  %v2822 = vunpack.c.l.b16 %v1782
  %v2823 = vunpack.c.l.b16 %v1783
  %v2824 = vunpack.c.l.b16 %v1784
  %v2825 = vunpack.c.l.b16 %v1785
  %v2826 = vunpack.c.l.b16 %v1786
  %v2827 = vunpack.c.l.b16 %v1787
  %v2828 = vunpack.c.l.b16 %v1788
  %v2829 = vunpack.c.l.b16 %v1789
  %v2830 = vunpack.c.l.b16 %v1790
  %v2831 = vunpack.c.l.b16 %v1791
  %v2832 = vunpack.c.l.b16 %v1792
  %v2833 = vunpack.c.l.b16 %v1793
  %v2834 = vunpack.c.l.b16 %v1794
  %v2835 = vunpack.c.l.b16 %v1795
  %v2836 = vunpack.c.l.b16 %v1796
  %v2837 = vunpack.c.l.b16 %v1797
  %v2838 = vunpack.c.l.b16 %v1798
  %v2839 = vunpack.c.l.b16 %v1799
  %v2840 = vunpack.c.l.b16 %v1800
  %v2841 = vunpack.c.l.b16 %v1801
  %v2842 = vunpack.c.l.b16 %v1802
  %v2843 = vunpack.c.l.b16 %v1803
  %v2844 = vunpack.c.l.b16 %v1804
  %v2845 = vunpack.c.l.b16 %v1805
  %v2846 = vunpack.c.l.b16 %v1806
  %v2847 = vunpack.c.l.b16 %v1807
  %v2848 = vunpack.c.l.b16 %v1808
  %v2849 = vunpack.c.l.b16 %v1809
  %v2850 = vunpack.c.l.b16 %v1810
  %v2851 = vunpack.c.l.b16 %v1811
  %v2852 = vunpack.c.l.b16 %v1812
  %v2853 = vunpack.c.l.b16 %v1813
  %v2854 = vunpack.c.l.b16 %v1814
  %v2855 = vunpack.c.l.b16 %v1815
  %v2856 = vunpack.c.l.b16 %v1816
  %v2857 = vunpack.c.l.b16 %v1817
  %v2858 = vunpack.c.l.b16 %v1818
  %v2859 = vunpack.c.l.b16 %v1819
  %v2860 = vunpack.c.l.b16 %v1820
  %v2861 = vunpack.c.l.b16 %v1821
  %v2862 = vunpack.c.l.b16 %v1822
  %v2863 = vunpack.c.l.b16 %v1823
  %v2864 = vunpack.c.l.b16 %v1824
  %v2865 = vunpack.c.l.b16 %v1825
  %v2866 = vunpack.c.l.b16 %v1826
  %v2867 = vunpack.c.l.b16 %v1827
  %v2868 = vunpack.c.l.b16 %v1828
  %v2869 = vunpack.c.l.b16 %v1829
  %v2870 = vunpack.c.l.b16 %v1830
  %v2871 = vunpack.c.l.b16 %v1831
  %v2872 = vunpack.c.l.b16 %v1832
  %v2873 = vunpack.c.l.b16 %v1833
  %v2874 = vunpack.c.l.b16 %v1834
  %v2875 = vunpack.c.l.b16 %v1835
  %v2876 = vunpack.c.l.b16 %v1836
  %v2877 = vunpack.c.l.b16 %v1837
  %v2878 = vunpack.c.l.b16 %v1838
  %v2879 = vunpack.c.l.b16 %v1839
  %v2880 = vunpack.c.l.b16 %v1840
  %v2881 = vunpack.c.l.b16 %v1841
  %v2882 = vunpack.c.l.b16 %v1842
  %v2883 = vunpack.c.l.b16 %v1843
  %v2884 = vunpack.c.l.b16 %v1844
  %v2885 = vunpack.c.l.b16 %v1845
  %v2886 = vunpack.c.l.b16 %v1846
  %v2887 = vunpack.c.l.b16 %v1847
  %v2888 = vunpack.c.l.b16 %v1848
  %v2889 = vunpack.c.l.b16 %v1849
  %v2890 = vunpack.c.l.b16 %v1850
  %v2891 = vunpack.c.l.b16 %v1851
  %v2892 = vunpack.c.l.b16 %v1852
  %v2893 = vunpack.c.l.b16 %v1853
  %v2894 = vunpack.c.l.b16 %v1854
  %v2895 = vunpack.c.l.b16 %v1855
  %v2896 = vunpack.c.l.b16 %v1856
  %v2897 = vunpack.c.l.b16 %v1857
  %v2898 = vunpack.c.l.b16 %v1858
  %v2899 = vunpack.c.l.b16 %v1859
  %v2900 = vunpack.c.l.b16 %v1860
  %v2901 = vunpack.c.l.b16 %v1861
  %v2902 = vunpack.c.l.b16 %v1862
  %v2903 = vunpack.c.l.b16 %v1863
  %v2904 = vunpack.c.l.b16 %v1864
  %v2905 = vunpack.c.l.b16 %v1865
  %v2906 = vunpack.c.l.b16 %v1866
  %v2907 = vunpack.c.l.b16 %v1867
  %v2908 = vunpack.c.l.b16 %v1868
  %v2909 = vunpack.c.l.b16 %v1869
  %v2910 = vunpack.c.l.b16 %v1870
  %v2911 = vunpack.c.l.b16 %v1871
  %v2912 = vunpack.c.l.b16 %v1872
  %v2913 = vunpack.c.l.b16 %v1873
  %v2914 = vunpack.c.l.b16 %v1874
  %v2915 = vunpack.c.l.b16 %v1875
  %v2916 = vunpack.c.l.b16 %v1876
  %v2917 = vunpack.c.l.b16 %v1877
  %v2918 = vunpack.c.l.b16 %v1878
  %v2919 = vunpack.c.l.b16 %v1879
  %v2920 = vunpack.c.l.b16 %v1880
  %v2921 = vunpack.c.l.b16 %v1881
  %v2922 = vunpack.c.l.b16 %v1882
  %v2923 = vunpack.c.l.b16 %v1883
  %v2924 = vunpack.c.l.b16 %v1884
  %v2925 = vunpack.c.l.b16 %v1885
  %v2926 = vunpack.c.l.b16 %v1886
  %v2927 = vunpack.c.l.b16 %v1887
  %v2928 = vunpack.c.l.b16 %v1888
  %v2929 = vunpack.c.l.b16 %v1889
  %v2930 = vunpack.c.l.b16 %v1890
  %v2931 = vunpack.c.l.b16 %v1891
  %v2932 = vunpack.c.l.b16 %v1892
  %v2933 = vunpack.c.l.b16 %v1893
  %v2934 = vpack.c.b16 %v2487, %v2486
  %v2935 = vpack.c.b16 %v2489, %v2488
  %v2936 = vpack.c.b16 %v2491, %v2490
  %v2937 = vpack.c.b16 %v2493, %v2492
  %v2938 = vpack.c.b16 %v2495, %v2494
  %v2939 = vpack.c.b16 %v2497, %v2496
  %v2940 = vpack.c.b16 %v2499, %v2498
  %v2941 = vpack.c.b16 %v2501, %v2500
  %v2942 = vpack.c.b16 %v2503, %v2502
  %v2943 = vpack.c.b16 %v2505, %v2504
  %v2944 = vpack.c.b16 %v2507, %v2506
  %v2945 = vpack.c.b16 %v2509, %v2508
  %v2946 = vpack.c.b16 %v2511, %v2510
  %v2947 = vpack.c.b16 %v2513, %v2512
  %v2948 = vpack.c.b16 %v2515, %v2514
  %v2949 = vpack.c.b16 %v2517, %v2516
  %v2950 = vpack.c.b16 %v2519, %v2518
  %v2951 = vpack.c.b16 %v2521, %v2520
  %v2952 = vpack.c.b16 %v2523, %v2522
  %v2953 = vpack.c.b16 %v2525, %v2524
  %v2954 = vpack.c.b16 %v2527, %v2526
  %v2955 = vpack.c.b16 %v2529, %v2528
  %v2956 = vpack.c.b16 %v2531, %v2530
  %v2957 = vpack.c.b16 %v2533, %v2532
  %v2958 = vpack.c.b16 %v2535, %v2534
  %v2959 = vpack.c.b16 %v2537, %v2536
  %v2960 = vpack.c.b16 %v2539, %v2538
  %v2961 = vpack.c.b16 %v2541, %v2540
  %v2962 = vpack.c.b16 %v2543, %v2542
  %v2963 = vpack.c.b16 %v2545, %v2544
  %v2964 = vpack.c.b16 %v2547, %v2546
  %v2965 = vpack.c.b16 %v2549, %v2548
  %v2966 = vpack.c.b16 %v2551, %v2550
  %v2967 = vpack.c.b16 %v2553, %v2552
  %v2968 = vpack.c.b16 %v2555, %v2554
  %v2969 = vpack.c.b16 %v2557, %v2556
  %v2970 = vpack.c.b16 %v2559, %v2558
  %v2971 = vpack.c.b16 %v2561, %v2560
  %v2972 = vpack.c.b16 %v2563, %v2562
  %v2973 = vpack.c.b16 %v2565, %v2564
  %v2974 = vpack.c.b16 %v2567, %v2566
  %v2975 = vpack.c.b16 %v2569, %v2568
  %v2976 = vpack.c.b16 %v2571, %v2570
  %v2977 = vpack.c.b16 %v2573, %v2572
  %v2978 = vpack.c.b16 %v2575, %v2574
  %v2979 = vpack.c.b16 %v2577, %v2576
  %v2980 = vpack.c.b16 %v2579, %v2578
  %v2981 = vpack.c.b16 %v2581, %v2580
  %v2982 = vpack.c.b16 %v2583, %v2582
  %v2983 = vpack.c.b16 %v2585, %v2584
  %v2984 = vpack.c.b16 %v2587, %v2586
  %v2985 = vpack.c.b16 %v2589, %v2588
  %v2986 = vpack.c.b16 %v2591, %v2590
  %v2987 = vpack.c.b16 %v2593, %v2592
  %v2988 = vpack.c.b16 %v2595, %v2594
  %v2989 = vpack.c.b16 %v2597, %v2596
  %v2990 = vpack.c.b16 %v2599, %v2598
  %v2991 = vpack.c.b16 %v2601, %v2600
  %v2992 = vpack.c.b16 %v2603, %v2602
  %v2993 = vpack.c.b16 %v2605, %v2604
  %v2994 = vpack.c.b16 %v2607, %v2606
  %v2995 = vpack.c.b16 %v2609, %v2608
  %v2996 = vpack.c.b16 %v2611, %v2610
  %v2997 = vpack.c.b16 %v2613, %v2612
  %v2998 = vpack.c.b16 %v2615, %v2614
  %v2999 = vpack.c.b16 %v2617, %v2616
  %v3000 = vpack.c.b16 %v2619, %v2618
  %v3001 = vpack.c.b16 %v2621, %v2620
  %v3002 = vpack.c.b16 %v2623, %v2622
  %v3003 = vpack.c.b16 %v2625, %v2624
  %v3004 = vpack.c.b16 %v2627, %v2626
  %v3005 = vpack.c.b16 %v2629, %v2628
  %v3006 = vpack.c.b16 %v2631, %v2630
  %v3007 = vpack.c.b16 %v2633, %v2632
  %v3008 = vpack.c.b16 %v2635, %v2634
  %v3009 = vpack.c.b16 %v2637, %v2636
  %v3010 = vpack.c.b16 %v2639, %v2638
  %v3011 = vpack.c.b16 %v2641, %v2640
  %v3012 = vpack.c.b16 %v2643, %v2642
  %v3013 = vpack.c.b16 %v2645, %v2644
  %v3014 = vpack.c.b16 %v2647, %v2646
  %v3015 = vpack.c.b16 %v2649, %v2648
  %v3016 = vpack.c.b16 %v2651, %v2650
  %v3017 = vpack.c.b16 %v2653, %v2652
  %v3018 = vpack.c.b16 %v2655, %v2654
  %v3019 = vpack.c.b16 %v2657, %v2656
  %v3020 = vpack.c.b16 %v2659, %v2658
  %v3021 = vpack.c.b16 %v2661, %v2660
  %v3022 = vpack.c.b16 %v2663, %v2662
  %v3023 = vpack.c.b16 %v2665, %v2664
  %v3024 = vpack.c.b16 %v2667, %v2666
  %v3025 = vpack.c.b16 %v2669, %v2668
  %v3026 = vpack.c.b16 %v2671, %v2670
  %v3027 = vpack.c.b16 %v2673, %v2672
  %v3028 = vpack.c.b16 %v2675, %v2674
  %v3029 = vpack.c.b16 %v2677, %v2676
  %v3030 = vpack.c.b16 %v2679, %v2678
  %v3031 = vpack.c.b16 %v2681, %v2680
  %v3032 = vpack.c.b16 %v2683, %v2682
  %v3033 = vpack.c.b16 %v2685, %v2684
  %v3034 = vpack.c.b16 %v2687, %v2686
  %v3035 = vpack.c.b16 %v2689, %v2688
  %v3036 = vpack.c.b16 %v2691, %v2690
  %v3037 = vpack.c.b16 %v2693, %v2692
  %v3038 = vpack.c.b16 %v2695, %v2694
  %v3039 = vpack.c.b16 %v2697, %v2696
  %v3040 = vpack.c.b16 %v2699, %v2698
  %v3041 = vpack.c.b16 %v2701, %v2700
  %v3042 = vpack.c.b16 %v2703, %v2702
  %v3043 = vpack.c.b16 %v2705, %v2704
  %v3044 = vpack.c.b16 %v2707, %v2706
  %v3045 = vpack.c.b16 %v2709, %v2708
  %v3046 = vpack.c.b16 %v2711, %v2710
  %v3047 = vpack.c.b16 %v2713, %v2712
  %v3048 = vpack.c.b16 %v2715, %v2714
  %v3049 = vpack.c.b16 %v2717, %v2716
  %v3050 = vpack.c.b16 %v2719, %v2718
  %v3051 = vpack.c.b16 %v2721, %v2720
  %v3052 = vpack.c.b16 %v2723, %v2722
  %v3053 = vpack.c.b16 %v2725, %v2724
  %v3054 = vpack.c.b16 %v2727, %v2726
  %v3055 = vpack.c.b16 %v2729, %v2728
  %v3056 = vpack.c.b16 %v2731, %v2730
  %v3057 = vpack.c.b16 %v2733, %v2732
  %v3058 = vpack.c.b16 %v2735, %v2734
  %v3059 = vpack.c.b16 %v2737, %v2736
  %v3060 = vpack.c.b16 %v2739, %v2738
  %v3061 = vpack.c.b16 %v2741, %v2740
  %v3062 = vpack.c.b16 %v2743, %v2742
  %v3063 = vpack.c.b16 %v2745, %v2744
  %v3064 = vpack.c.b16 %v2747, %v2746
  %v3065 = vpack.c.b16 %v2749, %v2748
  %v3066 = vpack.c.b16 %v2751, %v2750
  %v3067 = vpack.c.b16 %v2753, %v2752
  %v3068 = vpack.c.b16 %v2755, %v2754
  %v3069 = vpack.c.b16 %v2757, %v2756
  %v3070 = vpack.c.b16 %v2759, %v2758
  %v3071 = vpack.c.b16 %v2761, %v2760
  %v3072 = vpack.c.b16 %v2763, %v2762
  %v3073 = vpack.c.b16 %v2765, %v2764
  %v3074 = vpack.c.b16 %v2767, %v2766
  %v3075 = vpack.c.b16 %v2769, %v2768
  %v3076 = vpack.c.b16 %v2771, %v2770
  %v3077 = vpack.c.b16 %v2773, %v2772
  %v3078 = vpack.c.b16 %v2775, %v2774
  %v3079 = vpack.c.b16 %v2777, %v2776
  %v3080 = vpack.c.b16 %v2779, %v2778
  %v3081 = vpack.c.b16 %v2781, %v2780
  %v3082 = vpack.c.b16 %v2783, %v2782
  %v3083 = vpack.c.b16 %v2785, %v2784
  %v3084 = vpack.c.b16 %v2787, %v2786
  %v3085 = vpack.c.b16 %v2789, %v2788
  %v3086 = vpack.c.b16 %v2791, %v2790
  %v3087 = vpack.c.b16 %v2793, %v2792
  %v3088 = vpack.c.b16 %v2795, %v2794
  %v3089 = vpack.c.b16 %v2797, %v2796
  %v3090 = vpack.c.b16 %v2799, %v2798
  %v3091 = vpack.c.b16 %v2801, %v2800
  %v3092 = vpack.c.b16 %v2803, %v2802
  %v3093 = vpack.c.b16 %v2805, %v2804
  %v3094 = vpack.c.b16 %v2807, %v2806
  %v3095 = vpack.c.b16 %v2809, %v2808
  %v3096 = vpack.c.b16 %v2811, %v2810
  %v3097 = vpack.c.b16 %v2813, %v2812
  %v3098 = vpack.c.b16 %v2815, %v2814
  %v3099 = vpack.c.b16 %v2817, %v2816
  %v3100 = vpack.c.b16 %v2819, %v2818
  %v3101 = vpack.c.b16 %v2821, %v2820
  %v3102 = vpack.c.b16 %v2823, %v2822
  %v3103 = vpack.c.b16 %v2825, %v2824
  %v3104 = vpack.c.b16 %v2827, %v2826
  %v3105 = vpack.c.b16 %v2829, %v2828
  %v3106 = vpack.c.b16 %v2831, %v2830
  %v3107 = vpack.c.b16 %v2833, %v2832
  %v3108 = vpack.c.b16 %v2835, %v2834
  %v3109 = vpack.c.b16 %v2837, %v2836
  %v3110 = vpack.c.b16 %v2839, %v2838
  %v3111 = vpack.c.b16 %v2841, %v2840
  %v3112 = vpack.c.b16 %v2843, %v2842
  %v3113 = vpack.c.b16 %v2845, %v2844
  %v3114 = vpack.c.b16 %v2847, %v2846
  %v3115 = vpack.c.b16 %v2849, %v2848
  %v3116 = vpack.c.b16 %v2851, %v2850
  %v3117 = vpack.c.b16 %v2853, %v2852
  %v3118 = vpack.c.b16 %v2855, %v2854
  %v3119 = vpack.c.b16 %v2857, %v2856
  %v3120 = vpack.c.b16 %v2859, %v2858
  %v3121 = vpack.c.b16 %v2861, %v2860
  %v3122 = vpack.c.b16 %v2863, %v2862
  %v3123 = vpack.c.b16 %v2865, %v2864
  %v3124 = vpack.c.b16 %v2867, %v2866
  %v3125 = vpack.c.b16 %v2869, %v2868
  %v3126 = vpack.c.b16 %v2871, %v2870
  %v3127 = vpack.c.b16 %v2873, %v2872
  %v3128 = vpack.c.b16 %v2875, %v2874
  %v3129 = vpack.c.b16 %v2877, %v2876
  %v3130 = vpack.c.b16 %v2879, %v2878
  %v3131 = vpack.c.b16 %v2881, %v2880
  %v3132 = vpack.c.b16 %v2883, %v2882
  %v3133 = vpack.c.b16 %v2885, %v2884
  %v3134 = vpack.c.b16 %v2887, %v2886
  %v3135 = vpack.c.b16 %v2889, %v2888
  %v3136 = vpack.c.b16 %v2891, %v2890
  %v3137 = vpack.c.b16 %v2893, %v2892
  %v3138 = vpack.c.b16 %v2895, %v2894
  %v3139 = vpack.c.b16 %v2897, %v2896
  %v3140 = vpack.c.b16 %v2899, %v2898
  %v3141 = vpack.c.b16 %v2901, %v2900
  %v3142 = vpack.c.b16 %v2903, %v2902
  %v3143 = vpack.c.b16 %v2905, %v2904
  %v3144 = vpack.c.b16 %v2907, %v2906
  %v3145 = vpack.c.b16 %v2909, %v2908
  %v3146 = vpack.c.b16 %v2911, %v2910
  %v3147 = vpack.c.b16 %v2913, %v2912
  %v3148 = vpack.c.b16 %v2915, %v2914
  %v3149 = vpack.c.b16 %v2917, %v2916
  %v3150 = vpack.c.b16 %v2919, %v2918
  %v3151 = vpack.c.b16 %v2921, %v2920
  %v3152 = vpack.c.b16 %v2923, %v2922
  %v3153 = vpack.c.b16 %v2925, %v2924
  %v3154 = vpack.c.b16 %v2927, %v2926
  %v3155 = vpack.c.b16 %v2929, %v2928
  %v3156 = vpack.c.b16 %v2931, %v2930
  %v3157 = vpack.c.b16 %v2933, %v2932
  %3382 = vmatpush.bf16.msra.mxu0 %v2941
  %3383 = vmatpush.bf16.msra.mxu0 %v2940
  %3384 = vmatpush.bf16.msra.mxu0 %v2939
  %3385 = vmatpush.bf16.msra.mxu0 %v2938
  %3386 = vmatpush.bf16.msra.mxu0 %v2937
  %3387 = vmatpush.bf16.msra.mxu0 %v2936
  %3388 = vmatpush.bf16.msra.mxu0 %v2935
  %3389 = vmatpush.bf16.msra.mxu0 %v2934
  %3390 = vmatmul.bf16.gmra.mxu0 %v1982
  %v3391 = vpop.f32.mrf.mxu0
  %v3392 = vadd.f32 %v1896, %v3391
  %v3393 = vpop.f32.mrf.mxu0
  %v3394 = vadd.f32 %v1896, %v3393
  %3395 = vdwg.mxu0
  %3396 = vmatpush.bf16.msra.mxu0 %v2949
  %3397 = vmatpush.bf16.msra.mxu0 %v2948
  %3398 = vmatpush.bf16.msra.mxu0 %v2947
  %3399 = vmatpush.bf16.msra.mxu0 %v2946
  %3400 = vmatpush.bf16.msra.mxu0 %v2945
  %3401 = vmatpush.bf16.msra.mxu0 %v2944
  %3402 = vmatpush.bf16.msra.mxu0 %v2943
  %3403 = vmatpush.bf16.msra.mxu0 %v2942
  %3404 = vmatmul.bf16.gmra.mxu0 %v1983
  %v3405 = vpop.f32.mrf.mxu0
  %v3406 = vadd.f32 %v3392, %v3405
  %v3407 = vpop.f32.mrf.mxu0
  %v3408 = vadd.f32 %v3394, %v3407
  %3409 = vdwg.mxu0
  %3410 = vmatpush.bf16.msra.mxu0 %v2957
  %3411 = vmatpush.bf16.msra.mxu0 %v2956
  %3412 = vmatpush.bf16.msra.mxu0 %v2955
  %3413 = vmatpush.bf16.msra.mxu0 %v2954
  %3414 = vmatpush.bf16.msra.mxu0 %v2953
  %3415 = vmatpush.bf16.msra.mxu0 %v2952
  %3416 = vmatpush.bf16.msra.mxu0 %v2951
  %3417 = vmatpush.bf16.msra.mxu0 %v2950
  %3418 = vmatmul.bf16.gmra.mxu0 %v1984
  %v3419 = vpop.f32.mrf.mxu0
  %v3420 = vadd.f32 %v3406, %v3419
  %v3421 = vpop.f32.mrf.mxu0
  %v3422 = vadd.f32 %v3408, %v3421
  %3423 = vdwg.mxu0
  %3424 = vmatpush.bf16.msra.mxu0 %v2965
  %3425 = vmatpush.bf16.msra.mxu0 %v2964
  %3426 = vmatpush.bf16.msra.mxu0 %v2963
  %3427 = vmatpush.bf16.msra.mxu0 %v2962
  %3428 = vmatpush.bf16.msra.mxu0 %v2961
  %3429 = vmatpush.bf16.msra.mxu0 %v2960
  %3430 = vmatpush.bf16.msra.mxu0 %v2959
  %3431 = vmatpush.bf16.msra.mxu0 %v2958
  %3432 = vmatmul.bf16.gmra.mxu0 %v1985
  %v3433 = vpop.f32.mrf.mxu0
  %v3434 = vadd.f32 %v3420, %v3433
  %v3435 = vpop.f32.mrf.mxu0
  %v3436 = vadd.f32 %v3422, %v3435
  %3437 = vdwg.mxu0
  %3438 = vmatpush.bf16.msra.mxu0 %v2973
  %3439 = vmatpush.bf16.msra.mxu0 %v2972
  %3440 = vmatpush.bf16.msra.mxu0 %v2971
  %3441 = vmatpush.bf16.msra.mxu0 %v2970
  %3442 = vmatpush.bf16.msra.mxu0 %v2969
  %3443 = vmatpush.bf16.msra.mxu0 %v2968
  %3444 = vmatpush.bf16.msra.mxu0 %v2967
  %3445 = vmatpush.bf16.msra.mxu0 %v2966
  %3446 = vmatmul.bf16.gmra.mxu0 %v1986
  %v3447 = vpop.f32.mrf.mxu0
  %v3448 = vadd.f32 %v3434, %v3447
  %v3449 = vpop.f32.mrf.mxu0
  %v3450 = vadd.f32 %v3436, %v3449
  %3451 = vdwg.mxu0
  %3452 = vmatpush.bf16.msra.mxu0 %v2981
  %3453 = vmatpush.bf16.msra.mxu0 %v2980
  %3454 = vmatpush.bf16.msra.mxu0 %v2979
  %3455 = vmatpush.bf16.msra.mxu0 %v2978
  %3456 = vmatpush.bf16.msra.mxu0 %v2977
  %3457 = vmatpush.bf16.msra.mxu0 %v2976
  %3458 = vmatpush.bf16.msra.mxu0 %v2975
  %3459 = vmatpush.bf16.msra.mxu0 %v2974
  %3460 = vmatmul.bf16.gmra.mxu0 %v1987
  %v3461 = vpop.f32.mrf.mxu0
  %v3462 = vadd.f32 %v3448, %v3461
  %v3463 = vpop.f32.mrf.mxu0
  %v3464 = vadd.f32 %v3450, %v3463
  %3465 = vdwg.mxu0
  %3466 = vmatpush.bf16.msra.mxu0 %v2989
  %3467 = vmatpush.bf16.msra.mxu0 %v2988
  %3468 = vmatpush.bf16.msra.mxu0 %v2987
  %3469 = vmatpush.bf16.msra.mxu0 %v2986
  %3470 = vmatpush.bf16.msra.mxu0 %v2985
  %3471 = vmatpush.bf16.msra.mxu0 %v2984
  %3472 = vmatpush.bf16.msra.mxu0 %v2983
  %3473 = vmatpush.bf16.msra.mxu0 %v2982
  %3474 = vmatmul.bf16.gmra.mxu0 %v1988
  %v3475 = vpop.f32.mrf.mxu0
  %v3476 = vadd.f32 %v3462, %v3475
  %v3477 = vpop.f32.mrf.mxu0
  %v3478 = vadd.f32 %v3464, %v3477
  %3479 = vdwg.mxu0
  %3480 = vmatpush.bf16.msra.mxu0 %v2997
  %3481 = vmatpush.bf16.msra.mxu0 %v2996
  %3482 = vmatpush.bf16.msra.mxu0 %v2995
  %3483 = vmatpush.bf16.msra.mxu0 %v2994
  %3484 = vmatpush.bf16.msra.mxu0 %v2993
  %3485 = vmatpush.bf16.msra.mxu0 %v2992
  %3486 = vmatpush.bf16.msra.mxu0 %v2991
  %3487 = vmatpush.bf16.msra.mxu0 %v2990
  %3488 = vmatmul.bf16.gmra.mxu0 %v1989
  %v3489 = vpop.f32.mrf.mxu0
  %v3490 = vadd.f32 %v3476, %v3489
  %v3491 = vpop.f32.mrf.mxu0
  %v3492 = vadd.f32 %v3478, %v3491
  %3493 = vdwg.mxu0
  %3494 = vmatpush.bf16.msra.mxu0 %v3005
  %3495 = vmatpush.bf16.msra.mxu0 %v3004
  %3496 = vmatpush.bf16.msra.mxu0 %v3003
  %3497 = vmatpush.bf16.msra.mxu0 %v3002
  %3498 = vmatpush.bf16.msra.mxu0 %v3001
  %3499 = vmatpush.bf16.msra.mxu0 %v3000
  %3500 = vmatpush.bf16.msra.mxu0 %v2999
  %3501 = vmatpush.bf16.msra.mxu0 %v2998
  %3502 = vmatmul.bf16.gmra.mxu0 %v1990
  %v3503 = vpop.f32.mrf.mxu0
  %v3504 = vadd.f32 %v3490, %v3503
  %v3505 = vpop.f32.mrf.mxu0
  %v3506 = vadd.f32 %v3492, %v3505
  %3507 = vdwg.mxu0
  %3508 = vmatpush.bf16.msra.mxu0 %v3013
  %3509 = vmatpush.bf16.msra.mxu0 %v3012
  %3510 = vmatpush.bf16.msra.mxu0 %v3011
  %3511 = vmatpush.bf16.msra.mxu0 %v3010
  %3512 = vmatpush.bf16.msra.mxu0 %v3009
  %3513 = vmatpush.bf16.msra.mxu0 %v3008
  %3514 = vmatpush.bf16.msra.mxu0 %v3007
  %3515 = vmatpush.bf16.msra.mxu0 %v3006
  %3516 = vmatmul.bf16.gmra.mxu0 %v1991
  %v3517 = vpop.f32.mrf.mxu0
  %v3518 = vadd.f32 %v3504, %v3517
  %v3519 = vpop.f32.mrf.mxu0
  %v3520 = vadd.f32 %v3506, %v3519
  %3521 = vdwg.mxu0
  %3522 = vmatpush.bf16.msra.mxu0 %v3021
  %3523 = vmatpush.bf16.msra.mxu0 %v3020
  %3524 = vmatpush.bf16.msra.mxu0 %v3019
  %3525 = vmatpush.bf16.msra.mxu0 %v3018
  %3526 = vmatpush.bf16.msra.mxu0 %v3017
  %3527 = vmatpush.bf16.msra.mxu0 %v3016
  %3528 = vmatpush.bf16.msra.mxu0 %v3015
  %3529 = vmatpush.bf16.msra.mxu0 %v3014
  %3530 = vmatmul.bf16.gmra.mxu0 %v1992
  %v3531 = vpop.f32.mrf.mxu0
  %v3532 = vadd.f32 %v3518, %v3531
  %v3533 = vpop.f32.mrf.mxu0
  %v3534 = vadd.f32 %v3520, %v3533
  %3535 = vdwg.mxu0
  %3536 = vmatpush.bf16.msra.mxu0 %v3029
  %3537 = vmatpush.bf16.msra.mxu0 %v3028
  %3538 = vmatpush.bf16.msra.mxu0 %v3027
  %3539 = vmatpush.bf16.msra.mxu0 %v3026
  %3540 = vmatpush.bf16.msra.mxu0 %v3025
  %3541 = vmatpush.bf16.msra.mxu0 %v3024
  %3542 = vmatpush.bf16.msra.mxu0 %v3023
  %3543 = vmatpush.bf16.msra.mxu0 %v3022
  %3544 = vmatmul.bf16.gmra.mxu0 %v1993
  %v3545 = vpop.f32.mrf.mxu0
  %v3546 = vadd.f32 %v3532, %v3545
  %v3547 = vpop.f32.mrf.mxu0
  %v3548 = vadd.f32 %v3534, %v3547
  %3549 = vdwg.mxu0
  %3550 = vmatpush.bf16.msra.mxu0 %v3037
  %3551 = vmatpush.bf16.msra.mxu0 %v3036
  %3552 = vmatpush.bf16.msra.mxu0 %v3035
  %3553 = vmatpush.bf16.msra.mxu0 %v3034
  %3554 = vmatpush.bf16.msra.mxu0 %v3033
  %3555 = vmatpush.bf16.msra.mxu0 %v3032
  %3556 = vmatpush.bf16.msra.mxu0 %v3031
  %3557 = vmatpush.bf16.msra.mxu0 %v3030
  %3558 = vmatmul.bf16.gmra.mxu0 %v1994
  %v3559 = vpop.f32.mrf.mxu0
  %v3560 = vadd.f32 %v3546, %v3559
  %v3561 = vpop.f32.mrf.mxu0
  %v3562 = vadd.f32 %v3548, %v3561
  %3563 = vdwg.mxu0
  %3564 = vmatpush.bf16.msra.mxu0 %v3045
  %3565 = vmatpush.bf16.msra.mxu0 %v3044
  %3566 = vmatpush.bf16.msra.mxu0 %v3043
  %3567 = vmatpush.bf16.msra.mxu0 %v3042
  %3568 = vmatpush.bf16.msra.mxu0 %v3041
  %3569 = vmatpush.bf16.msra.mxu0 %v3040
  %3570 = vmatpush.bf16.msra.mxu0 %v3039
  %3571 = vmatpush.bf16.msra.mxu0 %v3038
  %3572 = vmatmul.bf16.gmra.mxu0 %v1995
  %v3573 = vpop.f32.mrf.mxu0
  %v3574 = vadd.f32 %v3560, %v3573
  %v3575 = vpop.f32.mrf.mxu0
  %v3576 = vadd.f32 %v3562, %v3575
  %3577 = vdwg.mxu0
  %3578 = vmatpush.bf16.msra.mxu0 %v3053
  %3579 = vmatpush.bf16.msra.mxu0 %v3052
  %3580 = vmatpush.bf16.msra.mxu0 %v3051
  %3581 = vmatpush.bf16.msra.mxu0 %v3050
  %3582 = vmatpush.bf16.msra.mxu0 %v3049
  %3583 = vmatpush.bf16.msra.mxu0 %v3048
  %3584 = vmatpush.bf16.msra.mxu0 %v3047
  %3585 = vmatpush.bf16.msra.mxu0 %v3046
  %3586 = vmatmul.bf16.gmra.mxu0 %v1996
  %v3587 = vpop.f32.mrf.mxu0
  %v3588 = vadd.f32 %v3574, %v3587
  %v3589 = vpop.f32.mrf.mxu0
  %v3590 = vadd.f32 %v3576, %v3589
  %3591 = vdwg.mxu0
  %3592 = vmatpush.bf16.msra.mxu0 %v3061
  %3593 = vmatpush.bf16.msra.mxu0 %v3060
  %3594 = vmatpush.bf16.msra.mxu0 %v3059
  %3595 = vmatpush.bf16.msra.mxu0 %v3058
  %3596 = vmatpush.bf16.msra.mxu0 %v3057
  %3597 = vmatpush.bf16.msra.mxu0 %v3056
  %3598 = vmatpush.bf16.msra.mxu0 %v3055
  %3599 = vmatpush.bf16.msra.mxu0 %v3054
  %3600 = vmatmul.bf16.gmra.mxu0 %v1997
  %v3601 = vpop.f32.mrf.mxu0
  %v3602 = vadd.f32 %v3588, %v3601
  %v3603 = vpop.f32.mrf.mxu0
  %v3604 = vadd.f32 %v3590, %v3603
  %3605 = vdwg.mxu0
  %3606 = vmatpush.bf16.msra.mxu0 %v3069
  %3607 = vmatpush.bf16.msra.mxu0 %v3068
  %3608 = vmatpush.bf16.msra.mxu0 %v3067
  %3609 = vmatpush.bf16.msra.mxu0 %v3066
  %3610 = vmatpush.bf16.msra.mxu0 %v3065
  %3611 = vmatpush.bf16.msra.mxu0 %v3064
  %3612 = vmatpush.bf16.msra.mxu0 %v3063
  %3613 = vmatpush.bf16.msra.mxu0 %v3062
  %3614 = vmatmul.bf16.gmra.mxu0 %v1998
  %v3615 = vpop.f32.mrf.mxu0
  %v3616 = vadd.f32 %v3602, %v3615
  %v3617 = vpop.f32.mrf.mxu0
  %v3618 = vadd.f32 %v3604, %v3617
  %3619 = vdwg.mxu0
  %3620 = vmatpush.bf16.msra.mxu0 %v3077
  %3621 = vmatpush.bf16.msra.mxu0 %v3076
  %3622 = vmatpush.bf16.msra.mxu0 %v3075
  %3623 = vmatpush.bf16.msra.mxu0 %v3074
  %3624 = vmatpush.bf16.msra.mxu0 %v3073
  %3625 = vmatpush.bf16.msra.mxu0 %v3072
  %3626 = vmatpush.bf16.msra.mxu0 %v3071
  %3627 = vmatpush.bf16.msra.mxu0 %v3070
  %3628 = vmatmul.bf16.gmra.mxu0 %v1999
  %v3629 = vpop.f32.mrf.mxu0
  %v3630 = vadd.f32 %v3616, %v3629
  %v3631 = vpop.f32.mrf.mxu0
  %v3632 = vadd.f32 %v3618, %v3631
  %3633 = vdwg.mxu0
  %3634 = vmatpush.bf16.msra.mxu0 %v3085
  %3635 = vmatpush.bf16.msra.mxu0 %v3084
  %3636 = vmatpush.bf16.msra.mxu0 %v3083
  %3637 = vmatpush.bf16.msra.mxu0 %v3082
  %3638 = vmatpush.bf16.msra.mxu0 %v3081
  %3639 = vmatpush.bf16.msra.mxu0 %v3080
  %3640 = vmatpush.bf16.msra.mxu0 %v3079
  %3641 = vmatpush.bf16.msra.mxu0 %v3078
  %3642 = vmatmul.bf16.gmra.mxu0 %v2000
  %v3643 = vpop.f32.mrf.mxu0
  %v3644 = vadd.f32 %v3630, %v3643
  %v3645 = vpop.f32.mrf.mxu0
  %v3646 = vadd.f32 %v3632, %v3645
  %3647 = vdwg.mxu0
  %3648 = vmatpush.bf16.msra.mxu0 %v3093
  %3649 = vmatpush.bf16.msra.mxu0 %v3092
  %3650 = vmatpush.bf16.msra.mxu0 %v3091
  %3651 = vmatpush.bf16.msra.mxu0 %v3090
  %3652 = vmatpush.bf16.msra.mxu0 %v3089
  %3653 = vmatpush.bf16.msra.mxu0 %v3088
  %3654 = vmatpush.bf16.msra.mxu0 %v3087
  %3655 = vmatpush.bf16.msra.mxu0 %v3086
  %3656 = vmatmul.bf16.gmra.mxu0 %v2001
  %v3657 = vpop.f32.mrf.mxu0
  %v3658 = vadd.f32 %v3644, %v3657
  %v3659 = vpop.f32.mrf.mxu0
  %v3660 = vadd.f32 %v3646, %v3659
  %3661 = vdwg.mxu0
  %3662 = vmatpush.bf16.msra.mxu0 %v3101
  %3663 = vmatpush.bf16.msra.mxu0 %v3100
  %3664 = vmatpush.bf16.msra.mxu0 %v3099
  %3665 = vmatpush.bf16.msra.mxu0 %v3098
  %3666 = vmatpush.bf16.msra.mxu0 %v3097
  %3667 = vmatpush.bf16.msra.mxu0 %v3096
  %3668 = vmatpush.bf16.msra.mxu0 %v3095
  %3669 = vmatpush.bf16.msra.mxu0 %v3094
  %3670 = vmatmul.bf16.gmra.mxu0 %v2002
  %v3671 = vpop.f32.mrf.mxu0
  %v3672 = vadd.f32 %v3658, %v3671
  %v3673 = vpop.f32.mrf.mxu0
  %v3674 = vadd.f32 %v3660, %v3673
  %3675 = vdwg.mxu0
  %3676 = vmatpush.bf16.msra.mxu0 %v3109
  %3677 = vmatpush.bf16.msra.mxu0 %v3108
  %3678 = vmatpush.bf16.msra.mxu0 %v3107
  %3679 = vmatpush.bf16.msra.mxu0 %v3106
  %3680 = vmatpush.bf16.msra.mxu0 %v3105
  %3681 = vmatpush.bf16.msra.mxu0 %v3104
  %3682 = vmatpush.bf16.msra.mxu0 %v3103
  %3683 = vmatpush.bf16.msra.mxu0 %v3102
  %3684 = vmatmul.bf16.gmra.mxu0 %v2003
  %v3685 = vpop.f32.mrf.mxu0
  %v3686 = vadd.f32 %v3672, %v3685
  %v3687 = vpop.f32.mrf.mxu0
  %v3688 = vadd.f32 %v3674, %v3687
  %3689 = vdwg.mxu0
  %3690 = vmatpush.bf16.msra.mxu0 %v3117
  %3691 = vmatpush.bf16.msra.mxu0 %v3116
  %3692 = vmatpush.bf16.msra.mxu0 %v3115
  %3693 = vmatpush.bf16.msra.mxu0 %v3114
  %3694 = vmatpush.bf16.msra.mxu0 %v3113
  %3695 = vmatpush.bf16.msra.mxu0 %v3112
  %3696 = vmatpush.bf16.msra.mxu0 %v3111
  %3697 = vmatpush.bf16.msra.mxu0 %v3110
  %3698 = vmatmul.bf16.gmra.mxu0 %v2004
  %v3699 = vpop.f32.mrf.mxu0
  %v3700 = vadd.f32 %v3686, %v3699
  %v3701 = vpop.f32.mrf.mxu0
  %v3702 = vadd.f32 %v3688, %v3701
  %3703 = vdwg.mxu0
  %3704 = vmatpush.bf16.msra.mxu0 %v3125
  %3705 = vmatpush.bf16.msra.mxu0 %v3124
  %3706 = vmatpush.bf16.msra.mxu0 %v3123
  %3707 = vmatpush.bf16.msra.mxu0 %v3122
  %3708 = vmatpush.bf16.msra.mxu0 %v3121
  %3709 = vmatpush.bf16.msra.mxu0 %v3120
  %3710 = vmatpush.bf16.msra.mxu0 %v3119
  %3711 = vmatpush.bf16.msra.mxu0 %v3118
  %3712 = vmatmul.bf16.gmra.mxu0 %v2005
  %v3713 = vpop.f32.mrf.mxu0
  %v3714 = vadd.f32 %v3700, %v3713
  %v3715 = vpop.f32.mrf.mxu0
  %v3716 = vadd.f32 %v3702, %v3715
  %3717 = vdwg.mxu0
  %3718 = vmatpush.bf16.msra.mxu0 %v3133
  %3719 = vmatpush.bf16.msra.mxu0 %v3132
  %3720 = vmatpush.bf16.msra.mxu0 %v3131
  %3721 = vmatpush.bf16.msra.mxu0 %v3130
  %3722 = vmatpush.bf16.msra.mxu0 %v3129
  %3723 = vmatpush.bf16.msra.mxu0 %v3128
  %3724 = vmatpush.bf16.msra.mxu0 %v3127
  %3725 = vmatpush.bf16.msra.mxu0 %v3126
  %3726 = vmatmul.bf16.gmra.mxu0 %v2006
  %v3727 = vpop.f32.mrf.mxu0
  %v3728 = vadd.f32 %v3714, %v3727
  %v3729 = vpop.f32.mrf.mxu0
  %v3730 = vadd.f32 %v3716, %v3729
  %3731 = vdwg.mxu0
  %3732 = vmatpush.bf16.msra.mxu0 %v3141
  %3733 = vmatpush.bf16.msra.mxu0 %v3140
  %3734 = vmatpush.bf16.msra.mxu0 %v3139
  %3735 = vmatpush.bf16.msra.mxu0 %v3138
  %3736 = vmatpush.bf16.msra.mxu0 %v3137
  %3737 = vmatpush.bf16.msra.mxu0 %v3136
  %3738 = vmatpush.bf16.msra.mxu0 %v3135
  %3739 = vmatpush.bf16.msra.mxu0 %v3134
  %3740 = vmatmul.bf16.gmra.mxu0 %v2007
  %v3741 = vpop.f32.mrf.mxu0
  %v3742 = vadd.f32 %v3728, %v3741
  %v3743 = vpop.f32.mrf.mxu0
  %v3744 = vadd.f32 %v3730, %v3743
  %3745 = vdwg.mxu0
  %3746 = vmatpush.bf16.msra.mxu0 %v3149
  %3747 = vmatpush.bf16.msra.mxu0 %v3148
  %3748 = vmatpush.bf16.msra.mxu0 %v3147
  %3749 = vmatpush.bf16.msra.mxu0 %v3146
  %3750 = vmatpush.bf16.msra.mxu0 %v3145
  %3751 = vmatpush.bf16.msra.mxu0 %v3144
  %3752 = vmatpush.bf16.msra.mxu0 %v3143
  %3753 = vmatpush.bf16.msra.mxu0 %v3142
  %3754 = vmatmul.bf16.gmra.mxu0 %v2008
  %v3755 = vpop.f32.mrf.mxu0
  %v3756 = vadd.f32 %v3742, %v3755
  %v3757 = vpop.f32.mrf.mxu0
  %v3758 = vadd.f32 %v3744, %v3757
  %3759 = vdwg.mxu0
  %3760 = vmatpush.bf16.msra.mxu0 %v3157
  %3761 = vmatpush.bf16.msra.mxu0 %v3156
  %3762 = vmatpush.bf16.msra.mxu0 %v3155
  %3763 = vmatpush.bf16.msra.mxu0 %v3154
  %3764 = vmatpush.bf16.msra.mxu0 %v3153
  %3765 = vmatpush.bf16.msra.mxu0 %v3152
  %3766 = vmatpush.bf16.msra.mxu0 %v3151
  %3767 = vmatpush.bf16.msra.mxu0 %v3150
  %3768 = vmatmul.bf16.gmra.mxu0 %v2009
  %v3769 = vpop.f32.mrf.mxu0
  %v3770 = vadd.f32 %v3756, %v3769
  %v3771 = vpop.f32.mrf.mxu0
  %v3772 = vadd.f32 %v3758, %v3771
  %3773 = vdwg.mxu0
  %v3774 = vmax.f32 %v3770, 0.0
  %v3775 = vmax.f32 %v3772, 0.0
  %v3776 = vpack.c.bf16 %v3775, %v3774
  %v3777 = vld [vmem:[%s5] sm:$0xf]
  %v3778 = vld [vmem:[%s5 + $0x4] sm:$0xf]
  %v3779 = vld [vmem:[%s5 + $0x8] sm:$0xf]
  %v3780 = vld [vmem:[%s5 + $0xc] sm:$0xf]
  %v3781 = vld [vmem:[%s6] sm:$0x1]
  %v3783 = vperm.slane %v3781, 0
  %v3789 = vunpack.c.l.b16 %v3777
  %v3790 = vunpack.c.l.b16 %v3778
  %v3791 = vunpack.c.l.b16 %v3779
  %v3792 = vunpack.c.l.b16 %v3780
  %v3793 = vpack.c.b16 %v3790, %v3789
  %v3794 = vpack.c.b16 %v3792, %v3791
  %vm3797 = vcmask 261120
  %v3799 = vsel %vm3797, %v3776, 0
  %3801 = vmatpush.bf16.msra.mxu0 0
  %3802 = vmatpush.bf16.msra.mxu0 0
  %3803 = vmatpush.bf16.msra.mxu0 0
  %3804 = vmatpush.bf16.msra.mxu0 0
  %3805 = vmatpush.bf16.msra.mxu0 0
  %3806 = vmatpush.bf16.msra.mxu0 0
  %3807 = vmatpush.bf16.msra.mxu0 %v3794
  %3808 = vmatpush.bf16.msra.mxu0 %v3793
  %3809 = vmatmul.bf16.gmra.mxu0 %v3799
  %v3810 = vpop.f32.mrf.mxu0
  %v3811 = vadd.f32 %v3783, %v3810
  %v3812 = vpop.f32.mrf.mxu0
  %v3813 = vadd.f32 %v3783, %v3812
  %3814 = vdwg.mxu0
  %v3815 = vmax.f32 %v3811, 0.0
  %v3816 = vmax.f32 %v3813, 0.0
  %3817 = vst.msk [vmem:[%s7] sm:$0xff] %vm3797, %v3815
  %3818 = vst.msk [vmem:[%s7 + $0x8] sm:$0xff] %vm3797, %v3816
  // Predicated region
  $region30: #{cnn_forward.1} parent=0 // pred_check
    _
  $region31: #{cnn_forward.1} parent=0 // pred_check_branch
    %3820 = sbr.rel (0) target = $region33
  $region32: #{cnn_forward.1} parent=0 // pred_region
    _
  $region33: #{cnn_forward.1} parent=0 // pred_fallthru
    _
  // Predicated region
  $region34: #{cnn_forward.1} parent=0 // pred_check
    _
  $region35: #{cnn_forward.1} parent=0 // pred_check_branch
    %3822 = sbr.rel (0) target = $region37
  $region36: #{cnn_forward.1} parent=0 // pred_region
    _
  $region37: #{cnn_forward.1} parent=0 // pred_fallthru
    _

</llo_original>
